<compile_context>
chip_gen: v7x
topology: tpu7x:2x2x1
jax: 0.10.0
libtpu: 0.0.40
codegen_flags: <defaults>
</compile_context>

<pallas_src>
import jax
import jax.numpy as jnp
from jax import lax
from jax.experimental import pallas as pl
from jax.experimental.pallas import tpu as pltpu

# ---- model dimensions (small, consistent with the forward pass) ------------
N, L, D = 2, 8, 32          # batch, sequence (context) length, width
NL = N * L
H = 4                        # attention heads
DH = D // H                  # head dim
LAYERS = 2                   # transformer depth
MLP = 4 * D                  # MLP hidden
E = 16                       # text_projection output dim
LN_EPS = 1e-5
MASK_VAL = -1e9              # additive causal-mask value (stand-in for -inf)
SCALE = 1.0 / float(DH) ** 0.5

BIAS_W = max(3 * D, MLP, D)  # = 128 : lane-dense bias-slab row width
OUT_PAD = 128                # lane-dense padded output width (>= E)


def _ln_rows(x, w, b):
    """LayerNorm over the last axis; w, b already shaped (1, D). All f32."""
    mu = jnp.mean(x, axis=-1, keepdims=True)
    var = jnp.mean((x - mu) ** 2, axis=-1, keepdims=True)
    return (x - mu) * lax.rsqrt(var + LN_EPS) * w + b


def _softmax(s):
    s = s - jnp.max(s, axis=-1, keepdims=True)
    e = jnp.exp(s)
    return e * pl.reciprocal(jnp.sum(e, axis=-1, keepdims=True), approx=True)


# ---------------------------------------------------------------------------
# Pallas kernel: whole TextEncoder forward for all N prompts in one program.
# ---------------------------------------------------------------------------
def text_encoder_kernel(x_ref,        # (N*L, D)  f32  prompts, batch folded into rows
                        eot_ref,      # (N, 1)    i32  flattened EOT row index n*L+eot
                        pos_ref,      # (N*L, D)  f32  positional emb pre-tiled at init
                        ln_ref,       # (4*LAYERS+2, D) f32 : per layer [ln1_w,ln1_b,ln2_w,ln2_b], then lnf_w,lnf_b
                        bias_ref,     # (4*LAYERS, BIAS_W) f32 : rows [b_qkv, b_o, b_fc1, b_fc2] per layer, lane-0 aligned
                        wqkv_ref,     # (LAYERS, D, 3D)      bf16 (SCALE folded into Q block)
                        wo_ref,       # (LAYERS*H, DH, D)    bf16 (out-proj pre-split per head)
                        w1_ref,       # (LAYERS, D, MLP)     bf16
                        w2_ref,       # (LAYERS, MLP, D)     bf16
                        proj_ref,     # (D, OUT_PAD)         bf16 (text_projection, zero-padded lanes)
                        out_ref):     # (N, OUT_PAD)         f32
    # Per-prompt causal mask (L, L), built once (no folded (NL,NL) mask).
    ri = lax.broadcasted_iota(jnp.int32, (L, L), 0)
    ci = lax.broadcasted_iota(jnp.int32, (L, L), 1)
    mask = jnp.where(ci <= ri, 0.0, MASK_VAL).astype(jnp.float32)        # (L, L)

    x = x_ref[...] + pos_ref[...]                                        # (NL, D) f32

    for l in range(LAYERS):                                              # static depth
        base = 4 * l
        ln1w = ln_ref[base + 0:base + 1, :]
        ln1b = ln_ref[base + 1:base + 2, :]
        ln2w = ln_ref[base + 2:base + 3, :]
        ln2b = ln_ref[base + 3:base + 4, :]
        # bias rows: lane-0-aligned prefix slices of 128-wide rows
        b_qkv = bias_ref[base + 0:base + 1, 0:3 * D]                     # (1, 3D)
        b_o   = bias_ref[base + 1:base + 2, 0:D]                         # (1, D)
        b_1   = bias_ref[base + 2:base + 3, 0:MLP]                       # (1, MLP)
        b_2   = bias_ref[base + 3:base + 4, 0:D]                         # (1, D)

        # ---- multi-head self-attention (pre-LN, residual) ----------------
        h = _ln_rows(x, ln1w, ln1b)
        qkv = jnp.dot(h.astype(jnp.bfloat16), wqkv_ref[l],
                      preferred_element_type=jnp.float32) + b_qkv        # (NL, 3D) f32
        qkv3 = qkv.reshape(N, L, 3 * D)                                  # free leading split

        attn = jnp.zeros((NL, D), jnp.float32)
        for hd in range(H):                                              # static head loop
            c = hd * DH
            q = qkv3[:, :,            c:            c + DH].astype(jnp.bfloat16)  # (N,L,DH)
            k = qkv3[:, :,     D + c:     D + c + DH].astype(jnp.bfloat16)
            v = qkv3[:, :, 2 * D + c: 2 * D + c + DH].astype(jnp.bfloat16)
            # per-prompt (L,L) scores, batched over prompts (SCALE already in Wq/bq)
            s = jnp.einsum('nqd,nkd->nqk', q, k,
                           preferred_element_type=jnp.float32)           # (N, L, L)
            p = _softmax(s + mask[None])
            o = jnp.einsum('nqk,nkd->nqd', p.astype(jnp.bfloat16), v,
                           preferred_element_type=jnp.float32)           # (N, L, DH)
            # accumulate head directly through its out-proj row block (no concat)
            attn = attn + jnp.dot(o.reshape(NL, DH).astype(jnp.bfloat16),
                                  wo_ref[l * H + hd],
                                  preferred_element_type=jnp.float32)    # (NL, D)
        x = x + attn + b_o

        # ---- MLP with QuickGELU (pre-LN, residual) ------------------------
        h = _ln_rows(x, ln2w, ln2b)
        h1 = jnp.dot(h.astype(jnp.bfloat16), w1_ref[l],
                     preferred_element_type=jnp.float32) + b_1           # (NL, MLP)
        h1 = h1 * jax.nn.sigmoid(1.702 * h1)                             # QuickGELU (f32)
        x = x + jnp.dot(h1.astype(jnp.bfloat16), w2_ref[l],
                        preferred_element_type=jnp.float32) + b_2

    # ---- gather EOT rows first, then ln_final, then lane-dense projection --
    cols = lax.broadcasted_iota(jnp.int32, (N, NL), 1)
    onehot = (cols == eot_ref[...]).astype(jnp.float32)                  # (N, NL)
    sel = jnp.dot(onehot, x, preferred_element_type=jnp.float32)         # (N, D)
    lnfw = ln_ref[4 * LAYERS + 0:4 * LAYERS + 1, :]
    lnfb = ln_ref[4 * LAYERS + 1:4 * LAYERS + 2, :]
    sel = _ln_rows(sel, lnfw, lnfb)                                      # LN only on N rows
    out_ref[...] = jnp.dot(sel.astype(jnp.bfloat16), proj_ref[...],
                           preferred_element_type=jnp.float32).astype(out_ref.dtype)


# ---------------------------------------------------------------------------
# Wrapper: build EOT indices, flatten batch (layout plumbing), call pallas_call.
# ---------------------------------------------------------------------------
def text_encoder(prompts, tokenized_prompts, kp):
    eot = jnp.argmax(tokenized_prompts, axis=-1).astype(jnp.int32)            # (N,)
    eot_idx = (jnp.arange(N, dtype=jnp.int32) * L + eot).reshape(N, 1)        # (N, 1)
    x_rows = prompts.reshape(N * L, D)                                        # fold batch into rows

    inputs = (x_rows, eot_idx, kp['pos_tiled'], kp['ln_slab'], kp['bias_slab'],
              kp['w_qkv'], kp['w_o'], kp['w1_t'], kp['w2_t'], kp['proj_pad'])
    vmem = pl.BlockSpec(memory_space=pltpu.MemorySpace.VMEM)
    out_pad = pl.pallas_call(
        text_encoder_kernel,
        out_shape=jax.ShapeDtypeStruct((N, OUT_PAD), jnp.float32),
        in_specs=[vmem] * len(inputs),
        out_specs=vmem,
    )(*inputs)
    return out_pad[:, :E]                                                     # drop lane padding


# ---------------------------------------------------------------------------
# Deterministic parameter construction (PyTorch-shaped) + kernel-layout slabs.
# Matmul weights are bf16-quantized (stand-in for CLIP's fp16 dtype) and the
# same quantized values are used by both the reference and the kernel.
# ---------------------------------------------------------------------------
def init_params(key):
    ks = jax.random.split(key, 16)
    nrm = lambda k, s, sc=0.02: sc * jax.random.normal(k, s, dtype=jnp.float32)
    q16 = lambda a: a.astype(jnp.bfloat16).astype(jnp.float32)   # bf16-quantize matmul weights

    torch_p = dict(
        pos=nrm(ks[0], (L, D)),
        w_in=q16(nrm(ks[1], (LAYERS, 3 * D, D))),   # nn.MultiheadAttention.in_proj_weight
        b_in=nrm(ks[2], (LAYERS, 3 * D)),
        w_out=q16(nrm(ks[3], (LAYERS, D, D))),      # out_proj.weight
        b_out=nrm(ks[4], (LAYERS, D)),
        w_fc1=q16(nrm(ks[5], (LAYERS, MLP, D))),
        b_fc1=nrm(ks[6], (LAYERS, MLP)),
        w_fc2=q16(nrm(ks[7], (LAYERS, D, MLP))),
        b_fc2=nrm(ks[8], (LAYERS, D)),
        ln1_w=1.0 + nrm(ks[9], (LAYERS, D), 0.01),
        ln1_b=nrm(ks[10], (LAYERS, D), 0.01),
        ln2_w=1.0 + nrm(ks[11], (LAYERS, D), 0.01),
        ln2_b=nrm(ks[12], (LAYERS, D), 0.01),
        lnf_w=1.0 + nrm(ks[13], (1, D), 0.01),
        lnf_b=nrm(ks[14], (1, D), 0.01),
        text_proj=q16(nrm(ks[15], (D, E))),
    )

    # ---- kernel layout ------------------------------------------------------
    ln_layers = jnp.stack([torch_p['ln1_w'], torch_p['ln1_b'],
                           torch_p['ln2_w'], torch_p['ln2_b']], axis=1)       # (LAYERS, 4, D)
    ln_slab = jnp.concatenate([ln_layers.reshape(4 * LAYERS, D),
                               torch_p['lnf_w'], torch_p['lnf_b']], axis=0)   # (4L+2, D)

    # fold attention scale into the Q rows of W_in / b_in (free init-time fold)
    scale_vec = jnp.concatenate([jnp.full((D,), SCALE, jnp.float32),
                                 jnp.ones((2 * D,), jnp.float32)])
    w_in_scaled = torch_p['w_in'] * scale_vec[None, :, None]
    b_in_scaled = torch_p['b_in'] * scale_vec[None, :]

    # 128-lane-aligned bias slab: one bias per row, zero padded to BIAS_W lanes
    def pad_row(b):
        return jnp.pad(b, ((0, 0), (0, BIAS_W - b.shape[-1])))
    bias_slab = jnp.stack([pad_row(b_in_scaled),
                           pad_row(torch_p['b_out']),
                           pad_row(torch_p['b_fc1']),
                           pad_row(torch_p['b_fc2'])], axis=1
                          ).reshape(4 * LAYERS, BIAS_W)                       # (4L, 128)

    # out-proj transposed then pre-split per head:  x @ Wo^T == sum_h head_h @ Wo^T[hDH:(h+1)DH, :]
    w_o_t = jnp.transpose(torch_p['w_out'], (0, 2, 1))                        # (LAYERS, D, D)
    w_o_heads = w_o_t.reshape(LAYERS, H, DH, D).reshape(LAYERS * H, DH, D)

    proj_pad = jnp.pad(torch_p['text_proj'], ((0, 0), (0, OUT_PAD - E)))      # (D, 128)

    kernel_p = dict(
        pos_tiled=jnp.tile(torch_p['pos'], (N, 1)),                           # (NL, D) constant
        ln_slab=ln_slab,
        bias_slab=bias_slab,
        w_qkv=jnp.transpose(w_in_scaled, (0, 2, 1)).astype(jnp.bfloat16),     # (LAYERS, D, 3D)
        w_o=w_o_heads.astype(jnp.bfloat16),                                   # (LAYERS*H, DH, D)
        w1_t=jnp.transpose(torch_p['w_fc1'], (0, 2, 1)).astype(jnp.bfloat16), # (LAYERS, D, MLP)
        w2_t=jnp.transpose(torch_p['w_fc2'], (0, 2, 1)).astype(jnp.bfloat16), # (LAYERS, MLP, D)
        proj_pad=proj_pad.astype(jnp.bfloat16),                               # (D, 128)
    )
    return torch_p, kernel_p


# ---------------------------------------------------------------------------
# Pure-JAX reference that mirrors the PyTorch forward exactly (f32 math on the
# same bf16-quantized weight values).
# ---------------------------------------------------------------------------
def _ln_ref(x, w, b):
    w = w.reshape(1, -1)
    b = b.reshape(1, -1)
    mu = jnp.mean(x, axis=-1, keepdims=True)
    var = jnp.mean((x - mu) ** 2, axis=-1, keepdims=True)
    return (x - mu) * lax.rsqrt(var + LN_EPS) * w + b


def reference(prompts, tokenized_prompts, p):
    x = prompts + p['pos'][None]                       # (N, L, D)
    r = jnp.arange(L)
    mask = jnp.where(r[None, :] <= r[:, None], 0.0, MASK_VAL).astype(jnp.float32)
    for l in range(LAYERS):
        h = _ln_ref(x, p['ln1_w'][l], p['ln1_b'][l])
        qkv = h @ p['w_in'][l].T + p['b_in'][l]
        q = qkv[..., :D] * SCALE
        k = qkv[..., D:2 * D]
        v = qkv[..., 2 * D:]
        q = q.reshape(N, L, H, DH).transpose(0, 2, 1, 3)
        k = k.reshape(N, L, H, DH).transpose(0, 2, 1, 3)
        v = v.reshape(N, L, H, DH).transpose(0, 2, 1, 3)
        s = q @ jnp.swapaxes(k, -1, -2) + mask
        pm = jax.nn.softmax(s, axis=-1)
        attn = (pm @ v).transpose(0, 2, 1, 3).reshape(N, L, D)
        attn = attn @ p['w_out'][l].T + p['b_out'][l]
        x = x + attn
        h = _ln_ref(x, p['ln2_w'][l], p['ln2_b'][l])
        h1 = h @ p['w_fc1'][l].T + p['b_fc1'][l]
        h1 = h1 * jax.nn.sigmoid(1.702 * h1)           # QuickGELU
        x = x + h1 @ p['w_fc2'][l].T + p['b_fc2'][l]
    x = _ln_ref(x, p['lnf_w'][0], p['lnf_b'][0])
    eot = jnp.argmax(tokenized_prompts, axis=-1)
    sel = x[jnp.arange(N), eot]                        # (N, D)
    return sel @ p['text_proj']


if __name__ == "__main__":
    key = jax.random.PRNGKey(0)
    k_par, k_prm, k_tok = jax.random.split(key, 3)
    torch_params, kernel_params = init_params(k_par)

    prompts = 0.1 * jax.random.normal(k_prm, (N, L, D), dtype=jnp.float32)
    tokens = jax.random.randint(k_tok, (N, L), 1, 1000, dtype=jnp.int32)
    eot_pos = jnp.array([5, 3], dtype=jnp.int32)
    tokens = tokens.at[jnp.arange(N), eot_pos].set(49407)   # EOT-like max token

    out = text_encoder(prompts, tokens, kernel_params)
    out = jax.block_until_ready(out)

    ref = reference(prompts, tokens, torch_params)
    assert out.shape == (N, E)
    # Tolerance accounts for bf16 matmul operands + approx softmax reciprocal
    # (weights themselves are identical between kernel and reference).
    max_err = float(jnp.max(jnp.abs(out - ref)))
    if not max_err < 1e-2:
        raise AssertionError(f"kernel/reference mismatch: max abs err {max_err}")
    print("KERNEL_OK")
</pallas_src>

<mosaic_0001>
module attributes {stable_mosaic.version = 11 : i64} {
  func.func @text_encoder_kernel(%arg0: memref<16x32xf32, #tpu.memory_space<vmem>>, %arg1: memref<2x1xi32, #tpu.memory_space<vmem>>, %arg2: memref<16x32xf32, #tpu.memory_space<vmem>>, %arg3: memref<10x32xf32, #tpu.memory_space<vmem>>, %arg4: memref<8x128xf32, #tpu.memory_space<vmem>>, %arg5: memref<2x32x96xbf16, #tpu.memory_space<vmem>>, %arg6: memref<8x8x32xbf16, #tpu.memory_space<vmem>>, %arg7: memref<2x32x128xbf16, #tpu.memory_space<vmem>>, %arg8: memref<2x128x32xbf16, #tpu.memory_space<vmem>>, %arg9: memref<32x128xbf16, #tpu.memory_space<vmem>>, %arg10: memref<2x128xf32, #tpu.memory_space<vmem>>) attributes {dimension_semantics = [], scalar_prefetch = 0 : i64, scratch_operands = 0 : i64, tpu.core_type = #tpu.core_type<tc>} {
    %0 = tpu.iota {dimensions = array<i32: 0>} : vector<8x8xi32>
    %1 = tpu.iota {dimensions = array<i32: 1>} : vector<8x8xi32>
    %2 = arith.cmpi sle, %1, %0 : vector<8x8xi32>
    %cst = arith.constant 0.000000e+00 : f32
    %cst_0 = arith.constant -1.000000e+09 : f32
    %3 = vector.broadcast %cst : f32 to vector<8x8xf32>
    %4 = vector.broadcast %cst_0 : f32 to vector<8x8xf32>
    %5 = arith.select %2, %3, %4 : vector<8x8xi1>, vector<8x8xf32>
    %c0 = arith.constant 0 : index
    %c0_1 = arith.constant 0 : index
    %6 = vector.load %arg0[%c0, %c0_1] : memref<16x32xf32, #tpu.memory_space<vmem>>, vector<16x32xf32>
    %c0_2 = arith.constant 0 : index
    %c0_3 = arith.constant 0 : index
    %7 = vector.load %arg2[%c0_2, %c0_3] : memref<16x32xf32, #tpu.memory_space<vmem>>, vector<16x32xf32>
    %8 = arith.addf %6, %7 : vector<16x32xf32>
    %c0_4 = arith.constant 0 : index
    %c0_5 = arith.constant 0 : index
    %9 = vector.load %arg3[%c0_4, %c0_5] : memref<10x32xf32, #tpu.memory_space<vmem>>, vector<1x32xf32>
    %c1 = arith.constant 1 : index
    %c0_6 = arith.constant 0 : index
    %10 = vector.load %arg3[%c1, %c0_6] : memref<10x32xf32, #tpu.memory_space<vmem>>, vector<1x32xf32>
    %c2 = arith.constant 2 : index
    %c0_7 = arith.constant 0 : index
    %11 = vector.load %arg3[%c2, %c0_7] : memref<10x32xf32, #tpu.memory_space<vmem>>, vector<1x32xf32>
    %c3 = arith.constant 3 : index
    %c0_8 = arith.constant 0 : index
    %12 = vector.load %arg3[%c3, %c0_8] : memref<10x32xf32, #tpu.memory_space<vmem>>, vector<1x32xf32>
    %c0_9 = arith.constant 0 : index
    %c0_10 = arith.constant 0 : index
    %13 = vector.load %arg4[%c0_9, %c0_10] : memref<8x128xf32, #tpu.memory_space<vmem>>, vector<1x96xf32>
    %c1_11 = arith.constant 1 : index
    %c0_12 = arith.constant 0 : index
    %14 = vector.load %arg4[%c1_11, %c0_12] : memref<8x128xf32, #tpu.memory_space<vmem>>, vector<1x32xf32>
    %c2_13 = arith.constant 2 : index
    %c0_14 = arith.constant 0 : index
    %15 = vector.load %arg4[%c2_13, %c0_14] : memref<8x128xf32, #tpu.memory_space<vmem>>, vector<1x128xf32>
    %c3_15 = arith.constant 3 : index
    %c0_16 = arith.constant 0 : index
    %16 = vector.load %arg4[%c3_15, %c0_16] : memref<8x128xf32, #tpu.memory_space<vmem>>, vector<1x32xf32>
    %cst_17 = arith.constant dense<0.000000e+00> : vector<16xf32>
    %17 = vector.multi_reduction <add>, %8, %cst_17 [1] : vector<16x32xf32> to vector<16xf32>
    %18 = vector.shape_cast %17 : vector<16xf32> to vector<16x1xf32>
    %cst_18 = arith.constant 3.200000e+01 : f32
    %19 = vector.broadcast %cst_18 : f32 to vector<16x1xf32>
    %20 = arith.divf %18, %19 : vector<16x1xf32>
    %21 = vector.broadcast %20 : vector<16x1xf32> to vector<16x32xf32>
    %22 = arith.subf %8, %21 : vector<16x32xf32>
    %23 = arith.mulf %22, %22 : vector<16x32xf32>
    %cst_19 = arith.constant dense<0.000000e+00> : vector<16xf32>
    %24 = vector.multi_reduction <add>, %23, %cst_19 [1] : vector<16x32xf32> to vector<16xf32>
    %25 = vector.shape_cast %24 : vector<16xf32> to vector<16x1xf32>
    %cst_20 = arith.constant 3.200000e+01 : f32
    %26 = vector.broadcast %cst_20 : f32 to vector<16x1xf32>
    %27 = arith.divf %25, %26 : vector<16x1xf32>
    %28 = vector.broadcast %20 : vector<16x1xf32> to vector<16x32xf32>
    %29 = arith.subf %8, %28 : vector<16x32xf32>
    %cst_21 = arith.constant 9.99999974E-6 : f32
    %30 = vector.broadcast %cst_21 : f32 to vector<16x1xf32>
    %31 = arith.addf %27, %30 : vector<16x1xf32>
    %32 = math.rsqrt %31 : vector<16x1xf32>
    %33 = vector.broadcast %32 : vector<16x1xf32> to vector<16x32xf32>
    %34 = arith.mulf %29, %33 : vector<16x32xf32>
    %35 = vector.broadcast %9 : vector<1x32xf32> to vector<16x32xf32>
    %36 = arith.mulf %34, %35 : vector<16x32xf32>
    %37 = vector.broadcast %10 : vector<1x32xf32> to vector<16x32xf32>
    %38 = arith.addf %36, %37 : vector<16x32xf32>
    %39 = arith.truncf %38 : vector<16x32xf32> to vector<16x32xbf16>
    %c0_22 = arith.constant 0 : index
    %c0_23 = arith.constant 0 : index
    %c0_24 = arith.constant 0 : index
    %40 = vector.load %arg5[%c0_22, %c0_23, %c0_24] : memref<2x32x96xbf16, #tpu.memory_space<vmem>>, vector<1x32x96xbf16>
    %41 = vector.shape_cast %40 : vector<1x32x96xbf16> to vector<32x96xbf16>
    %cst_25 = arith.constant dense<0.000000e+00> : vector<16x96xf32>
    %42 = tpu.matmul %39, %41, %cst_25 {dimension_numbers = #tpu.dot_dimension_numbers<[1], [0], [0], [1], [0, 0, 1, 1], [], []>} : vector<16x32xbf16>, vector<32x96xbf16>, vector<16x96xf32> -> vector<16x96xf32>
    %43 = vector.broadcast %13 : vector<1x96xf32> to vector<16x96xf32>
    %44 = arith.addf %42, %43 : vector<16x96xf32>
    %45 = vector.shape_cast %44 : vector<16x96xf32> to vector<2x8x96xf32>
    %cst_26 = arith.constant 0.000000e+00 : f32
    %46 = vector.broadcast %cst_26 : f32 to vector<16x32xf32>
    %47 = vector.extract_strided_slice %45 {offsets = [0, 0, 0], sizes = [2, 8, 8], strides = [1, 1, 1]} : vector<2x8x96xf32> to vector<2x8x8xf32>
    %48 = arith.truncf %47 : vector<2x8x8xf32> to vector<2x8x8xbf16>
    %49 = vector.extract_strided_slice %45 {offsets = [0, 0, 32], sizes = [2, 8, 8], strides = [1, 1, 1]} : vector<2x8x96xf32> to vector<2x8x8xf32>
    %50 = arith.truncf %49 : vector<2x8x8xf32> to vector<2x8x8xbf16>
    %51 = vector.extract_strided_slice %45 {offsets = [0, 0, 64], sizes = [2, 8, 8], strides = [1, 1, 1]} : vector<2x8x96xf32> to vector<2x8x8xf32>
    %52 = arith.truncf %51 : vector<2x8x8xf32> to vector<2x8x8xbf16>
    "tpu.trace_start"() <{level = 10 : i32, message = "nqd,nkd->nqk"}> : () -> ()
    %cst_27 = arith.constant dense<0.000000e+00> : vector<2x8x8xf32>
    %53 = tpu.matmul %48, %50, %cst_27 {dimension_numbers = #tpu.dot_dimension_numbers<[2], [2], [1], [1], [0, 0, 0, 1, 1, 1], [0], [0]>} : vector<2x8x8xbf16>, vector<2x8x8xbf16>, vector<2x8x8xf32> -> vector<2x8x8xf32>
    "tpu.trace_stop"() : () -> ()
    %54 = vector.shape_cast %5 : vector<8x8xf32> to vector<1x8x8xf32>
    %55 = vector.broadcast %54 : vector<1x8x8xf32> to vector<2x8x8xf32>
    %56 = arith.addf %53, %55 : vector<2x8x8xf32>
    %cst_28 = arith.constant dense<0xFF800000> : vector<2x8xf32>
    %57 = vector.multi_reduction <maximumf>, %56, %cst_28 [2] : vector<2x8x8xf32> to vector<2x8xf32>
    %58 = vector.shape_cast %57 : vector<2x8xf32> to vector<2x8x1xf32>
    %59 = vector.broadcast %58 : vector<2x8x1xf32> to vector<2x8x8xf32>
    %60 = arith.subf %56, %59 : vector<2x8x8xf32>
    %61 = math.exp %60 : vector<2x8x8xf32>
    %cst_29 = arith.constant dense<0.000000e+00> : vector<2x8xf32>
    %62 = vector.multi_reduction <add>, %61, %cst_29 [2] : vector<2x8x8xf32> to vector<2x8xf32>
    %63 = vector.shape_cast %62 : vector<2x8xf32> to vector<2x8x1xf32>
    %64 = tpu.reciprocal %63 {approx = true} : vector<2x8x1xf32> -> vector<2x8x1xf32>
    %65 = vector.broadcast %64 : vector<2x8x1xf32> to vector<2x8x8xf32>
    %66 = arith.mulf %61, %65 : vector<2x8x8xf32>
    %67 = arith.truncf %66 : vector<2x8x8xf32> to vector<2x8x8xbf16>
    "tpu.trace_start"() <{level = 10 : i32, message = "nqk,nkd->nqd"}> : () -> ()
    %cst_30 = arith.constant dense<0.000000e+00> : vector<2x8x8xf32>
    %68 = tpu.matmul %67, %52, %cst_30 {dimension_numbers = #tpu.dot_dimension_numbers<[2], [1], [1], [2], [0, 0, 0, 1, 1, 2], [0], [0]>} : vector<2x8x8xbf16>, vector<2x8x8xbf16>, vector<2x8x8xf32> -> vector<2x8x8xf32>
    "tpu.trace_stop"() : () -> ()
    %69 = vector.shape_cast %68 : vector<2x8x8xf32> to vector<16x8xf32>
    %70 = arith.truncf %69 : vector<16x8xf32> to vector<16x8xbf16>
    %c0_31 = arith.constant 0 : index
    %c0_32 = arith.constant 0 : index
    %c0_33 = arith.constant 0 : index
    %71 = vector.load %arg6[%c0_31, %c0_32, %c0_33] : memref<8x8x32xbf16, #tpu.memory_space<vmem>>, vector<1x8x32xbf16>
    %72 = vector.shape_cast %71 : vector<1x8x32xbf16> to vector<8x32xbf16>
    %cst_34 = arith.constant dense<0.000000e+00> : vector<16x32xf32>
    %73 = tpu.matmul %70, %72, %cst_34 {dimension_numbers = #tpu.dot_dimension_numbers<[1], [0], [0], [1], [0, 0, 1, 1], [], []>} : vector<16x8xbf16>, vector<8x32xbf16>, vector<16x32xf32> -> vector<16x32xf32>
    %74 = arith.addf %46, %73 : vector<16x32xf32>
    %75 = vector.extract_strided_slice %45 {offsets = [0, 0, 8], sizes = [2, 8, 8], strides = [1, 1, 1]} : vector<2x8x96xf32> to vector<2x8x8xf32>
    %76 = arith.truncf %75 : vector<2x8x8xf32> to vector<2x8x8xbf16>
    %77 = vector.extract_strided_slice %45 {offsets = [0, 0, 40], sizes = [2, 8, 8], strides = [1, 1, 1]} : vector<2x8x96xf32> to vector<2x8x8xf32>
    %78 = arith.truncf %77 : vector<2x8x8xf32> to vector<2x8x8xbf16>
    %79 = vector.extract_strided_slice %45 {offsets = [0, 0, 72], sizes = [2, 8, 8], strides = [1, 1, 1]} : vector<2x8x96xf32> to vector<2x8x8xf32>
    %80 = arith.truncf %79 : vector<2x8x8xf32> to vector<2x8x8xbf16>
    "tpu.trace_start"() <{level = 10 : i32, message = "nqd,nkd->nqk"}> : () -> ()
    %cst_35 = arith.constant dense<0.000000e+00> : vector<2x8x8xf32>
    %81 = tpu.matmul %76, %78, %cst_35 {dimension_numbers = #tpu.dot_dimension_numbers<[2], [2], [1], [1], [0, 0, 0, 1, 1, 1], [0], [0]>} : vector<2x8x8xbf16>, vector<2x8x8xbf16>, vector<2x8x8xf32> -> vector<2x8x8xf32>
    "tpu.trace_stop"() : () -> ()
    %82 = vector.shape_cast %5 : vector<8x8xf32> to vector<1x8x8xf32>
    %83 = vector.broadcast %82 : vector<1x8x8xf32> to vector<2x8x8xf32>
    %84 = arith.addf %81, %83 : vector<2x8x8xf32>
    %cst_36 = arith.constant dense<0xFF800000> : vector<2x8xf32>
    %85 = vector.multi_reduction <maximumf>, %84, %cst_36 [2] : vector<2x8x8xf32> to vector<2x8xf32>
    %86 = vector.shape_cast %85 : vector<2x8xf32> to vector<2x8x1xf32>
    %87 = vector.broadcast %86 : vector<2x8x1xf32> to vector<2x8x8xf32>
    %88 = arith.subf %84, %87 : vector<2x8x8xf32>
    %89 = math.exp %88 : vector<2x8x8xf32>
    %cst_37 = arith.constant dense<0.000000e+00> : vector<2x8xf32>
    %90 = vector.multi_reduction <add>, %89, %cst_37 [2] : vector<2x8x8xf32> to vector<2x8xf32>
    %91 = vector.shape_cast %90 : vector<2x8xf32> to vector<2x8x1xf32>
    %92 = tpu.reciprocal %91 {approx = true} : vector<2x8x1xf32> -> vector<2x8x1xf32>
    %93 = vector.broadcast %92 : vector<2x8x1xf32> to vector<2x8x8xf32>
    %94 = arith.mulf %89, %93 : vector<2x8x8xf32>
    %95 = arith.truncf %94 : vector<2x8x8xf32> to vector<2x8x8xbf16>
    "tpu.trace_start"() <{level = 10 : i32, message = "nqk,nkd->nqd"}> : () -> ()
    %cst_38 = arith.constant dense<0.000000e+00> : vector<2x8x8xf32>
    %96 = tpu.matmul %95, %80, %cst_38 {dimension_numbers = #tpu.dot_dimension_numbers<[2], [1], [1], [2], [0, 0, 0, 1, 1, 2], [0], [0]>} : vector<2x8x8xbf16>, vector<2x8x8xbf16>, vector<2x8x8xf32> -> vector<2x8x8xf32>
    "tpu.trace_stop"() : () -> ()
    %97 = vector.shape_cast %96 : vector<2x8x8xf32> to vector<16x8xf32>
    %98 = arith.truncf %97 : vector<16x8xf32> to vector<16x8xbf16>
    %c1_39 = arith.constant 1 : index
    %c0_40 = arith.constant 0 : index
    %c0_41 = arith.constant 0 : index
    %99 = vector.load %arg6[%c1_39, %c0_40, %c0_41] : memref<8x8x32xbf16, #tpu.memory_space<vmem>>, vector<1x8x32xbf16>
    %100 = vector.shape_cast %99 : vector<1x8x32xbf16> to vector<8x32xbf16>
    %cst_42 = arith.constant dense<0.000000e+00> : vector<16x32xf32>
    %101 = tpu.matmul %98, %100, %cst_42 {dimension_numbers = #tpu.dot_dimension_numbers<[1], [0], [0], [1], [0, 0, 1, 1], [], []>} : vector<16x8xbf16>, vector<8x32xbf16>, vector<16x32xf32> -> vector<16x32xf32>
    %102 = arith.addf %74, %101 : vector<16x32xf32>
    %103 = vector.extract_strided_slice %45 {offsets = [0, 0, 16], sizes = [2, 8, 8], strides = [1, 1, 1]} : vector<2x8x96xf32> to vector<2x8x8xf32>
    %104 = arith.truncf %103 : vector<2x8x8xf32> to vector<2x8x8xbf16>
    %105 = vector.extract_strided_slice %45 {offsets = [0, 0, 48], sizes = [2, 8, 8], strides = [1, 1, 1]} : vector<2x8x96xf32> to vector<2x8x8xf32>
    %106 = arith.truncf %105 : vector<2x8x8xf32> to vector<2x8x8xbf16>
    %107 = vector.extract_strided_slice %45 {offsets = [0, 0, 80], sizes = [2, 8, 8], strides = [1, 1, 1]} : vector<2x8x96xf32> to vector<2x8x8xf32>
    %108 = arith.truncf %107 : vector<2x8x8xf32> to vector<2x8x8xbf16>
    "tpu.trace_start"() <{level = 10 : i32, message = "nqd,nkd->nqk"}> : () -> ()
    %cst_43 = arith.constant dense<0.000000e+00> : vector<2x8x8xf32>
    %109 = tpu.matmul %104, %106, %cst_43 {dimension_numbers = #tpu.dot_dimension_numbers<[2], [2], [1], [1], [0, 0, 0, 1, 1, 1], [0], [0]>} : vector<2x8x8xbf16>, vector<2x8x8xbf16>, vector<2x8x8xf32> -> vector<2x8x8xf32>
    "tpu.trace_stop"() : () -> ()
    %110 = vector.shape_cast %5 : vector<8x8xf32> to vector<1x8x8xf32>
    %111 = vector.broadcast %110 : vector<1x8x8xf32> to vector<2x8x8xf32>
    %112 = arith.addf %109, %111 : vector<2x8x8xf32>
    %cst_44 = arith.constant dense<0xFF800000> : vector<2x8xf32>
    %113 = vector.multi_reduction <maximumf>, %112, %cst_44 [2] : vector<2x8x8xf32> to vector<2x8xf32>
    %114 = vector.shape_cast %113 : vector<2x8xf32> to vector<2x8x1xf32>
    %115 = vector.broadcast %114 : vector<2x8x1xf32> to vector<2x8x8xf32>
    %116 = arith.subf %112, %115 : vector<2x8x8xf32>
    %117 = math.exp %116 : vector<2x8x8xf32>
    %cst_45 = arith.constant dense<0.000000e+00> : vector<2x8xf32>
    %118 = vector.multi_reduction <add>, %117, %cst_45 [2] : vector<2x8x8xf32> to vector<2x8xf32>
    %119 = vector.shape_cast %118 : vector<2x8xf32> to vector<2x8x1xf32>
    %120 = tpu.reciprocal %119 {approx = true} : vector<2x8x1xf32> -> vector<2x8x1xf32>
    %121 = vector.broadcast %120 : vector<2x8x1xf32> to vector<2x8x8xf32>
    %122 = arith.mulf %117, %121 : vector<2x8x8xf32>
    %123 = arith.truncf %122 : vector<2x8x8xf32> to vector<2x8x8xbf16>
    "tpu.trace_start"() <{level = 10 : i32, message = "nqk,nkd->nqd"}> : () -> ()
    %cst_46 = arith.constant dense<0.000000e+00> : vector<2x8x8xf32>
    %124 = tpu.matmul %123, %108, %cst_46 {dimension_numbers = #tpu.dot_dimension_numbers<[2], [1], [1], [2], [0, 0, 0, 1, 1, 2], [0], [0]>} : vector<2x8x8xbf16>, vector<2x8x8xbf16>, vector<2x8x8xf32> -> vector<2x8x8xf32>
    "tpu.trace_stop"() : () -> ()
    %125 = vector.shape_cast %124 : vector<2x8x8xf32> to vector<16x8xf32>
    %126 = arith.truncf %125 : vector<16x8xf32> to vector<16x8xbf16>
    %c2_47 = arith.constant 2 : index
    %c0_48 = arith.constant 0 : index
    %c0_49 = arith.constant 0 : index
    %127 = vector.load %arg6[%c2_47, %c0_48, %c0_49] : memref<8x8x32xbf16, #tpu.memory_space<vmem>>, vector<1x8x32xbf16>
    %128 = vector.shape_cast %127 : vector<1x8x32xbf16> to vector<8x32xbf16>
    %cst_50 = arith.constant dense<0.000000e+00> : vector<16x32xf32>
    %129 = tpu.matmul %126, %128, %cst_50 {dimension_numbers = #tpu.dot_dimension_numbers<[1], [0], [0], [1], [0, 0, 1, 1], [], []>} : vector<16x8xbf16>, vector<8x32xbf16>, vector<16x32xf32> -> vector<16x32xf32>
    %130 = arith.addf %102, %129 : vector<16x32xf32>
    %131 = vector.extract_strided_slice %45 {offsets = [0, 0, 24], sizes = [2, 8, 8], strides = [1, 1, 1]} : vector<2x8x96xf32> to vector<2x8x8xf32>
    %132 = arith.truncf %131 : vector<2x8x8xf32> to vector<2x8x8xbf16>
    %133 = vector.extract_strided_slice %45 {offsets = [0, 0, 56], sizes = [2, 8, 8], strides = [1, 1, 1]} : vector<2x8x96xf32> to vector<2x8x8xf32>
    %134 = arith.truncf %133 : vector<2x8x8xf32> to vector<2x8x8xbf16>
    %135 = vector.extract_strided_slice %45 {offsets = [0, 0, 88], sizes = [2, 8, 8], strides = [1, 1, 1]} : vector<2x8x96xf32> to vector<2x8x8xf32>
    %136 = arith.truncf %135 : vector<2x8x8xf32> to vector<2x8x8xbf16>
    "tpu.trace_start"() <{level = 10 : i32, message = "nqd,nkd->nqk"}> : () -> ()
    %cst_51 = arith.constant dense<0.000000e+00> : vector<2x8x8xf32>
    %137 = tpu.matmul %132, %134, %cst_51 {dimension_numbers = #tpu.dot_dimension_numbers<[2], [2], [1], [1], [0, 0, 0, 1, 1, 1], [0], [0]>} : vector<2x8x8xbf16>, vector<2x8x8xbf16>, vector<2x8x8xf32> -> vector<2x8x8xf32>
    "tpu.trace_stop"() : () -> ()
    %138 = vector.shape_cast %5 : vector<8x8xf32> to vector<1x8x8xf32>
    %139 = vector.broadcast %138 : vector<1x8x8xf32> to vector<2x8x8xf32>
    %140 = arith.addf %137, %139 : vector<2x8x8xf32>
    %cst_52 = arith.constant dense<0xFF800000> : vector<2x8xf32>
    %141 = vector.multi_reduction <maximumf>, %140, %cst_52 [2] : vector<2x8x8xf32> to vector<2x8xf32>
    %142 = vector.shape_cast %141 : vector<2x8xf32> to vector<2x8x1xf32>
    %143 = vector.broadcast %142 : vector<2x8x1xf32> to vector<2x8x8xf32>
    %144 = arith.subf %140, %143 : vector<2x8x8xf32>
    %145 = math.exp %144 : vector<2x8x8xf32>
    %cst_53 = arith.constant dense<0.000000e+00> : vector<2x8xf32>
    %146 = vector.multi_reduction <add>, %145, %cst_53 [2] : vector<2x8x8xf32> to vector<2x8xf32>
    %147 = vector.shape_cast %146 : vector<2x8xf32> to vector<2x8x1xf32>
    %148 = tpu.reciprocal %147 {approx = true} : vector<2x8x1xf32> -> vector<2x8x1xf32>
    %149 = vector.broadcast %148 : vector<2x8x1xf32> to vector<2x8x8xf32>
    %150 = arith.mulf %145, %149 : vector<2x8x8xf32>
    %151 = arith.truncf %150 : vector<2x8x8xf32> to vector<2x8x8xbf16>
    "tpu.trace_start"() <{level = 10 : i32, message = "nqk,nkd->nqd"}> : () -> ()
    %cst_54 = arith.constant dense<0.000000e+00> : vector<2x8x8xf32>
    %152 = tpu.matmul %151, %136, %cst_54 {dimension_numbers = #tpu.dot_dimension_numbers<[2], [1], [1], [2], [0, 0, 0, 1, 1, 2], [0], [0]>} : vector<2x8x8xbf16>, vector<2x8x8xbf16>, vector<2x8x8xf32> -> vector<2x8x8xf32>
    "tpu.trace_stop"() : () -> ()
    %153 = vector.shape_cast %152 : vector<2x8x8xf32> to vector<16x8xf32>
    %154 = arith.truncf %153 : vector<16x8xf32> to vector<16x8xbf16>
    %c3_55 = arith.constant 3 : index
    %c0_56 = arith.constant 0 : index
    %c0_57 = arith.constant 0 : index
    %155 = vector.load %arg6[%c3_55, %c0_56, %c0_57] : memref<8x8x32xbf16, #tpu.memory_space<vmem>>, vector<1x8x32xbf16>
    %156 = vector.shape_cast %155 : vector<1x8x32xbf16> to vector<8x32xbf16>
    %cst_58 = arith.constant dense<0.000000e+00> : vector<16x32xf32>
    %157 = tpu.matmul %154, %156, %cst_58 {dimension_numbers = #tpu.dot_dimension_numbers<[1], [0], [0], [1], [0, 0, 1, 1], [], []>} : vector<16x8xbf16>, vector<8x32xbf16>, vector<16x32xf32> -> vector<16x32xf32>
    %158 = arith.addf %130, %157 : vector<16x32xf32>
    %159 = arith.addf %8, %158 : vector<16x32xf32>
    %160 = vector.broadcast %14 : vector<1x32xf32> to vector<16x32xf32>
    %161 = arith.addf %159, %160 : vector<16x32xf32>
    %cst_59 = arith.constant dense<0.000000e+00> : vector<16xf32>
    %162 = vector.multi_reduction <add>, %161, %cst_59 [1] : vector<16x32xf32> to vector<16xf32>
    %163 = vector.shape_cast %162 : vector<16xf32> to vector<16x1xf32>
    %cst_60 = arith.constant 3.200000e+01 : f32
    %164 = vector.broadcast %cst_60 : f32 to vector<16x1xf32>
    %165 = arith.divf %163, %164 : vector<16x1xf32>
    %166 = vector.broadcast %165 : vector<16x1xf32> to vector<16x32xf32>
    %167 = arith.subf %161, %166 : vector<16x32xf32>
    %168 = arith.mulf %167, %167 : vector<16x32xf32>
    %cst_61 = arith.constant dense<0.000000e+00> : vector<16xf32>
    %169 = vector.multi_reduction <add>, %168, %cst_61 [1] : vector<16x32xf32> to vector<16xf32>
    %170 = vector.shape_cast %169 : vector<16xf32> to vector<16x1xf32>
    %cst_62 = arith.constant 3.200000e+01 : f32
    %171 = vector.broadcast %cst_62 : f32 to vector<16x1xf32>
    %172 = arith.divf %170, %171 : vector<16x1xf32>
    %173 = vector.broadcast %165 : vector<16x1xf32> to vector<16x32xf32>
    %174 = arith.subf %161, %173 : vector<16x32xf32>
    %cst_63 = arith.constant 9.99999974E-6 : f32
    %175 = vector.broadcast %cst_63 : f32 to vector<16x1xf32>
    %176 = arith.addf %172, %175 : vector<16x1xf32>
    %177 = math.rsqrt %176 : vector<16x1xf32>
    %178 = vector.broadcast %177 : vector<16x1xf32> to vector<16x32xf32>
    %179 = arith.mulf %174, %178 : vector<16x32xf32>
    %180 = vector.broadcast %11 : vector<1x32xf32> to vector<16x32xf32>
    %181 = arith.mulf %179, %180 : vector<16x32xf32>
    %182 = vector.broadcast %12 : vector<1x32xf32> to vector<16x32xf32>
    %183 = arith.addf %181, %182 : vector<16x32xf32>
    %184 = arith.truncf %183 : vector<16x32xf32> to vector<16x32xbf16>
    %c0_64 = arith.constant 0 : index
    %c0_65 = arith.constant 0 : index
    %c0_66 = arith.constant 0 : index
    %185 = vector.load %arg7[%c0_64, %c0_65, %c0_66] : memref<2x32x128xbf16, #tpu.memory_space<vmem>>, vector<1x32x128xbf16>
    %186 = vector.shape_cast %185 : vector<1x32x128xbf16> to vector<32x128xbf16>
    %cst_67 = arith.constant dense<0.000000e+00> : vector<16x128xf32>
    %187 = tpu.matmul %184, %186, %cst_67 {dimension_numbers = #tpu.dot_dimension_numbers<[1], [0], [0], [1], [0, 0, 1, 1], [], []>} : vector<16x32xbf16>, vector<32x128xbf16>, vector<16x128xf32> -> vector<16x128xf32>
    %188 = vector.broadcast %15 : vector<1x128xf32> to vector<16x128xf32>
    %189 = arith.addf %187, %188 : vector<16x128xf32>
    %cst_68 = arith.constant 1.702000e+00 : f32
    %190 = vector.broadcast %cst_68 : f32 to vector<16x128xf32>
    %191 = arith.mulf %190, %189 : vector<16x128xf32>
    %192 = arith.negf %191 : vector<16x128xf32>
    %193 = math.exp %192 : vector<16x128xf32>
    %cst_69 = arith.constant 1.000000e+00 : f32
    %194 = vector.broadcast %cst_69 : f32 to vector<16x128xf32>
    %195 = arith.addf %194, %193 : vector<16x128xf32>
    %196 = arith.divf %194, %195 : vector<16x128xf32>
    %197 = arith.mulf %189, %196 : vector<16x128xf32>
    %198 = arith.truncf %197 : vector<16x128xf32> to vector<16x128xbf16>
    %c0_70 = arith.constant 0 : index
    %c0_71 = arith.constant 0 : index
    %c0_72 = arith.constant 0 : index
    %199 = vector.load %arg8[%c0_70, %c0_71, %c0_72] : memref<2x128x32xbf16, #tpu.memory_space<vmem>>, vector<1x128x32xbf16>
    %200 = vector.shape_cast %199 : vector<1x128x32xbf16> to vector<128x32xbf16>
    %cst_73 = arith.constant dense<0.000000e+00> : vector<16x32xf32>
    %201 = tpu.matmul %198, %200, %cst_73 {dimension_numbers = #tpu.dot_dimension_numbers<[1], [0], [0], [1], [0, 0, 1, 1], [], []>} : vector<16x128xbf16>, vector<128x32xbf16>, vector<16x32xf32> -> vector<16x32xf32>
    %202 = arith.addf %161, %201 : vector<16x32xf32>
    %203 = vector.broadcast %16 : vector<1x32xf32> to vector<16x32xf32>
    %204 = arith.addf %202, %203 : vector<16x32xf32>
    %c4 = arith.constant 4 : index
    %c0_74 = arith.constant 0 : index
    %205 = vector.load %arg3[%c4, %c0_74] : memref<10x32xf32, #tpu.memory_space<vmem>>, vector<1x32xf32>
    %c5 = arith.constant 5 : index
    %c0_75 = arith.constant 0 : index
    %206 = vector.load %arg3[%c5, %c0_75] : memref<10x32xf32, #tpu.memory_space<vmem>>, vector<1x32xf32>
    %c6 = arith.constant 6 : index
    %c0_76 = arith.constant 0 : index
    %207 = vector.load %arg3[%c6, %c0_76] : memref<10x32xf32, #tpu.memory_space<vmem>>, vector<1x32xf32>
    %c7 = arith.constant 7 : index
    %c0_77 = arith.constant 0 : index
    %208 = vector.load %arg3[%c7, %c0_77] : memref<10x32xf32, #tpu.memory_space<vmem>>, vector<1x32xf32>
    %c4_78 = arith.constant 4 : index
    %c0_79 = arith.constant 0 : index
    %209 = vector.load %arg4[%c4_78, %c0_79] : memref<8x128xf32, #tpu.memory_space<vmem>>, vector<1x96xf32>
    %c5_80 = arith.constant 5 : index
    %c0_81 = arith.constant 0 : index
    %210 = vector.load %arg4[%c5_80, %c0_81] : memref<8x128xf32, #tpu.memory_space<vmem>>, vector<1x32xf32>
    %c6_82 = arith.constant 6 : index
    %c0_83 = arith.constant 0 : index
    %211 = vector.load %arg4[%c6_82, %c0_83] : memref<8x128xf32, #tpu.memory_space<vmem>>, vector<1x128xf32>
    %c7_84 = arith.constant 7 : index
    %c0_85 = arith.constant 0 : index
    %212 = vector.load %arg4[%c7_84, %c0_85] : memref<8x128xf32, #tpu.memory_space<vmem>>, vector<1x32xf32>
    %cst_86 = arith.constant dense<0.000000e+00> : vector<16xf32>
    %213 = vector.multi_reduction <add>, %204, %cst_86 [1] : vector<16x32xf32> to vector<16xf32>
    %214 = vector.shape_cast %213 : vector<16xf32> to vector<16x1xf32>
    %cst_87 = arith.constant 3.200000e+01 : f32
    %215 = vector.broadcast %cst_87 : f32 to vector<16x1xf32>
    %216 = arith.divf %214, %215 : vector<16x1xf32>
    %217 = vector.broadcast %216 : vector<16x1xf32> to vector<16x32xf32>
    %218 = arith.subf %204, %217 : vector<16x32xf32>
    %219 = arith.mulf %218, %218 : vector<16x32xf32>
    %cst_88 = arith.constant dense<0.000000e+00> : vector<16xf32>
    %220 = vector.multi_reduction <add>, %219, %cst_88 [1] : vector<16x32xf32> to vector<16xf32>
    %221 = vector.shape_cast %220 : vector<16xf32> to vector<16x1xf32>
    %cst_89 = arith.constant 3.200000e+01 : f32
    %222 = vector.broadcast %cst_89 : f32 to vector<16x1xf32>
    %223 = arith.divf %221, %222 : vector<16x1xf32>
    %224 = vector.broadcast %216 : vector<16x1xf32> to vector<16x32xf32>
    %225 = arith.subf %204, %224 : vector<16x32xf32>
    %cst_90 = arith.constant 9.99999974E-6 : f32
    %226 = vector.broadcast %cst_90 : f32 to vector<16x1xf32>
    %227 = arith.addf %223, %226 : vector<16x1xf32>
    %228 = math.rsqrt %227 : vector<16x1xf32>
    %229 = vector.broadcast %228 : vector<16x1xf32> to vector<16x32xf32>
    %230 = arith.mulf %225, %229 : vector<16x32xf32>
    %231 = vector.broadcast %205 : vector<1x32xf32> to vector<16x32xf32>
    %232 = arith.mulf %230, %231 : vector<16x32xf32>
    %233 = vector.broadcast %206 : vector<1x32xf32> to vector<16x32xf32>
    %234 = arith.addf %232, %233 : vector<16x32xf32>
    %235 = arith.truncf %234 : vector<16x32xf32> to vector<16x32xbf16>
    %c1_91 = arith.constant 1 : index
    %c0_92 = arith.constant 0 : index
    %c0_93 = arith.constant 0 : index
    %236 = vector.load %arg5[%c1_91, %c0_92, %c0_93] : memref<2x32x96xbf16, #tpu.memory_space<vmem>>, vector<1x32x96xbf16>
    %237 = vector.shape_cast %236 : vector<1x32x96xbf16> to vector<32x96xbf16>
    %cst_94 = arith.constant dense<0.000000e+00> : vector<16x96xf32>
    %238 = tpu.matmul %235, %237, %cst_94 {dimension_numbers = #tpu.dot_dimension_numbers<[1], [0], [0], [1], [0, 0, 1, 1], [], []>} : vector<16x32xbf16>, vector<32x96xbf16>, vector<16x96xf32> -> vector<16x96xf32>
    %239 = vector.broadcast %209 : vector<1x96xf32> to vector<16x96xf32>
    %240 = arith.addf %238, %239 : vector<16x96xf32>
    %241 = vector.shape_cast %240 : vector<16x96xf32> to vector<2x8x96xf32>
    %cst_95 = arith.constant 0.000000e+00 : f32
    %242 = vector.broadcast %cst_95 : f32 to vector<16x32xf32>
    %243 = vector.extract_strided_slice %241 {offsets = [0, 0, 0], sizes = [2, 8, 8], strides = [1, 1, 1]} : vector<2x8x96xf32> to vector<2x8x8xf32>
    %244 = arith.truncf %243 : vector<2x8x8xf32> to vector<2x8x8xbf16>
    %245 = vector.extract_strided_slice %241 {offsets = [0, 0, 32], sizes = [2, 8, 8], strides = [1, 1, 1]} : vector<2x8x96xf32> to vector<2x8x8xf32>
    %246 = arith.truncf %245 : vector<2x8x8xf32> to vector<2x8x8xbf16>
    %247 = vector.extract_strided_slice %241 {offsets = [0, 0, 64], sizes = [2, 8, 8], strides = [1, 1, 1]} : vector<2x8x96xf32> to vector<2x8x8xf32>
    %248 = arith.truncf %247 : vector<2x8x8xf32> to vector<2x8x8xbf16>
    "tpu.trace_start"() <{level = 10 : i32, message = "nqd,nkd->nqk"}> : () -> ()
    %cst_96 = arith.constant dense<0.000000e+00> : vector<2x8x8xf32>
    %249 = tpu.matmul %244, %246, %cst_96 {dimension_numbers = #tpu.dot_dimension_numbers<[2], [2], [1], [1], [0, 0, 0, 1, 1, 1], [0], [0]>} : vector<2x8x8xbf16>, vector<2x8x8xbf16>, vector<2x8x8xf32> -> vector<2x8x8xf32>
    "tpu.trace_stop"() : () -> ()
    %250 = vector.shape_cast %5 : vector<8x8xf32> to vector<1x8x8xf32>
    %251 = vector.broadcast %250 : vector<1x8x8xf32> to vector<2x8x8xf32>
    %252 = arith.addf %249, %251 : vector<2x8x8xf32>
    %cst_97 = arith.constant dense<0xFF800000> : vector<2x8xf32>
    %253 = vector.multi_reduction <maximumf>, %252, %cst_97 [2] : vector<2x8x8xf32> to vector<2x8xf32>
    %254 = vector.shape_cast %253 : vector<2x8xf32> to vector<2x8x1xf32>
    %255 = vector.broadcast %254 : vector<2x8x1xf32> to vector<2x8x8xf32>
    %256 = arith.subf %252, %255 : vector<2x8x8xf32>
    %257 = math.exp %256 : vector<2x8x8xf32>
    %cst_98 = arith.constant dense<0.000000e+00> : vector<2x8xf32>
    %258 = vector.multi_reduction <add>, %257, %cst_98 [2] : vector<2x8x8xf32> to vector<2x8xf32>
    %259 = vector.shape_cast %258 : vector<2x8xf32> to vector<2x8x1xf32>
    %260 = tpu.reciprocal %259 {approx = true} : vector<2x8x1xf32> -> vector<2x8x1xf32>
    %261 = vector.broadcast %260 : vector<2x8x1xf32> to vector<2x8x8xf32>
    %262 = arith.mulf %257, %261 : vector<2x8x8xf32>
    %263 = arith.truncf %262 : vector<2x8x8xf32> to vector<2x8x8xbf16>
    "tpu.trace_start"() <{level = 10 : i32, message = "nqk,nkd->nqd"}> : () -> ()
    %cst_99 = arith.constant dense<0.000000e+00> : vector<2x8x8xf32>
    %264 = tpu.matmul %263, %248, %cst_99 {dimension_numbers = #tpu.dot_dimension_numbers<[2], [1], [1], [2], [0, 0, 0, 1, 1, 2], [0], [0]>} : vector<2x8x8xbf16>, vector<2x8x8xbf16>, vector<2x8x8xf32> -> vector<2x8x8xf32>
    "tpu.trace_stop"() : () -> ()
    %265 = vector.shape_cast %264 : vector<2x8x8xf32> to vector<16x8xf32>
    %266 = arith.truncf %265 : vector<16x8xf32> to vector<16x8xbf16>
    %c4_100 = arith.constant 4 : index
    %c0_101 = arith.constant 0 : index
    %c0_102 = arith.constant 0 : index
    %267 = vector.load %arg6[%c4_100, %c0_101, %c0_102] : memref<8x8x32xbf16, #tpu.memory_space<vmem>>, vector<1x8x32xbf16>
    %268 = vector.shape_cast %267 : vector<1x8x32xbf16> to vector<8x32xbf16>
    %cst_103 = arith.constant dense<0.000000e+00> : vector<16x32xf32>
    %269 = tpu.matmul %266, %268, %cst_103 {dimension_numbers = #tpu.dot_dimension_numbers<[1], [0], [0], [1], [0, 0, 1, 1], [], []>} : vector<16x8xbf16>, vector<8x32xbf16>, vector<16x32xf32> -> vector<16x32xf32>
    %270 = arith.addf %242, %269 : vector<16x32xf32>
    %271 = vector.extract_strided_slice %241 {offsets = [0, 0, 8], sizes = [2, 8, 8], strides = [1, 1, 1]} : vector<2x8x96xf32> to vector<2x8x8xf32>
    %272 = arith.truncf %271 : vector<2x8x8xf32> to vector<2x8x8xbf16>
    %273 = vector.extract_strided_slice %241 {offsets = [0, 0, 40], sizes = [2, 8, 8], strides = [1, 1, 1]} : vector<2x8x96xf32> to vector<2x8x8xf32>
    %274 = arith.truncf %273 : vector<2x8x8xf32> to vector<2x8x8xbf16>
    %275 = vector.extract_strided_slice %241 {offsets = [0, 0, 72], sizes = [2, 8, 8], strides = [1, 1, 1]} : vector<2x8x96xf32> to vector<2x8x8xf32>
    %276 = arith.truncf %275 : vector<2x8x8xf32> to vector<2x8x8xbf16>
    "tpu.trace_start"() <{level = 10 : i32, message = "nqd,nkd->nqk"}> : () -> ()
    %cst_104 = arith.constant dense<0.000000e+00> : vector<2x8x8xf32>
    %277 = tpu.matmul %272, %274, %cst_104 {dimension_numbers = #tpu.dot_dimension_numbers<[2], [2], [1], [1], [0, 0, 0, 1, 1, 1], [0], [0]>} : vector<2x8x8xbf16>, vector<2x8x8xbf16>, vector<2x8x8xf32> -> vector<2x8x8xf32>
    "tpu.trace_stop"() : () -> ()
    %278 = vector.shape_cast %5 : vector<8x8xf32> to vector<1x8x8xf32>
    %279 = vector.broadcast %278 : vector<1x8x8xf32> to vector<2x8x8xf32>
    %280 = arith.addf %277, %279 : vector<2x8x8xf32>
    %cst_105 = arith.constant dense<0xFF800000> : vector<2x8xf32>
    %281 = vector.multi_reduction <maximumf>, %280, %cst_105 [2] : vector<2x8x8xf32> to vector<2x8xf32>
    %282 = vector.shape_cast %281 : vector<2x8xf32> to vector<2x8x1xf32>
    %283 = vector.broadcast %282 : vector<2x8x1xf32> to vector<2x8x8xf32>
    %284 = arith.subf %280, %283 : vector<2x8x8xf32>
    %285 = math.exp %284 : vector<2x8x8xf32>
    %cst_106 = arith.constant dense<0.000000e+00> : vector<2x8xf32>
    %286 = vector.multi_reduction <add>, %285, %cst_106 [2] : vector<2x8x8xf32> to vector<2x8xf32>
    %287 = vector.shape_cast %286 : vector<2x8xf32> to vector<2x8x1xf32>
    %288 = tpu.reciprocal %287 {approx = true} : vector<2x8x1xf32> -> vector<2x8x1xf32>
    %289 = vector.broadcast %288 : vector<2x8x1xf32> to vector<2x8x8xf32>
    %290 = arith.mulf %285, %289 : vector<2x8x8xf32>
    %291 = arith.truncf %290 : vector<2x8x8xf32> to vector<2x8x8xbf16>
    "tpu.trace_start"() <{level = 10 : i32, message = "nqk,nkd->nqd"}> : () -> ()
    %cst_107 = arith.constant dense<0.000000e+00> : vector<2x8x8xf32>
    %292 = tpu.matmul %291, %276, %cst_107 {dimension_numbers = #tpu.dot_dimension_numbers<[2], [1], [1], [2], [0, 0, 0, 1, 1, 2], [0], [0]>} : vector<2x8x8xbf16>, vector<2x8x8xbf16>, vector<2x8x8xf32> -> vector<2x8x8xf32>
    "tpu.trace_stop"() : () -> ()
    %293 = vector.shape_cast %292 : vector<2x8x8xf32> to vector<16x8xf32>
    %294 = arith.truncf %293 : vector<16x8xf32> to vector<16x8xbf16>
    %c5_108 = arith.constant 5 : index
    %c0_109 = arith.constant 0 : index
    %c0_110 = arith.constant 0 : index
    %295 = vector.load %arg6[%c5_108, %c0_109, %c0_110] : memref<8x8x32xbf16, #tpu.memory_space<vmem>>, vector<1x8x32xbf16>
    %296 = vector.shape_cast %295 : vector<1x8x32xbf16> to vector<8x32xbf16>
    %cst_111 = arith.constant dense<0.000000e+00> : vector<16x32xf32>
    %297 = tpu.matmul %294, %296, %cst_111 {dimension_numbers = #tpu.dot_dimension_numbers<[1], [0], [0], [1], [0, 0, 1, 1], [], []>} : vector<16x8xbf16>, vector<8x32xbf16>, vector<16x32xf32> -> vector<16x32xf32>
    %298 = arith.addf %270, %297 : vector<16x32xf32>
    %299 = vector.extract_strided_slice %241 {offsets = [0, 0, 16], sizes = [2, 8, 8], strides = [1, 1, 1]} : vector<2x8x96xf32> to vector<2x8x8xf32>
    %300 = arith.truncf %299 : vector<2x8x8xf32> to vector<2x8x8xbf16>
    %301 = vector.extract_strided_slice %241 {offsets = [0, 0, 48], sizes = [2, 8, 8], strides = [1, 1, 1]} : vector<2x8x96xf32> to vector<2x8x8xf32>
    %302 = arith.truncf %301 : vector<2x8x8xf32> to vector<2x8x8xbf16>
    %303 = vector.extract_strided_slice %241 {offsets = [0, 0, 80], sizes = [2, 8, 8], strides = [1, 1, 1]} : vector<2x8x96xf32> to vector<2x8x8xf32>
    %304 = arith.truncf %303 : vector<2x8x8xf32> to vector<2x8x8xbf16>
    "tpu.trace_start"() <{level = 10 : i32, message = "nqd,nkd->nqk"}> : () -> ()
    %cst_112 = arith.constant dense<0.000000e+00> : vector<2x8x8xf32>
    %305 = tpu.matmul %300, %302, %cst_112 {dimension_numbers = #tpu.dot_dimension_numbers<[2], [2], [1], [1], [0, 0, 0, 1, 1, 1], [0], [0]>} : vector<2x8x8xbf16>, vector<2x8x8xbf16>, vector<2x8x8xf32> -> vector<2x8x8xf32>
    "tpu.trace_stop"() : () -> ()
    %306 = vector.shape_cast %5 : vector<8x8xf32> to vector<1x8x8xf32>
    %307 = vector.broadcast %306 : vector<1x8x8xf32> to vector<2x8x8xf32>
    %308 = arith.addf %305, %307 : vector<2x8x8xf32>
    %cst_113 = arith.constant dense<0xFF800000> : vector<2x8xf32>
    %309 = vector.multi_reduction <maximumf>, %308, %cst_113 [2] : vector<2x8x8xf32> to vector<2x8xf32>
    %310 = vector.shape_cast %309 : vector<2x8xf32> to vector<2x8x1xf32>
    %311 = vector.broadcast %310 : vector<2x8x1xf32> to vector<2x8x8xf32>
    %312 = arith.subf %308, %311 : vector<2x8x8xf32>
    %313 = math.exp %312 : vector<2x8x8xf32>
    %cst_114 = arith.constant dense<0.000000e+00> : vector<2x8xf32>
    %314 = vector.multi_reduction <add>, %313, %cst_114 [2] : vector<2x8x8xf32> to vector<2x8xf32>
    %315 = vector.shape_cast %314 : vector<2x8xf32> to vector<2x8x1xf32>
    %316 = tpu.reciprocal %315 {approx = true} : vector<2x8x1xf32> -> vector<2x8x1xf32>
    %317 = vector.broadcast %316 : vector<2x8x1xf32> to vector<2x8x8xf32>
    %318 = arith.mulf %313, %317 : vector<2x8x8xf32>
    %319 = arith.truncf %318 : vector<2x8x8xf32> to vector<2x8x8xbf16>
    "tpu.trace_start"() <{level = 10 : i32, message = "nqk,nkd->nqd"}> : () -> ()
    %cst_115 = arith.constant dense<0.000000e+00> : vector<2x8x8xf32>
    %320 = tpu.matmul %319, %304, %cst_115 {dimension_numbers = #tpu.dot_dimension_numbers<[2], [1], [1], [2], [0, 0, 0, 1, 1, 2], [0], [0]>} : vector<2x8x8xbf16>, vector<2x8x8xbf16>, vector<2x8x8xf32> -> vector<2x8x8xf32>
    "tpu.trace_stop"() : () -> ()
    %321 = vector.shape_cast %320 : vector<2x8x8xf32> to vector<16x8xf32>
    %322 = arith.truncf %321 : vector<16x8xf32> to vector<16x8xbf16>
    %c6_116 = arith.constant 6 : index
    %c0_117 = arith.constant 0 : index
    %c0_118 = arith.constant 0 : index
    %323 = vector.load %arg6[%c6_116, %c0_117, %c0_118] : memref<8x8x32xbf16, #tpu.memory_space<vmem>>, vector<1x8x32xbf16>
    %324 = vector.shape_cast %323 : vector<1x8x32xbf16> to vector<8x32xbf16>
    %cst_119 = arith.constant dense<0.000000e+00> : vector<16x32xf32>
    %325 = tpu.matmul %322, %324, %cst_119 {dimension_numbers = #tpu.dot_dimension_numbers<[1], [0], [0], [1], [0, 0, 1, 1], [], []>} : vector<16x8xbf16>, vector<8x32xbf16>, vector<16x32xf32> -> vector<16x32xf32>
    %326 = arith.addf %298, %325 : vector<16x32xf32>
    %327 = vector.extract_strided_slice %241 {offsets = [0, 0, 24], sizes = [2, 8, 8], strides = [1, 1, 1]} : vector<2x8x96xf32> to vector<2x8x8xf32>
    %328 = arith.truncf %327 : vector<2x8x8xf32> to vector<2x8x8xbf16>
    %329 = vector.extract_strided_slice %241 {offsets = [0, 0, 56], sizes = [2, 8, 8], strides = [1, 1, 1]} : vector<2x8x96xf32> to vector<2x8x8xf32>
    %330 = arith.truncf %329 : vector<2x8x8xf32> to vector<2x8x8xbf16>
    %331 = vector.extract_strided_slice %241 {offsets = [0, 0, 88], sizes = [2, 8, 8], strides = [1, 1, 1]} : vector<2x8x96xf32> to vector<2x8x8xf32>
    %332 = arith.truncf %331 : vector<2x8x8xf32> to vector<2x8x8xbf16>
    "tpu.trace_start"() <{level = 10 : i32, message = "nqd,nkd->nqk"}> : () -> ()
    %cst_120 = arith.constant dense<0.000000e+00> : vector<2x8x8xf32>
    %333 = tpu.matmul %328, %330, %cst_120 {dimension_numbers = #tpu.dot_dimension_numbers<[2], [2], [1], [1], [0, 0, 0, 1, 1, 1], [0], [0]>} : vector<2x8x8xbf16>, vector<2x8x8xbf16>, vector<2x8x8xf32> -> vector<2x8x8xf32>
    "tpu.trace_stop"() : () -> ()
    %334 = vector.shape_cast %5 : vector<8x8xf32> to vector<1x8x8xf32>
    %335 = vector.broadcast %334 : vector<1x8x8xf32> to vector<2x8x8xf32>
    %336 = arith.addf %333, %335 : vector<2x8x8xf32>
    %cst_121 = arith.constant dense<0xFF800000> : vector<2x8xf32>
    %337 = vector.multi_reduction <maximumf>, %336, %cst_121 [2] : vector<2x8x8xf32> to vector<2x8xf32>
    %338 = vector.shape_cast %337 : vector<2x8xf32> to vector<2x8x1xf32>
    %339 = vector.broadcast %338 : vector<2x8x1xf32> to vector<2x8x8xf32>
    %340 = arith.subf %336, %339 : vector<2x8x8xf32>
    %341 = math.exp %340 : vector<2x8x8xf32>
    %cst_122 = arith.constant dense<0.000000e+00> : vector<2x8xf32>
    %342 = vector.multi_reduction <add>, %341, %cst_122 [2] : vector<2x8x8xf32> to vector<2x8xf32>
    %343 = vector.shape_cast %342 : vector<2x8xf32> to vector<2x8x1xf32>
    %344 = tpu.reciprocal %343 {approx = true} : vector<2x8x1xf32> -> vector<2x8x1xf32>
    %345 = vector.broadcast %344 : vector<2x8x1xf32> to vector<2x8x8xf32>
    %346 = arith.mulf %341, %345 : vector<2x8x8xf32>
    %347 = arith.truncf %346 : vector<2x8x8xf32> to vector<2x8x8xbf16>
    "tpu.trace_start"() <{level = 10 : i32, message = "nqk,nkd->nqd"}> : () -> ()
    %cst_123 = arith.constant dense<0.000000e+00> : vector<2x8x8xf32>
    %348 = tpu.matmul %347, %332, %cst_123 {dimension_numbers = #tpu.dot_dimension_numbers<[2], [1], [1], [2], [0, 0, 0, 1, 1, 2], [0], [0]>} : vector<2x8x8xbf16>, vector<2x8x8xbf16>, vector<2x8x8xf32> -> vector<2x8x8xf32>
    "tpu.trace_stop"() : () -> ()
    %349 = vector.shape_cast %348 : vector<2x8x8xf32> to vector<16x8xf32>
    %350 = arith.truncf %349 : vector<16x8xf32> to vector<16x8xbf16>
    %c7_124 = arith.constant 7 : index
    %c0_125 = arith.constant 0 : index
    %c0_126 = arith.constant 0 : index
    %351 = vector.load %arg6[%c7_124, %c0_125, %c0_126] : memref<8x8x32xbf16, #tpu.memory_space<vmem>>, vector<1x8x32xbf16>
    %352 = vector.shape_cast %351 : vector<1x8x32xbf16> to vector<8x32xbf16>
    %cst_127 = arith.constant dense<0.000000e+00> : vector<16x32xf32>
    %353 = tpu.matmul %350, %352, %cst_127 {dimension_numbers = #tpu.dot_dimension_numbers<[1], [0], [0], [1], [0, 0, 1, 1], [], []>} : vector<16x8xbf16>, vector<8x32xbf16>, vector<16x32xf32> -> vector<16x32xf32>
    %354 = arith.addf %326, %353 : vector<16x32xf32>
    %355 = arith.addf %204, %354 : vector<16x32xf32>
    %356 = vector.broadcast %210 : vector<1x32xf32> to vector<16x32xf32>
    %357 = arith.addf %355, %356 : vector<16x32xf32>
    %cst_128 = arith.constant dense<0.000000e+00> : vector<16xf32>
    %358 = vector.multi_reduction <add>, %357, %cst_128 [1] : vector<16x32xf32> to vector<16xf32>
    %359 = vector.shape_cast %358 : vector<16xf32> to vector<16x1xf32>
    %cst_129 = arith.constant 3.200000e+01 : f32
    %360 = vector.broadcast %cst_129 : f32 to vector<16x1xf32>
    %361 = arith.divf %359, %360 : vector<16x1xf32>
    %362 = vector.broadcast %361 : vector<16x1xf32> to vector<16x32xf32>
    %363 = arith.subf %357, %362 : vector<16x32xf32>
    %364 = arith.mulf %363, %363 : vector<16x32xf32>
    %cst_130 = arith.constant dense<0.000000e+00> : vector<16xf32>
    %365 = vector.multi_reduction <add>, %364, %cst_130 [1] : vector<16x32xf32> to vector<16xf32>
    %366 = vector.shape_cast %365 : vector<16xf32> to vector<16x1xf32>
    %cst_131 = arith.constant 3.200000e+01 : f32
    %367 = vector.broadcast %cst_131 : f32 to vector<16x1xf32>
    %368 = arith.divf %366, %367 : vector<16x1xf32>
    %369 = vector.broadcast %361 : vector<16x1xf32> to vector<16x32xf32>
    %370 = arith.subf %357, %369 : vector<16x32xf32>
    %cst_132 = arith.constant 9.99999974E-6 : f32
    %371 = vector.broadcast %cst_132 : f32 to vector<16x1xf32>
    %372 = arith.addf %368, %371 : vector<16x1xf32>
    %373 = math.rsqrt %372 : vector<16x1xf32>
    %374 = vector.broadcast %373 : vector<16x1xf32> to vector<16x32xf32>
    %375 = arith.mulf %370, %374 : vector<16x32xf32>
    %376 = vector.broadcast %207 : vector<1x32xf32> to vector<16x32xf32>
    %377 = arith.mulf %375, %376 : vector<16x32xf32>
    %378 = vector.broadcast %208 : vector<1x32xf32> to vector<16x32xf32>
    %379 = arith.addf %377, %378 : vector<16x32xf32>
    %380 = arith.truncf %379 : vector<16x32xf32> to vector<16x32xbf16>
    %c1_133 = arith.constant 1 : index
    %c0_134 = arith.constant 0 : index
    %c0_135 = arith.constant 0 : index
    %381 = vector.load %arg7[%c1_133, %c0_134, %c0_135] : memref<2x32x128xbf16, #tpu.memory_space<vmem>>, vector<1x32x128xbf16>
    %382 = vector.shape_cast %381 : vector<1x32x128xbf16> to vector<32x128xbf16>
    %cst_136 = arith.constant dense<0.000000e+00> : vector<16x128xf32>
    %383 = tpu.matmul %380, %382, %cst_136 {dimension_numbers = #tpu.dot_dimension_numbers<[1], [0], [0], [1], [0, 0, 1, 1], [], []>} : vector<16x32xbf16>, vector<32x128xbf16>, vector<16x128xf32> -> vector<16x128xf32>
    %384 = vector.broadcast %211 : vector<1x128xf32> to vector<16x128xf32>
    %385 = arith.addf %383, %384 : vector<16x128xf32>
    %cst_137 = arith.constant 1.702000e+00 : f32
    %386 = vector.broadcast %cst_137 : f32 to vector<16x128xf32>
    %387 = arith.mulf %386, %385 : vector<16x128xf32>
    %388 = arith.negf %387 : vector<16x128xf32>
    %389 = math.exp %388 : vector<16x128xf32>
    %cst_138 = arith.constant 1.000000e+00 : f32
    %390 = vector.broadcast %cst_138 : f32 to vector<16x128xf32>
    %391 = arith.addf %390, %389 : vector<16x128xf32>
    %392 = arith.divf %390, %391 : vector<16x128xf32>
    %393 = arith.mulf %385, %392 : vector<16x128xf32>
    %394 = arith.truncf %393 : vector<16x128xf32> to vector<16x128xbf16>
    %c1_139 = arith.constant 1 : index
    %c0_140 = arith.constant 0 : index
    %c0_141 = arith.constant 0 : index
    %395 = vector.load %arg8[%c1_139, %c0_140, %c0_141] : memref<2x128x32xbf16, #tpu.memory_space<vmem>>, vector<1x128x32xbf16>
    %396 = vector.shape_cast %395 : vector<1x128x32xbf16> to vector<128x32xbf16>
    %cst_142 = arith.constant dense<0.000000e+00> : vector<16x32xf32>
    %397 = tpu.matmul %394, %396, %cst_142 {dimension_numbers = #tpu.dot_dimension_numbers<[1], [0], [0], [1], [0, 0, 1, 1], [], []>} : vector<16x128xbf16>, vector<128x32xbf16>, vector<16x32xf32> -> vector<16x32xf32>
    %398 = arith.addf %357, %397 : vector<16x32xf32>
    %399 = vector.broadcast %212 : vector<1x32xf32> to vector<16x32xf32>
    %400 = arith.addf %398, %399 : vector<16x32xf32>
    %401 = tpu.iota {dimensions = array<i32: 1>} : vector<2x16xi32>
    %c0_143 = arith.constant 0 : index
    %c0_144 = arith.constant 0 : index
    %402 = vector.load %arg1[%c0_143, %c0_144] : memref<2x1xi32, #tpu.memory_space<vmem>>, vector<2x1xi32>
    %403 = vector.broadcast %402 : vector<2x1xi32> to vector<2x16xi32>
    %404 = arith.cmpi eq, %401, %403 : vector<2x16xi32>
    %405 = arith.extui %404 : vector<2x16xi1> to vector<2x16xi32>
    %406 = arith.sitofp %405 : vector<2x16xi32> to vector<2x16xf32>
    %cst_145 = arith.constant dense<0.000000e+00> : vector<2x32xf32>
    %407 = tpu.matmul %406, %400, %cst_145 {dimension_numbers = #tpu.dot_dimension_numbers<[1], [0], [0], [1], [0, 0, 1, 1], [], []>} : vector<2x16xf32>, vector<16x32xf32>, vector<2x32xf32> -> vector<2x32xf32>
    %c8 = arith.constant 8 : index
    %c0_146 = arith.constant 0 : index
    %408 = vector.load %arg3[%c8, %c0_146] : memref<10x32xf32, #tpu.memory_space<vmem>>, vector<1x32xf32>
    %c9 = arith.constant 9 : index
    %c0_147 = arith.constant 0 : index
    %409 = vector.load %arg3[%c9, %c0_147] : memref<10x32xf32, #tpu.memory_space<vmem>>, vector<1x32xf32>
    %cst_148 = arith.constant dense<0.000000e+00> : vector<2xf32>
    %410 = vector.multi_reduction <add>, %407, %cst_148 [1] : vector<2x32xf32> to vector<2xf32>
    %411 = vector.shape_cast %410 : vector<2xf32> to vector<2x1xf32>
    %cst_149 = arith.constant 3.200000e+01 : f32
    %412 = vector.broadcast %cst_149 : f32 to vector<2x1xf32>
    %413 = arith.divf %411, %412 : vector<2x1xf32>
    %414 = vector.broadcast %413 : vector<2x1xf32> to vector<2x32xf32>
    %415 = arith.subf %407, %414 : vector<2x32xf32>
    %416 = arith.mulf %415, %415 : vector<2x32xf32>
    %cst_150 = arith.constant dense<0.000000e+00> : vector<2xf32>
    %417 = vector.multi_reduction <add>, %416, %cst_150 [1] : vector<2x32xf32> to vector<2xf32>
    %418 = vector.shape_cast %417 : vector<2xf32> to vector<2x1xf32>
    %cst_151 = arith.constant 3.200000e+01 : f32
    %419 = vector.broadcast %cst_151 : f32 to vector<2x1xf32>
    %420 = arith.divf %418, %419 : vector<2x1xf32>
    %421 = vector.broadcast %413 : vector<2x1xf32> to vector<2x32xf32>
    %422 = arith.subf %407, %421 : vector<2x32xf32>
    %cst_152 = arith.constant 9.99999974E-6 : f32
    %423 = vector.broadcast %cst_152 : f32 to vector<2x1xf32>
    %424 = arith.addf %420, %423 : vector<2x1xf32>
    %425 = math.rsqrt %424 : vector<2x1xf32>
    %426 = vector.broadcast %425 : vector<2x1xf32> to vector<2x32xf32>
    %427 = arith.mulf %422, %426 : vector<2x32xf32>
    %428 = vector.broadcast %408 : vector<1x32xf32> to vector<2x32xf32>
    %429 = arith.mulf %427, %428 : vector<2x32xf32>
    %430 = vector.broadcast %409 : vector<1x32xf32> to vector<2x32xf32>
    %431 = arith.addf %429, %430 : vector<2x32xf32>
    %432 = arith.truncf %431 : vector<2x32xf32> to vector<2x32xbf16>
    %c0_153 = arith.constant 0 : index
    %c0_154 = arith.constant 0 : index
    %433 = vector.load %arg9[%c0_153, %c0_154] : memref<32x128xbf16, #tpu.memory_space<vmem>>, vector<32x128xbf16>
    %cst_155 = arith.constant dense<0.000000e+00> : vector<2x128xf32>
    %434 = tpu.matmul %432, %433, %cst_155 {dimension_numbers = #tpu.dot_dimension_numbers<[1], [0], [0], [1], [0, 0, 1, 1], [], []>} : vector<2x32xbf16>, vector<32x128xbf16>, vector<2x128xf32> -> vector<2x128xf32>
    %c0_156 = arith.constant 0 : index
    %c0_157 = arith.constant 0 : index
    %435 = vector.load %arg10[%c0_156, %c0_157] : memref<2x128xf32, #tpu.memory_space<vmem>>, vector<2x128xf32>
    tpu.vector_store %arg10[%c0_156, %c0_157], %434 {strides = array<i32>} : memref<2x128xf32, #tpu.memory_space<vmem>>, vector<2x128xf32>,
    return
  }
}

</mosaic_0001>

<llo_original>
// kernel: tpu_custom_call.1
$region0: #{tpu_custom_call.1}
  #allocation0 [shape = 'u32[]', space=smem, size = 0x4, offset = 0x4, fixed_abs, tag = 'smem constant byte address 0x4 - core index']
  #allocation1 [shape = 'u32[144,128]{1,0:T(1,128)}', space=vmem, size = 0x12000, scoped, tag = 'internal scratch']
  %s0 = inlined_call_operand.vmem [shape: f32[16,32], index: 0, kind: input, shape index: {}]
  %s1 = inlined_call_operand.vmem [shape: s32[2,1], index: 1, kind: input, shape index: {}]
  %s2 = inlined_call_operand.vmem [shape: f32[16,32], index: 2, kind: input, shape index: {}]
  %s3 = inlined_call_operand.vmem [shape: f32[10,32], index: 3, kind: input, shape index: {}]
  %s4 = inlined_call_operand.hbm [shape: f32[8,128], index: 4, kind: input, shape index: {}]
  %s5 = inlined_call_operand.vmem [shape: bf16[2,32,96], index: 5, kind: input, shape index: {}]
  %s6 = inlined_call_operand.vmem [shape: bf16[8,8,32], index: 6, kind: input, shape index: {}]
  %s7 = inlined_call_operand.vmem [shape: bf16[2,32,128], index: 7, kind: input, shape index: {}]
  %s8 = inlined_call_operand.vmem [shape: bf16[2,128,32], index: 8, kind: input, shape index: {}]
  %s9 = inlined_call_operand.vmem [shape: bf16[32,128], index: 9, kind: input, shape index: {}]
  %s10 = inlined_call_operand.hbm [shape: f32[2,128], index: 10, kind: output, shape index: {}]
  %s11 = sld [smem:[#allocation0]]
  $region54: #{tpu_custom_call.1} parent=0
    _
  %s13 = ssub.s32 1, %s11
  %s14 = scalar_select 0, %s13, %s11
  $region1: #{tpu_custom_call.1} parent=0
    #allocation2 [shape = 'u8[4096]{0}', space=vmem, size = 0x1000, scoped, tag = 'input window, operand 4, single buffered']
    #allocation3 [shape = 's32[1]{0}', space=sflag, size = 0x4, scoped, tag = 'scoped memory for tpu_custom_call.1']
    #allocation4 [shape = 's32[1]{0}', space=sflag, size = 0x4, scoped, tag = 'scoped memory for tpu_custom_call.1']
    #allocation5 [shape = 'u8[1024]{0}', space=vmem, size = 0x400, scoped, tag = 'output window, operand 0, single buffered']
    %15 = vsyncpa [#allocation3], 0
    %16 = vsyncpa [#allocation4], 0
    // Predicated region
    $region2: #{tpu_custom_call.1} parent=1 // pred_check
      _
    $region3: #{tpu_custom_call.1} parent=1 // pred_check_branch
      %18 = sbr.rel (0) target = $region5
    $region4: #{tpu_custom_call.1} parent=1 // pred_region
      _
    $region5: #{tpu_custom_call.1} parent=1 // pred_fallthru
      _
    // Predicated region
    $region6: #{tpu_custom_call.1} parent=1 // pred_check
      _
    $region7: #{tpu_custom_call.1} parent=1 // pred_check_branch
      %20 = sbr.rel (0) target = $region9
    $region8: #{tpu_custom_call.1} parent=1 // pred_region
      _
    $region9: #{tpu_custom_call.1} parent=1 // pred_fallthru
      _
    // Predicated region
    $region10: #{tpu_custom_call.1} parent=1 // pred_check
      _
    $region11: #{tpu_custom_call.1} parent=1 // pred_check_branch
      %22 = sbr.rel (0) target = $region13
    $region12: #{tpu_custom_call.1} parent=1 // pred_region
      _
    $region13: #{tpu_custom_call.1} parent=1 // pred_fallthru
      _
    // Predicated region
    $region14: #{tpu_custom_call.1} parent=1 // pred_check
      _
    $region15: #{tpu_custom_call.1} parent=1 // pred_check_branch
      %24 = sbr.rel (0) target = $region17
    $region16: #{tpu_custom_call.1} parent=1 // pred_region
      _
    $region17: #{tpu_custom_call.1} parent=1 // pred_fallthru
      _
    // Predicated region
    $region18: #{tpu_custom_call.1} parent=1 // pred_check
      _
    $region19: #{tpu_custom_call.1} parent=1 // pred_check_branch
      %26 = sbr.rel (0) target = $region21
    $region20: #{tpu_custom_call.1} parent=1 // pred_region
      %s28 = ssub.s32 128, 128
      %29 = vsyncadd [#allocation3], %s28
      %s31 = sshll.u32 [#allocation2], 4
      %s32 = int_to_ptr.vmem [resolvable:$true] %s31
      %34 = dma.hbm_to_vmem [thread:$0]  %s4, 128, %s32, [#allocation3]
    $region21: #{tpu_custom_call.1} parent=1 // pred_fallthru
      _
    // Predicated region
    $region22: #{tpu_custom_call.1} parent=1 // pred_check
      _
    $region23: #{tpu_custom_call.1} parent=1 // pred_check_branch
      %36 = sbr.rel (0) target = $region25
    $region24: #{tpu_custom_call.1} parent=1 // pred_region
      _
    $region25: #{tpu_custom_call.1} parent=1 // pred_fallthru
      _
    // Predicated region
    $region26: #{tpu_custom_call.1} parent=1 // pred_check
      _
    $region27: #{tpu_custom_call.1} parent=1 // pred_check_branch
      %38 = sbr.rel (0) target = $region29
    $region28: #{tpu_custom_call.1} parent=1 // pred_region
      _
    $region29: #{tpu_custom_call.1} parent=1 // pred_fallthru
      _
    // Predicated region
    $region30: #{tpu_custom_call.1} parent=1 // pred_check
      _
    $region31: #{tpu_custom_call.1} parent=1 // pred_check_branch
      %40 = sbr.rel (0) target = $region33
    $region32: #{tpu_custom_call.1} parent=1 // pred_region
      _
    $region33: #{tpu_custom_call.1} parent=1 // pred_fallthru
      _
    // Predicated region
    $region34: #{tpu_custom_call.1} parent=1 // pred_check
      _
    $region35: #{tpu_custom_call.1} parent=1 // pred_check_branch
      %42 = sbr.rel (0) target = $region37
    $region36: #{tpu_custom_call.1} parent=1 // pred_region
      _
    $region37: #{tpu_custom_call.1} parent=1 // pred_fallthru
      _
    // Predicated region
    $region38: #{tpu_custom_call.1} parent=1 // pred_check
      _
    $region39: #{tpu_custom_call.1} parent=1 // pred_check_branch
      %44 = sbr.rel (0) target = $region41
    $region40: #{tpu_custom_call.1} parent=1 // pred_region
      _
    $region41: #{tpu_custom_call.1} parent=1 // pred_fallthru
      _
    // Predicated region
    $region42: #{tpu_custom_call.1} parent=1 // pred_check
      _
    $region43: #{tpu_custom_call.1} parent=1 // pred_check_branch
      %46 = sbr.rel (0) target = $region45
    $region44: #{tpu_custom_call.1} parent=1 // pred_region
      %47 = dma.done [#allocation3], 128
    $region45: #{tpu_custom_call.1} parent=1 // pred_fallthru
      _
    %v49 = vlaneseq
    %v50 = vshrl.u32 %v49, 7
    %v51 = vlaneseq
    %v52 = vand.u32 %v51, 127
    %vm53 = vcmp.le.s32.totalorder %v52, %v50
    %v54 = vsel %vm53, 0.0, -1e+09
    %v55 = vld [vmem:[%s0] sm:$0xff]
    %v56 = vld [vmem:[%s0 + $0x8] sm:$0xff]
    %v57 = vld [vmem:[%s2] sm:$0xff]
    %v58 = vld [vmem:[%s2 + $0x8] sm:$0xff]
    %v59 = vadd.f32 %v55, %v57
    %v60 = vadd.f32 %v56, %v58
    %v61 = vld [vmem:[%s3] sm:$0x1]
    %v62 = vld [vmem:[%s3 + $0x1] sm:$0x1]
    %v63 = vld [vmem:[%s3 + $0x2] sm:$0x1]
    %v64 = vld [vmem:[%s3 + $0x3] sm:$0x1]
    %v65 = vld [vmem:[#allocation2] sm:$0x1]
    %v66 = vld [vmem:[#allocation2 + $0x1] sm:$0x1]
    %v67 = vld [vmem:[#allocation2 + $0x2] sm:$0x1]
    %v68 = vld [vmem:[#allocation2 + $0x3] sm:$0x1]
    %vm69 = vcmask 261120
    %v70 = vsel %vm69, %v59, 0.0
    %71 = vadd.xlane.f32.xlu0 %v70
    %v72 = vpop.xlane.xlu0 %71
    %v73 = vsel %vm69, %v60, 0.0
    %74 = vadd.xlane.f32.xlu0 %v73
    %v75 = vpop.xlane.xlu0 %74
    %v76 = vrcp.pop 32.0
    %v77 = vmul.f32 %v72, %v76
    %v78 = vmul.f32 %v75, %v76
    %v79 = vsub.f32 %v59, %v77
    %v80 = vsub.f32 %v60, %v78
    %v81 = vmul.f32 %v79, %v79
    %v82 = vmul.f32 %v80, %v80
    %v83 = vsel %vm69, %v81, 0.0
    %84 = vadd.xlane.f32.xlu0 %v83
    %v85 = vpop.xlane.xlu0 %84
    %v86 = vsel %vm69, %v82, 0.0
    %87 = vadd.xlane.f32.xlu0 %v86
    %v88 = vpop.xlane.xlu0 %87
    %v89 = vmul.f32 %v85, %v76
    %v90 = vmul.f32 %v88, %v76
    %v91 = vadd.f32 %v89, 1e-05
    %v92 = vadd.f32 %v90, 1e-05
    %v93 = vrsqrt.pop %v91
    %v94 = vrsqrt.pop %v92
    %v95 = vmul.f32 %v79, %v93
    %v96 = vmul.f32 %v80, %v94
    %v97 = vlaneseq
    %v98 = vshrl.u32 %v97, 7
    %v99 = vsub.s32 0, %v98
    %v100 = vrot.slane %v61, %v99
    %v101 = vmul.f32 %v95, %v100
    %v102 = vmul.f32 %v96, %v100
    %v103 = vlaneseq
    %v104 = vshrl.u32 %v103, 7
    %v105 = vsub.s32 0, %v104
    %v106 = vrot.slane %v62, %v105
    %v107 = vadd.f32 %v101, %v106
    %v108 = vadd.f32 %v102, %v106
    %v109 = vpack.c.bf16 %v108, %v107
    %v110 = vld [vmem:[%s5] sm:$0xf]
    %v111 = vld [vmem:[%s5 + $0x4] sm:$0xf]
    %v112 = vld [vmem:[%s5 + $0x8] sm:$0xf]
    %v113 = vld [vmem:[%s5 + $0xc] sm:$0xf]
    %v114 = vlaneseq
    %v115 = vshrl.u32 %v114, 7
    %v116 = vsub.s32 0, %v115
    %v117 = vrot.slane %v65, %v116
    %v122 = vunpack.c.l.b16 %v110
    %v123 = vunpack.c.l.b16 %v111
    %v124 = vunpack.c.l.b16 %v112
    %v125 = vunpack.c.l.b16 %v113
    %v126 = vpack.c.b16 %v123, %v122
    %v127 = vpack.c.b16 %v125, %v124
    %v131 = vsel %vm69, %v109, 0
    %133 = vmatprep.subr.bf16.mxu0 0
    %134 = vmatpush1.bf16.msra.mxu0 %v126
    %135 = vmatprep.subr.bf16.mxu0 0
    %136 = vmatpush1.bf16.msra.mxu0 %v127
    %137 = vmatprep.subr.bf16.mxu0 0
    %138 = vmatpush1.bf16.msra.mxu0 0
    %139 = vmatprep.subr.bf16.mxu0 0
    %140 = vmatpush1.bf16.msra.mxu0 0
    %141 = vmatprep.subr.bf16.mxu0 0
    %142 = vmatpush1.bf16.msra.mxu0 0
    %143 = vmatprep.subr.bf16.mxu0 0
    %144 = vmatpush1.bf16.msra.mxu0 0
    %145 = vmatprep.subr.bf16.mxu0 0
    %146 = vmatpush1.bf16.msra.mxu0 0
    %147 = vmatprep.subr.bf16.mxu0 0
    %148 = vmatpush1.bf16.msra.mxu0 0
    %149 = vmatprep.subr.bf16.mxu0 0
    %150 = vmatpush1.bf16.msra.mxu0 0
    %151 = vmatprep.subr.bf16.mxu0 0
    %152 = vmatpush1.bf16.msra.mxu0 0
    %153 = vmatprep.subr.bf16.mxu0 0
    %154 = vmatpush1.bf16.msra.mxu0 0
    %155 = vmatprep.subr.bf16.mxu0 0
    %156 = vmatpush1.bf16.msra.mxu0 0
    %157 = vmatprep.subr.bf16.mxu0 0
    %158 = vmatpush1.bf16.msra.mxu0 0
    %159 = vmatprep.subr.bf16.mxu0 0
    %160 = vmatpush1.bf16.msra.mxu0 0
    %161 = vmatprep.subr.bf16.mxu0 0
    %162 = vmatpush1.bf16.msra.mxu0 0
    %163 = vmatprep.subr.bf16.mxu0 0
    %164 = vmatpush1.bf16.msra.mxu0 0
    %165 = vmatprep.mubr.bf16.mxu0 0
    %166 = vmatmul.mubr.bf16.gmra.mrb[0].mxu0 %v131
    %v167 = vpop.f32.mrb[0].mxu0
    %v168 = vadd.f32 %v117, %v167
    %v169 = vpop.f32.mrb[0].mxu0
    %v170 = vpop.f32.mrb[0].mxu0
    %v171 = vadd.f32 %v117, %v170
    %v172 = vpop.f32.mrb[0].mxu0
    %173 = vdwg.mxu0
    %v174 = vpack.c.bf16 %v168, %v168
    %v175 = vpack.c.bf16 %v171, %v171
    %177 = vrot.lane.b32.xlu0 %v174, 96
    %v178 = vpop.permute.xlu0 %177
    %vm179 = vcmask 64512
    %v181 = vsel %vm179, %v174, 0
    %v184 = vsel %vm179, %v178, 0
    %186 = vmatprep.subr.bf16.mxu0 0
    %187 = vmatpush1.bf16.xpose.msra.mxu0 %v184
    %188 = vmatprep.subr.bf16.mxu0 0
    %189 = vmatpush1.bf16.xpose.msra.mxu0 0
    %190 = vmatprep.subr.bf16.mxu0 0
    %191 = vmatpush1.bf16.xpose.msra.mxu0 0
    %192 = vmatprep.subr.bf16.mxu0 0
    %193 = vmatpush1.bf16.xpose.msra.mxu0 0
    %194 = vmatprep.subr.bf16.mxu0 0
    %195 = vmatpush1.bf16.xpose.msra.mxu0 0
    %196 = vmatprep.subr.bf16.mxu0 0
    %197 = vmatpush1.bf16.xpose.msra.mxu0 0
    %198 = vmatprep.subr.bf16.mxu0 0
    %199 = vmatpush1.bf16.xpose.msra.mxu0 0
    %200 = vmatprep.subr.bf16.mxu0 0
    %201 = vmatpush1.bf16.xpose.msra.mxu0 0
    %202 = vmatprep.subr.bf16.mxu0 0
    %203 = vmatpush1.bf16.xpose.msra.mxu0 0
    %204 = vmatprep.subr.bf16.mxu0 0
    %205 = vmatpush1.bf16.xpose.msra.mxu0 0
    %206 = vmatprep.subr.bf16.mxu0 0
    %207 = vmatpush1.bf16.xpose.msra.mxu0 0
    %208 = vmatprep.subr.bf16.mxu0 0
    %209 = vmatpush1.bf16.xpose.msra.mxu0 0
    %210 = vmatprep.subr.bf16.mxu0 0
    %211 = vmatpush1.bf16.xpose.msra.mxu0 0
    %212 = vmatprep.subr.bf16.mxu0 0
    %213 = vmatpush1.bf16.xpose.msra.mxu0 0
    %214 = vmatprep.subr.bf16.mxu0 0
    %215 = vmatpush1.bf16.xpose.msra.mxu0 0
    %216 = vmatprep.subr.bf16.mxu0 0
    %217 = vmatpush1.bf16.xpose.msra.mxu0 0
    %218 = vmatprep.mubr.bf16.mxu0 0
    %219 = vmatmul.mubr.bf16.gmra.mrb[0].mxu0 %v181
    %v220 = vpop.f32.mrb[0].mxu0
    %v221 = vadd.f32 %v54, %v220
    %v222 = vpop.f32.mrb[0].mxu0
    %v223 = vpop.f32.mrb[0].mxu0
    %v224 = vpop.f32.mrb[0].mxu0
    %225 = vdwg.mxu0
    %227 = vrot.lane.b32.xlu0 %v175, 96
    %v228 = vpop.permute.xlu0 %227
    %v230 = vsel %vm179, %v175, 0
    %v233 = vsel %vm179, %v228, 0
    %235 = vmatprep.subr.bf16.mxu0 0
    %236 = vmatpush1.bf16.xpose.msra.mxu0 %v233
    %237 = vmatprep.subr.bf16.mxu0 0
    %238 = vmatpush1.bf16.xpose.msra.mxu0 0
    %239 = vmatprep.subr.bf16.mxu0 0
    %240 = vmatpush1.bf16.xpose.msra.mxu0 0
    %241 = vmatprep.subr.bf16.mxu0 0
    %242 = vmatpush1.bf16.xpose.msra.mxu0 0
    %243 = vmatprep.subr.bf16.mxu0 0
    %244 = vmatpush1.bf16.xpose.msra.mxu0 0
    %245 = vmatprep.subr.bf16.mxu0 0
    %246 = vmatpush1.bf16.xpose.msra.mxu0 0
    %247 = vmatprep.subr.bf16.mxu0 0
    %248 = vmatpush1.bf16.xpose.msra.mxu0 0
    %249 = vmatprep.subr.bf16.mxu0 0
    %250 = vmatpush1.bf16.xpose.msra.mxu0 0
    %251 = vmatprep.subr.bf16.mxu0 0
    %252 = vmatpush1.bf16.xpose.msra.mxu0 0
    %253 = vmatprep.subr.bf16.mxu0 0
    %254 = vmatpush1.bf16.xpose.msra.mxu0 0
    %255 = vmatprep.subr.bf16.mxu0 0
    %256 = vmatpush1.bf16.xpose.msra.mxu0 0
    %257 = vmatprep.subr.bf16.mxu0 0
    %258 = vmatpush1.bf16.xpose.msra.mxu0 0
    %259 = vmatprep.subr.bf16.mxu0 0
    %260 = vmatpush1.bf16.xpose.msra.mxu0 0
    %261 = vmatprep.subr.bf16.mxu0 0
    %262 = vmatpush1.bf16.xpose.msra.mxu0 0
    %263 = vmatprep.subr.bf16.mxu0 0
    %264 = vmatpush1.bf16.xpose.msra.mxu0 0
    %265 = vmatprep.subr.bf16.mxu0 0
    %266 = vmatpush1.bf16.xpose.msra.mxu0 0
    %267 = vmatprep.mubr.bf16.mxu0 0
    %268 = vmatmul.mubr.bf16.gmra.mrb[0].mxu0 %v230
    %v269 = vpop.f32.mrb[0].mxu0
    %v270 = vadd.f32 %v54, %v269
    %v271 = vpop.f32.mrb[0].mxu0
    %v272 = vpop.f32.mrb[0].mxu0
    %v273 = vpop.f32.mrb[0].mxu0
    %274 = vdwg.mxu0
    %v275 = vsel %vm179, %v221, -inf
    %276 = vmax.xlane.f32.xlu0 %v275
    %v277 = vpop.xlane.xlu0 %276
    %v278 = vsel %vm179, %v270, -inf
    %279 = vmax.xlane.f32.xlu0 %v278
    %v280 = vpop.xlane.xlu0 %279
    %v281 = vsub.f32 %v221, %v277
    %v282 = vsub.f32 %v270, %v280
    %v283 = vmul.f32 %v281, 1.442695
    %v284 = vpow.pop %v283
    %v285 = vmul.f32 %v282, 1.442695
    %v286 = vpow.pop %v285
    %v287 = vsel %vm179, %v284, 0.0
    %288 = vadd.xlane.f32.xlu0 %v287
    %v289 = vpop.xlane.xlu0 %288
    %v290 = vsel %vm179, %v286, 0.0
    %291 = vadd.xlane.f32.xlu0 %v290
    %v292 = vpop.xlane.xlu0 %291
    %v293 = vrcp.pop %v289
    %v294 = vrcp.pop %v292
    %v295 = vmul.f32 %v284, %v293
    %v296 = vmul.f32 %v286, %v294
    %v297 = vpack.c.bf16 %v295, %v295
    %v298 = vpack.c.bf16 %v296, %v296
    %299 = vrot.lane.b32.xlu0 %v174, 64
    %v300 = vpop.permute.xlu0 %299
    %v302 = vsel %vm179, %v297, 0
    %vm304 = vcmask 1043456
    %v306 = vsel %vm304, %v300, 0
    %308 = vmatprep.subr.bf16.mxu0 0
    %309 = vmatpush1.bf16.msra.mxu0 %v306
    %310 = vmatprep.subr.bf16.mxu0 0
    %311 = vmatpush1.bf16.msra.mxu0 0
    %312 = vmatprep.subr.bf16.mxu0 0
    %313 = vmatpush1.bf16.msra.mxu0 0
    %314 = vmatprep.subr.bf16.mxu0 0
    %315 = vmatpush1.bf16.msra.mxu0 0
    %316 = vmatprep.subr.bf16.mxu0 0
    %317 = vmatpush1.bf16.msra.mxu0 0
    %318 = vmatprep.subr.bf16.mxu0 0
    %319 = vmatpush1.bf16.msra.mxu0 0
    %320 = vmatprep.subr.bf16.mxu0 0
    %321 = vmatpush1.bf16.msra.mxu0 0
    %322 = vmatprep.subr.bf16.mxu0 0
    %323 = vmatpush1.bf16.msra.mxu0 0
    %324 = vmatprep.subr.bf16.mxu0 0
    %325 = vmatpush1.bf16.msra.mxu0 0
    %326 = vmatprep.subr.bf16.mxu0 0
    %327 = vmatpush1.bf16.msra.mxu0 0
    %328 = vmatprep.subr.bf16.mxu0 0
    %329 = vmatpush1.bf16.msra.mxu0 0
    %330 = vmatprep.subr.bf16.mxu0 0
    %331 = vmatpush1.bf16.msra.mxu0 0
    %332 = vmatprep.subr.bf16.mxu0 0
    %333 = vmatpush1.bf16.msra.mxu0 0
    %334 = vmatprep.subr.bf16.mxu0 0
    %335 = vmatpush1.bf16.msra.mxu0 0
    %336 = vmatprep.subr.bf16.mxu0 0
    %337 = vmatpush1.bf16.msra.mxu0 0
    %338 = vmatprep.subr.bf16.mxu0 0
    %339 = vmatpush1.bf16.msra.mxu0 0
    %340 = vmatprep.mubr.bf16.mxu0 0
    %341 = vmatmul.mubr.bf16.gmra.mrb[0].mxu0 %v302
    %v342 = vpop.f32.mrb[0].mxu0
    %v343 = vadd.f32 0.0, %v342
    %v344 = vpop.f32.mrb[0].mxu0
    %v345 = vpop.f32.mrb[0].mxu0
    %v346 = vpop.f32.mrb[0].mxu0
    %347 = vdwg.mxu0
    %348 = vrot.lane.b32.xlu0 %v175, 64
    %v349 = vpop.permute.xlu0 %348
    %v351 = vsel %vm179, %v298, 0
    %v354 = vsel %vm304, %v349, 0
    %356 = vmatprep.subr.bf16.mxu0 0
    %357 = vmatpush1.bf16.msra.mxu0 %v354
    %358 = vmatprep.subr.bf16.mxu0 0
    %359 = vmatpush1.bf16.msra.mxu0 0
    %360 = vmatprep.subr.bf16.mxu0 0
    %361 = vmatpush1.bf16.msra.mxu0 0
    %362 = vmatprep.subr.bf16.mxu0 0
    %363 = vmatpush1.bf16.msra.mxu0 0
    %364 = vmatprep.subr.bf16.mxu0 0
    %365 = vmatpush1.bf16.msra.mxu0 0
    %366 = vmatprep.subr.bf16.mxu0 0
    %367 = vmatpush1.bf16.msra.mxu0 0
    %368 = vmatprep.subr.bf16.mxu0 0
    %369 = vmatpush1.bf16.msra.mxu0 0
    %370 = vmatprep.subr.bf16.mxu0 0
    %371 = vmatpush1.bf16.msra.mxu0 0
    %372 = vmatprep.subr.bf16.mxu0 0
    %373 = vmatpush1.bf16.msra.mxu0 0
    %374 = vmatprep.subr.bf16.mxu0 0
    %375 = vmatpush1.bf16.msra.mxu0 0
    %376 = vmatprep.subr.bf16.mxu0 0
    %377 = vmatpush1.bf16.msra.mxu0 0
    %378 = vmatprep.subr.bf16.mxu0 0
    %379 = vmatpush1.bf16.msra.mxu0 0
    %380 = vmatprep.subr.bf16.mxu0 0
    %381 = vmatpush1.bf16.msra.mxu0 0
    %382 = vmatprep.subr.bf16.mxu0 0
    %383 = vmatpush1.bf16.msra.mxu0 0
    %384 = vmatprep.subr.bf16.mxu0 0
    %385 = vmatpush1.bf16.msra.mxu0 0
    %386 = vmatprep.subr.bf16.mxu0 0
    %387 = vmatpush1.bf16.msra.mxu0 0
    %388 = vmatprep.mubr.bf16.mxu0 0
    %389 = vmatmul.mubr.bf16.gmra.mrb[0].mxu0 %v351
    %v390 = vpop.f32.mrb[0].mxu0
    %v391 = vadd.f32 0.0, %v390
    %v392 = vpop.f32.mrb[0].mxu0
    %v393 = vpop.f32.mrb[0].mxu0
    %v394 = vpop.f32.mrb[0].mxu0
    %395 = vdwg.mxu0
    %v396 = vpack.c.bf16 %v391, %v343
    %v397 = vld [vmem:[%s6] sm:$0xf]
    %398 = vrot.lane.b32.xlu0 %v174, 120
    %v399 = vpop.permute.xlu0 %398
    %400 = vrot.lane.b32.xlu0 %v174, 88
    %v401 = vpop.permute.xlu0 %400
    %v403 = vsel %vm179, %v399, 0
    %v406 = vsel %vm179, %v401, 0
    %408 = vmatprep.subr.bf16.mxu0 0
    %409 = vmatpush1.bf16.xpose.msra.mxu0 %v406
    %410 = vmatprep.subr.bf16.mxu0 0
    %411 = vmatpush1.bf16.xpose.msra.mxu0 0
    %412 = vmatprep.subr.bf16.mxu0 0
    %413 = vmatpush1.bf16.xpose.msra.mxu0 0
    %414 = vmatprep.subr.bf16.mxu0 0
    %415 = vmatpush1.bf16.xpose.msra.mxu0 0
    %416 = vmatprep.subr.bf16.mxu0 0
    %417 = vmatpush1.bf16.xpose.msra.mxu0 0
    %418 = vmatprep.subr.bf16.mxu0 0
    %419 = vmatpush1.bf16.xpose.msra.mxu0 0
    %420 = vmatprep.subr.bf16.mxu0 0
    %421 = vmatpush1.bf16.xpose.msra.mxu0 0
    %422 = vmatprep.subr.bf16.mxu0 0
    %423 = vmatpush1.bf16.xpose.msra.mxu0 0
    %424 = vmatprep.subr.bf16.mxu0 0
    %425 = vmatpush1.bf16.xpose.msra.mxu0 0
    %426 = vmatprep.subr.bf16.mxu0 0
    %427 = vmatpush1.bf16.xpose.msra.mxu0 0
    %428 = vmatprep.subr.bf16.mxu0 0
    %429 = vmatpush1.bf16.xpose.msra.mxu0 0
    %430 = vmatprep.subr.bf16.mxu0 0
    %431 = vmatpush1.bf16.xpose.msra.mxu0 0
    %432 = vmatprep.subr.bf16.mxu0 0
    %433 = vmatpush1.bf16.xpose.msra.mxu0 0
    %434 = vmatprep.subr.bf16.mxu0 0
    %435 = vmatpush1.bf16.xpose.msra.mxu0 0
    %436 = vmatprep.subr.bf16.mxu0 0
    %437 = vmatpush1.bf16.xpose.msra.mxu0 0
    %438 = vmatprep.subr.bf16.mxu0 0
    %439 = vmatpush1.bf16.xpose.msra.mxu0 0
    %440 = vmatprep.mubr.bf16.mxu0 0
    %441 = vmatmul.mubr.bf16.gmra.mrb[0].mxu0 %v403
    %v442 = vpop.f32.mrb[0].mxu0
    %v443 = vadd.f32 %v54, %v442
    %v444 = vpop.f32.mrb[0].mxu0
    %v445 = vpop.f32.mrb[0].mxu0
    %v446 = vpop.f32.mrb[0].mxu0
    %447 = vdwg.mxu0
    %448 = vrot.lane.b32.xlu0 %v175, 120
    %v449 = vpop.permute.xlu0 %448
    %450 = vrot.lane.b32.xlu0 %v175, 88
    %v451 = vpop.permute.xlu0 %450
    %v453 = vsel %vm179, %v449, 0
    %v456 = vsel %vm179, %v451, 0
    %458 = vmatprep.subr.bf16.mxu0 0
    %459 = vmatpush1.bf16.xpose.msra.mxu0 %v456
    %460 = vmatprep.subr.bf16.mxu0 0
    %461 = vmatpush1.bf16.xpose.msra.mxu0 0
    %462 = vmatprep.subr.bf16.mxu0 0
    %463 = vmatpush1.bf16.xpose.msra.mxu0 0
    %464 = vmatprep.subr.bf16.mxu0 0
    %465 = vmatpush1.bf16.xpose.msra.mxu0 0
    %466 = vmatprep.subr.bf16.mxu0 0
    %467 = vmatpush1.bf16.xpose.msra.mxu0 0
    %468 = vmatprep.subr.bf16.mxu0 0
    %469 = vmatpush1.bf16.xpose.msra.mxu0 0
    %470 = vmatprep.subr.bf16.mxu0 0
    %471 = vmatpush1.bf16.xpose.msra.mxu0 0
    %472 = vmatprep.subr.bf16.mxu0 0
    %473 = vmatpush1.bf16.xpose.msra.mxu0 0
    %474 = vmatprep.subr.bf16.mxu0 0
    %475 = vmatpush1.bf16.xpose.msra.mxu0 0
    %476 = vmatprep.subr.bf16.mxu0 0
    %477 = vmatpush1.bf16.xpose.msra.mxu0 0
    %478 = vmatprep.subr.bf16.mxu0 0
    %479 = vmatpush1.bf16.xpose.msra.mxu0 0
    %480 = vmatprep.subr.bf16.mxu0 0
    %481 = vmatpush1.bf16.xpose.msra.mxu0 0
    %482 = vmatprep.subr.bf16.mxu0 0
    %483 = vmatpush1.bf16.xpose.msra.mxu0 0
    %484 = vmatprep.subr.bf16.mxu0 0
    %485 = vmatpush1.bf16.xpose.msra.mxu0 0
    %486 = vmatprep.subr.bf16.mxu0 0
    %487 = vmatpush1.bf16.xpose.msra.mxu0 0
    %488 = vmatprep.subr.bf16.mxu0 0
    %489 = vmatpush1.bf16.xpose.msra.mxu0 0
    %490 = vmatprep.mubr.bf16.mxu0 0
    %491 = vmatmul.mubr.bf16.gmra.mrb[0].mxu0 %v453
    %v492 = vpop.f32.mrb[0].mxu0
    %v493 = vadd.f32 %v54, %v492
    %v494 = vpop.f32.mrb[0].mxu0
    %v495 = vpop.f32.mrb[0].mxu0
    %v496 = vpop.f32.mrb[0].mxu0
    %497 = vdwg.mxu0
    %v498 = vsel %vm179, %v443, -inf
    %499 = vmax.xlane.f32.xlu0 %v498
    %v500 = vpop.xlane.xlu0 %499
    %v501 = vsel %vm179, %v493, -inf
    %502 = vmax.xlane.f32.xlu0 %v501
    %v503 = vpop.xlane.xlu0 %502
    %v504 = vsub.f32 %v443, %v500
    %v505 = vsub.f32 %v493, %v503
    %v506 = vmul.f32 %v504, 1.442695
    %v507 = vpow.pop %v506
    %v508 = vmul.f32 %v505, 1.442695
    %v509 = vpow.pop %v508
    %v510 = vsel %vm179, %v507, 0.0
    %511 = vadd.xlane.f32.xlu0 %v510
    %v512 = vpop.xlane.xlu0 %511
    %v513 = vsel %vm179, %v509, 0.0
    %514 = vadd.xlane.f32.xlu0 %v513
    %v515 = vpop.xlane.xlu0 %514
    %v516 = vrcp.pop %v512
    %v517 = vrcp.pop %v515
    %v518 = vmul.f32 %v507, %v516
    %v519 = vmul.f32 %v509, %v517
    %v520 = vpack.c.bf16 %v518, %v518
    %v521 = vpack.c.bf16 %v519, %v519
    %522 = vrot.lane.b32.xlu0 %v174, 56
    %v523 = vpop.permute.xlu0 %522
    %v525 = vsel %vm179, %v520, 0
    %v528 = vsel %vm304, %v523, 0
    %530 = vmatprep.subr.bf16.mxu0 0
    %531 = vmatpush1.bf16.msra.mxu0 %v528
    %532 = vmatprep.subr.bf16.mxu0 0
    %533 = vmatpush1.bf16.msra.mxu0 0
    %534 = vmatprep.subr.bf16.mxu0 0
    %535 = vmatpush1.bf16.msra.mxu0 0
    %536 = vmatprep.subr.bf16.mxu0 0
    %537 = vmatpush1.bf16.msra.mxu0 0
    %538 = vmatprep.subr.bf16.mxu0 0
    %539 = vmatpush1.bf16.msra.mxu0 0
    %540 = vmatprep.subr.bf16.mxu0 0
    %541 = vmatpush1.bf16.msra.mxu0 0
    %542 = vmatprep.subr.bf16.mxu0 0
    %543 = vmatpush1.bf16.msra.mxu0 0
    %544 = vmatprep.subr.bf16.mxu0 0
    %545 = vmatpush1.bf16.msra.mxu0 0
    %546 = vmatprep.subr.bf16.mxu0 0
    %547 = vmatpush1.bf16.msra.mxu0 0
    %548 = vmatprep.subr.bf16.mxu0 0
    %549 = vmatpush1.bf16.msra.mxu0 0
    %550 = vmatprep.subr.bf16.mxu0 0
    %551 = vmatpush1.bf16.msra.mxu0 0
    %552 = vmatprep.subr.bf16.mxu0 0
    %553 = vmatpush1.bf16.msra.mxu0 0
    %554 = vmatprep.subr.bf16.mxu0 0
    %555 = vmatpush1.bf16.msra.mxu0 0
    %556 = vmatprep.subr.bf16.mxu0 0
    %557 = vmatpush1.bf16.msra.mxu0 0
    %558 = vmatprep.subr.bf16.mxu0 0
    %559 = vmatpush1.bf16.msra.mxu0 0
    %560 = vmatprep.subr.bf16.mxu0 0
    %561 = vmatpush1.bf16.msra.mxu0 0
    %562 = vmatprep.mubr.bf16.mxu0 0
    %563 = vmatmul.mubr.bf16.gmra.mrb[0].mxu0 %v525
    %v564 = vpop.f32.mrb[0].mxu0
    %v565 = vadd.f32 0.0, %v564
    %v566 = vpop.f32.mrb[0].mxu0
    %v567 = vpop.f32.mrb[0].mxu0
    %v568 = vpop.f32.mrb[0].mxu0
    %569 = vdwg.mxu0
    %570 = vrot.lane.b32.xlu0 %v175, 56
    %v571 = vpop.permute.xlu0 %570
    %v573 = vsel %vm179, %v521, 0
    %v576 = vsel %vm304, %v571, 0
    %578 = vmatprep.subr.bf16.mxu0 0
    %579 = vmatpush1.bf16.msra.mxu0 %v576
    %580 = vmatprep.subr.bf16.mxu0 0
    %581 = vmatpush1.bf16.msra.mxu0 0
    %582 = vmatprep.subr.bf16.mxu0 0
    %583 = vmatpush1.bf16.msra.mxu0 0
    %584 = vmatprep.subr.bf16.mxu0 0
    %585 = vmatpush1.bf16.msra.mxu0 0
    %586 = vmatprep.subr.bf16.mxu0 0
    %587 = vmatpush1.bf16.msra.mxu0 0
    %588 = vmatprep.subr.bf16.mxu0 0
    %589 = vmatpush1.bf16.msra.mxu0 0
    %590 = vmatprep.subr.bf16.mxu0 0
    %591 = vmatpush1.bf16.msra.mxu0 0
    %592 = vmatprep.subr.bf16.mxu0 0
    %593 = vmatpush1.bf16.msra.mxu0 0
    %594 = vmatprep.subr.bf16.mxu0 0
    %595 = vmatpush1.bf16.msra.mxu0 0
    %596 = vmatprep.subr.bf16.mxu0 0
    %597 = vmatpush1.bf16.msra.mxu0 0
    %598 = vmatprep.subr.bf16.mxu0 0
    %599 = vmatpush1.bf16.msra.mxu0 0
    %600 = vmatprep.subr.bf16.mxu0 0
    %601 = vmatpush1.bf16.msra.mxu0 0
    %602 = vmatprep.subr.bf16.mxu0 0
    %603 = vmatpush1.bf16.msra.mxu0 0
    %604 = vmatprep.subr.bf16.mxu0 0
    %605 = vmatpush1.bf16.msra.mxu0 0
    %606 = vmatprep.subr.bf16.mxu0 0
    %607 = vmatpush1.bf16.msra.mxu0 0
    %608 = vmatprep.subr.bf16.mxu0 0
    %609 = vmatpush1.bf16.msra.mxu0 0
    %610 = vmatprep.mubr.bf16.mxu0 0
    %611 = vmatmul.mubr.bf16.gmra.mrb[0].mxu0 %v573
    %v612 = vpop.f32.mrb[0].mxu0
    %v613 = vadd.f32 0.0, %v612
    %v614 = vpop.f32.mrb[0].mxu0
    %v615 = vpop.f32.mrb[0].mxu0
    %v616 = vpop.f32.mrb[0].mxu0
    %617 = vdwg.mxu0
    %v618 = vpack.c.bf16 %v613, %v565
    %s619 = scalar_lea.vmem %s6, 4
    %v620 = vld [vmem:[%s619] sm:$0xf]
    %v622 = vsel %vm179, %v618, 0
    %v625 = vsel %vm304, %v620, 0
    %627 = vmatprep.subr.bf16.mxu0 0
    %628 = vmatpush1.bf16.msra.mxu0 %v625
    %629 = vmatprep.subr.bf16.mxu0 0
    %630 = vmatpush1.bf16.msra.mxu0 0
    %631 = vmatprep.subr.bf16.mxu0 0
    %632 = vmatpush1.bf16.msra.mxu0 0
    %633 = vmatprep.subr.bf16.mxu0 0
    %634 = vmatpush1.bf16.msra.mxu0 0
    %635 = vmatprep.subr.bf16.mxu0 0
    %636 = vmatpush1.bf16.msra.mxu0 0
    %637 = vmatprep.subr.bf16.mxu0 0
    %638 = vmatpush1.bf16.msra.mxu0 0
    %639 = vmatprep.subr.bf16.mxu0 0
    %640 = vmatpush1.bf16.msra.mxu0 0
    %641 = vmatprep.subr.bf16.mxu0 0
    %642 = vmatpush1.bf16.msra.mxu0 0
    %643 = vmatprep.subr.bf16.mxu0 0
    %644 = vmatpush1.bf16.msra.mxu0 0
    %645 = vmatprep.subr.bf16.mxu0 0
    %646 = vmatpush1.bf16.msra.mxu0 0
    %647 = vmatprep.subr.bf16.mxu0 0
    %648 = vmatpush1.bf16.msra.mxu0 0
    %649 = vmatprep.subr.bf16.mxu0 0
    %650 = vmatpush1.bf16.msra.mxu0 0
    %651 = vmatprep.subr.bf16.mxu0 0
    %652 = vmatpush1.bf16.msra.mxu0 0
    %653 = vmatprep.subr.bf16.mxu0 0
    %654 = vmatpush1.bf16.msra.mxu0 0
    %655 = vmatprep.subr.bf16.mxu0 0
    %656 = vmatpush1.bf16.msra.mxu0 0
    %657 = vmatprep.subr.bf16.mxu0 0
    %658 = vmatpush1.bf16.msra.mxu0 0
    %659 = vmatprep.mubr.bf16.mxu0 0
    %660 = vmatmul.mubr.bf16.gmra.mrb[0].mxu0 %v622
    %v661 = vpop.f32.mrb[0].mxu0
    %v662 = vadd.f32 0.0, %v661
    %v663 = vpop.f32.mrb[0].mxu0
    %v664 = vpop.f32.mrb[0].mxu0
    %v665 = vadd.f32 0.0, %v664
    %v666 = vpop.f32.mrb[0].mxu0
    %667 = vdwg.mxu0
    %v669 = vsel %vm179, %v396, 0
    %v672 = vsel %vm304, %v397, 0
    %674 = vmatprep.subr.bf16.mxu0 0
    %675 = vmatpush1.bf16.msra.mxu0 %v672
    %676 = vmatprep.subr.bf16.mxu0 0
    %677 = vmatpush1.bf16.msra.mxu0 0
    %678 = vmatprep.subr.bf16.mxu0 0
    %679 = vmatpush1.bf16.msra.mxu0 0
    %680 = vmatprep.subr.bf16.mxu0 0
    %681 = vmatpush1.bf16.msra.mxu0 0
    %682 = vmatprep.subr.bf16.mxu0 0
    %683 = vmatpush1.bf16.msra.mxu0 0
    %684 = vmatprep.subr.bf16.mxu0 0
    %685 = vmatpush1.bf16.msra.mxu0 0
    %686 = vmatprep.subr.bf16.mxu0 0
    %687 = vmatpush1.bf16.msra.mxu0 0
    %688 = vmatprep.subr.bf16.mxu0 0
    %689 = vmatpush1.bf16.msra.mxu0 0
    %690 = vmatprep.subr.bf16.mxu0 0
    %691 = vmatpush1.bf16.msra.mxu0 0
    %692 = vmatprep.subr.bf16.mxu0 0
    %693 = vmatpush1.bf16.msra.mxu0 0
    %694 = vmatprep.subr.bf16.mxu0 0
    %695 = vmatpush1.bf16.msra.mxu0 0
    %696 = vmatprep.subr.bf16.mxu0 0
    %697 = vmatpush1.bf16.msra.mxu0 0
    %698 = vmatprep.subr.bf16.mxu0 0
    %699 = vmatpush1.bf16.msra.mxu0 0
    %700 = vmatprep.subr.bf16.mxu0 0
    %701 = vmatpush1.bf16.msra.mxu0 0
    %702 = vmatprep.subr.bf16.mxu0 0
    %703 = vmatpush1.bf16.msra.mxu0 0
    %704 = vmatprep.subr.bf16.mxu0 0
    %705 = vmatpush1.bf16.msra.mxu0 0
    %706 = vmatprep.mubr.bf16.mxu0 0
    %707 = vmatmul.mubr.bf16.gmra.mrb[0].mxu0 %v669
    %v708 = vpop.f32.mrb[0].mxu0
    %v709 = vadd.f32 %v662, %v708
    %v710 = vpop.f32.mrb[0].mxu0
    %v711 = vpop.f32.mrb[0].mxu0
    %v712 = vadd.f32 %v665, %v711
    %v713 = vpop.f32.mrb[0].mxu0
    %714 = vdwg.mxu0
    %715 = vrot.lane.b32.xlu0 %v174, 112
    %v716 = vpop.permute.xlu0 %715
    %717 = vrot.lane.b32.xlu0 %v174, 80
    %v718 = vpop.permute.xlu0 %717
    %v720 = vsel %vm179, %v716, 0
    %v723 = vsel %vm179, %v718, 0
    %725 = vmatprep.subr.bf16.mxu0 0
    %726 = vmatpush1.bf16.xpose.msra.mxu0 %v723
    %727 = vmatprep.subr.bf16.mxu0 0
    %728 = vmatpush1.bf16.xpose.msra.mxu0 0
    %729 = vmatprep.subr.bf16.mxu0 0
    %730 = vmatpush1.bf16.xpose.msra.mxu0 0
    %731 = vmatprep.subr.bf16.mxu0 0
    %732 = vmatpush1.bf16.xpose.msra.mxu0 0
    %733 = vmatprep.subr.bf16.mxu0 0
    %734 = vmatpush1.bf16.xpose.msra.mxu0 0
    %735 = vmatprep.subr.bf16.mxu0 0
    %736 = vmatpush1.bf16.xpose.msra.mxu0 0
    %737 = vmatprep.subr.bf16.mxu0 0
    %738 = vmatpush1.bf16.xpose.msra.mxu0 0
    %739 = vmatprep.subr.bf16.mxu0 0
    %740 = vmatpush1.bf16.xpose.msra.mxu0 0
    %741 = vmatprep.subr.bf16.mxu0 0
    %742 = vmatpush1.bf16.xpose.msra.mxu0 0
    %743 = vmatprep.subr.bf16.mxu0 0
    %744 = vmatpush1.bf16.xpose.msra.mxu0 0
    %745 = vmatprep.subr.bf16.mxu0 0
    %746 = vmatpush1.bf16.xpose.msra.mxu0 0
    %747 = vmatprep.subr.bf16.mxu0 0
    %748 = vmatpush1.bf16.xpose.msra.mxu0 0
    %749 = vmatprep.subr.bf16.mxu0 0
    %750 = vmatpush1.bf16.xpose.msra.mxu0 0
    %751 = vmatprep.subr.bf16.mxu0 0
    %752 = vmatpush1.bf16.xpose.msra.mxu0 0
    %753 = vmatprep.subr.bf16.mxu0 0
    %754 = vmatpush1.bf16.xpose.msra.mxu0 0
    %755 = vmatprep.subr.bf16.mxu0 0
    %756 = vmatpush1.bf16.xpose.msra.mxu0 0
    %757 = vmatprep.mubr.bf16.mxu0 0
    %758 = vmatmul.mubr.bf16.gmra.mrb[0].mxu0 %v720
    %v759 = vpop.f32.mrb[0].mxu0
    %v760 = vadd.f32 %v54, %v759
    %v761 = vpop.f32.mrb[0].mxu0
    %v762 = vpop.f32.mrb[0].mxu0
    %v763 = vpop.f32.mrb[0].mxu0
    %764 = vdwg.mxu0
    %765 = vrot.lane.b32.xlu0 %v175, 112
    %v766 = vpop.permute.xlu0 %765
    %767 = vrot.lane.b32.xlu0 %v175, 80
    %v768 = vpop.permute.xlu0 %767
    %v770 = vsel %vm179, %v766, 0
    %v773 = vsel %vm179, %v768, 0
    %775 = vmatprep.subr.bf16.mxu0 0
    %776 = vmatpush1.bf16.xpose.msra.mxu0 %v773
    %777 = vmatprep.subr.bf16.mxu0 0
    %778 = vmatpush1.bf16.xpose.msra.mxu0 0
    %779 = vmatprep.subr.bf16.mxu0 0
    %780 = vmatpush1.bf16.xpose.msra.mxu0 0
    %781 = vmatprep.subr.bf16.mxu0 0
    %782 = vmatpush1.bf16.xpose.msra.mxu0 0
    %783 = vmatprep.subr.bf16.mxu0 0
    %784 = vmatpush1.bf16.xpose.msra.mxu0 0
    %785 = vmatprep.subr.bf16.mxu0 0
    %786 = vmatpush1.bf16.xpose.msra.mxu0 0
    %787 = vmatprep.subr.bf16.mxu0 0
    %788 = vmatpush1.bf16.xpose.msra.mxu0 0
    %789 = vmatprep.subr.bf16.mxu0 0
    %790 = vmatpush1.bf16.xpose.msra.mxu0 0
    %791 = vmatprep.subr.bf16.mxu0 0
    %792 = vmatpush1.bf16.xpose.msra.mxu0 0
    %793 = vmatprep.subr.bf16.mxu0 0
    %794 = vmatpush1.bf16.xpose.msra.mxu0 0
    %795 = vmatprep.subr.bf16.mxu0 0
    %796 = vmatpush1.bf16.xpose.msra.mxu0 0
    %797 = vmatprep.subr.bf16.mxu0 0
    %798 = vmatpush1.bf16.xpose.msra.mxu0 0
    %799 = vmatprep.subr.bf16.mxu0 0
    %800 = vmatpush1.bf16.xpose.msra.mxu0 0
    %801 = vmatprep.subr.bf16.mxu0 0
    %802 = vmatpush1.bf16.xpose.msra.mxu0 0
    %803 = vmatprep.subr.bf16.mxu0 0
    %804 = vmatpush1.bf16.xpose.msra.mxu0 0
    %805 = vmatprep.subr.bf16.mxu0 0
    %806 = vmatpush1.bf16.xpose.msra.mxu0 0
    %807 = vmatprep.mubr.bf16.mxu0 0
    %808 = vmatmul.mubr.bf16.gmra.mrb[0].mxu0 %v770
    %v809 = vpop.f32.mrb[0].mxu0
    %v810 = vadd.f32 %v54, %v809
    %v811 = vpop.f32.mrb[0].mxu0
    %v812 = vpop.f32.mrb[0].mxu0
    %v813 = vpop.f32.mrb[0].mxu0
    %814 = vdwg.mxu0
    %v815 = vsel %vm179, %v760, -inf
    %816 = vmax.xlane.f32.xlu0 %v815
    %v817 = vpop.xlane.xlu0 %816
    %v818 = vsel %vm179, %v810, -inf
    %819 = vmax.xlane.f32.xlu0 %v818
    %v820 = vpop.xlane.xlu0 %819
    %v821 = vsub.f32 %v760, %v817
    %v822 = vsub.f32 %v810, %v820
    %v823 = vmul.f32 %v821, 1.442695
    %v824 = vpow.pop %v823
    %v825 = vmul.f32 %v822, 1.442695
    %v826 = vpow.pop %v825
    %v827 = vsel %vm179, %v824, 0.0
    %828 = vadd.xlane.f32.xlu0 %v827
    %v829 = vpop.xlane.xlu0 %828
    %v830 = vsel %vm179, %v826, 0.0
    %831 = vadd.xlane.f32.xlu0 %v830
    %v832 = vpop.xlane.xlu0 %831
    %v833 = vrcp.pop %v829
    %v834 = vrcp.pop %v832
    %v835 = vmul.f32 %v824, %v833
    %v836 = vmul.f32 %v826, %v834
    %v837 = vpack.c.bf16 %v835, %v835
    %v838 = vpack.c.bf16 %v836, %v836
    %839 = vrot.lane.b32.xlu0 %v174, 48
    %v840 = vpop.permute.xlu0 %839
    %v842 = vsel %vm179, %v837, 0
    %v845 = vsel %vm304, %v840, 0
    %847 = vmatprep.subr.bf16.mxu0 0
    %848 = vmatpush1.bf16.msra.mxu0 %v845
    %849 = vmatprep.subr.bf16.mxu0 0
    %850 = vmatpush1.bf16.msra.mxu0 0
    %851 = vmatprep.subr.bf16.mxu0 0
    %852 = vmatpush1.bf16.msra.mxu0 0
    %853 = vmatprep.subr.bf16.mxu0 0
    %854 = vmatpush1.bf16.msra.mxu0 0
    %855 = vmatprep.subr.bf16.mxu0 0
    %856 = vmatpush1.bf16.msra.mxu0 0
    %857 = vmatprep.subr.bf16.mxu0 0
    %858 = vmatpush1.bf16.msra.mxu0 0
    %859 = vmatprep.subr.bf16.mxu0 0
    %860 = vmatpush1.bf16.msra.mxu0 0
    %861 = vmatprep.subr.bf16.mxu0 0
    %862 = vmatpush1.bf16.msra.mxu0 0
    %863 = vmatprep.subr.bf16.mxu0 0
    %864 = vmatpush1.bf16.msra.mxu0 0
    %865 = vmatprep.subr.bf16.mxu0 0
    %866 = vmatpush1.bf16.msra.mxu0 0
    %867 = vmatprep.subr.bf16.mxu0 0
    %868 = vmatpush1.bf16.msra.mxu0 0
    %869 = vmatprep.subr.bf16.mxu0 0
    %870 = vmatpush1.bf16.msra.mxu0 0
    %871 = vmatprep.subr.bf16.mxu0 0
    %872 = vmatpush1.bf16.msra.mxu0 0
    %873 = vmatprep.subr.bf16.mxu0 0
    %874 = vmatpush1.bf16.msra.mxu0 0
    %875 = vmatprep.subr.bf16.mxu0 0
    %876 = vmatpush1.bf16.msra.mxu0 0
    %877 = vmatprep.subr.bf16.mxu0 0
    %878 = vmatpush1.bf16.msra.mxu0 0
    %879 = vmatprep.mubr.bf16.mxu0 0
    %880 = vmatmul.mubr.bf16.gmra.mrb[0].mxu0 %v842
    %v881 = vpop.f32.mrb[0].mxu0
    %v882 = vadd.f32 0.0, %v881
    %v883 = vpop.f32.mrb[0].mxu0
    %v884 = vpop.f32.mrb[0].mxu0
    %v885 = vpop.f32.mrb[0].mxu0
    %886 = vdwg.mxu0
    %887 = vrot.lane.b32.xlu0 %v175, 48
    %v888 = vpop.permute.xlu0 %887
    %v890 = vsel %vm179, %v838, 0
    %v893 = vsel %vm304, %v888, 0
    %895 = vmatprep.subr.bf16.mxu0 0
    %896 = vmatpush1.bf16.msra.mxu0 %v893
    %897 = vmatprep.subr.bf16.mxu0 0
    %898 = vmatpush1.bf16.msra.mxu0 0
    %899 = vmatprep.subr.bf16.mxu0 0
    %900 = vmatpush1.bf16.msra.mxu0 0
    %901 = vmatprep.subr.bf16.mxu0 0
    %902 = vmatpush1.bf16.msra.mxu0 0
    %903 = vmatprep.subr.bf16.mxu0 0
    %904 = vmatpush1.bf16.msra.mxu0 0
    %905 = vmatprep.subr.bf16.mxu0 0
    %906 = vmatpush1.bf16.msra.mxu0 0
    %907 = vmatprep.subr.bf16.mxu0 0
    %908 = vmatpush1.bf16.msra.mxu0 0
    %909 = vmatprep.subr.bf16.mxu0 0
    %910 = vmatpush1.bf16.msra.mxu0 0
    %911 = vmatprep.subr.bf16.mxu0 0
    %912 = vmatpush1.bf16.msra.mxu0 0
    %913 = vmatprep.subr.bf16.mxu0 0
    %914 = vmatpush1.bf16.msra.mxu0 0
    %915 = vmatprep.subr.bf16.mxu0 0
    %916 = vmatpush1.bf16.msra.mxu0 0
    %917 = vmatprep.subr.bf16.mxu0 0
    %918 = vmatpush1.bf16.msra.mxu0 0
    %919 = vmatprep.subr.bf16.mxu0 0
    %920 = vmatpush1.bf16.msra.mxu0 0
    %921 = vmatprep.subr.bf16.mxu0 0
    %922 = vmatpush1.bf16.msra.mxu0 0
    %923 = vmatprep.subr.bf16.mxu0 0
    %924 = vmatpush1.bf16.msra.mxu0 0
    %925 = vmatprep.subr.bf16.mxu0 0
    %926 = vmatpush1.bf16.msra.mxu0 0
    %927 = vmatprep.mubr.bf16.mxu0 0
    %928 = vmatmul.mubr.bf16.gmra.mrb[0].mxu0 %v890
    %v929 = vpop.f32.mrb[0].mxu0
    %v930 = vadd.f32 0.0, %v929
    %v931 = vpop.f32.mrb[0].mxu0
    %v932 = vpop.f32.mrb[0].mxu0
    %v933 = vpop.f32.mrb[0].mxu0
    %934 = vdwg.mxu0
    %v935 = vpack.c.bf16 %v930, %v882
    %s936 = scalar_lea.vmem %s6, 8
    %v937 = vld [vmem:[%s936] sm:$0xf]
    %v939 = vsel %vm179, %v935, 0
    %v942 = vsel %vm304, %v937, 0
    %944 = vmatprep.subr.bf16.mxu0 0
    %945 = vmatpush1.bf16.msra.mxu0 %v942
    %946 = vmatprep.subr.bf16.mxu0 0
    %947 = vmatpush1.bf16.msra.mxu0 0
    %948 = vmatprep.subr.bf16.mxu0 0
    %949 = vmatpush1.bf16.msra.mxu0 0
    %950 = vmatprep.subr.bf16.mxu0 0
    %951 = vmatpush1.bf16.msra.mxu0 0
    %952 = vmatprep.subr.bf16.mxu0 0
    %953 = vmatpush1.bf16.msra.mxu0 0
    %954 = vmatprep.subr.bf16.mxu0 0
    %955 = vmatpush1.bf16.msra.mxu0 0
    %956 = vmatprep.subr.bf16.mxu0 0
    %957 = vmatpush1.bf16.msra.mxu0 0
    %958 = vmatprep.subr.bf16.mxu0 0
    %959 = vmatpush1.bf16.msra.mxu0 0
    %960 = vmatprep.subr.bf16.mxu0 0
    %961 = vmatpush1.bf16.msra.mxu0 0
    %962 = vmatprep.subr.bf16.mxu0 0
    %963 = vmatpush1.bf16.msra.mxu0 0
    %964 = vmatprep.subr.bf16.mxu0 0
    %965 = vmatpush1.bf16.msra.mxu0 0
    %966 = vmatprep.subr.bf16.mxu0 0
    %967 = vmatpush1.bf16.msra.mxu0 0
    %968 = vmatprep.subr.bf16.mxu0 0
    %969 = vmatpush1.bf16.msra.mxu0 0
    %970 = vmatprep.subr.bf16.mxu0 0
    %971 = vmatpush1.bf16.msra.mxu0 0
    %972 = vmatprep.subr.bf16.mxu0 0
    %973 = vmatpush1.bf16.msra.mxu0 0
    %974 = vmatprep.subr.bf16.mxu0 0
    %975 = vmatpush1.bf16.msra.mxu0 0
    %976 = vmatprep.mubr.bf16.mxu0 0
    %977 = vmatmul.mubr.bf16.gmra.mrb[0].mxu0 %v939
    %v978 = vpop.f32.mrb[0].mxu0
    %v979 = vadd.f32 0.0, %v978
    %v980 = vpop.f32.mrb[0].mxu0
    %v981 = vpop.f32.mrb[0].mxu0
    %v982 = vadd.f32 0.0, %v981
    %v983 = vpop.f32.mrb[0].mxu0
    %984 = vdwg.mxu0
    %v985 = vadd.f32 %v709, %v979
    %v986 = vadd.f32 %v712, %v982
    %987 = vrot.lane.b32.xlu0 %v174, 104
    %v988 = vpop.permute.xlu0 %987
    %989 = vrot.lane.b32.xlu0 %v174, 72
    %v990 = vpop.permute.xlu0 %989
    %v992 = vsel %vm179, %v988, 0
    %v995 = vsel %vm179, %v990, 0
    %997 = vmatprep.subr.bf16.mxu0 0
    %998 = vmatpush1.bf16.xpose.msra.mxu0 %v995
    %999 = vmatprep.subr.bf16.mxu0 0
    %1000 = vmatpush1.bf16.xpose.msra.mxu0 0
    %1001 = vmatprep.subr.bf16.mxu0 0
    %1002 = vmatpush1.bf16.xpose.msra.mxu0 0
    %1003 = vmatprep.subr.bf16.mxu0 0
    %1004 = vmatpush1.bf16.xpose.msra.mxu0 0
    %1005 = vmatprep.subr.bf16.mxu0 0
    %1006 = vmatpush1.bf16.xpose.msra.mxu0 0
    %1007 = vmatprep.subr.bf16.mxu0 0
    %1008 = vmatpush1.bf16.xpose.msra.mxu0 0
    %1009 = vmatprep.subr.bf16.mxu0 0
    %1010 = vmatpush1.bf16.xpose.msra.mxu0 0
    %1011 = vmatprep.subr.bf16.mxu0 0
    %1012 = vmatpush1.bf16.xpose.msra.mxu0 0
    %1013 = vmatprep.subr.bf16.mxu0 0
    %1014 = vmatpush1.bf16.xpose.msra.mxu0 0
    %1015 = vmatprep.subr.bf16.mxu0 0
    %1016 = vmatpush1.bf16.xpose.msra.mxu0 0
    %1017 = vmatprep.subr.bf16.mxu0 0
    %1018 = vmatpush1.bf16.xpose.msra.mxu0 0
    %1019 = vmatprep.subr.bf16.mxu0 0
    %1020 = vmatpush1.bf16.xpose.msra.mxu0 0
    %1021 = vmatprep.subr.bf16.mxu0 0
    %1022 = vmatpush1.bf16.xpose.msra.mxu0 0
    %1023 = vmatprep.subr.bf16.mxu0 0
    %1024 = vmatpush1.bf16.xpose.msra.mxu0 0
    %1025 = vmatprep.subr.bf16.mxu0 0
    %1026 = vmatpush1.bf16.xpose.msra.mxu0 0
    %1027 = vmatprep.subr.bf16.mxu0 0
    %1028 = vmatpush1.bf16.xpose.msra.mxu0 0
    %1029 = vmatprep.mubr.bf16.mxu0 0
    %1030 = vmatmul.mubr.bf16.gmra.mrb[0].mxu0 %v992
    %v1031 = vpop.f32.mrb[0].mxu0
    %v1032 = vadd.f32 %v54, %v1031
    %v1033 = vpop.f32.mrb[0].mxu0
    %v1034 = vpop.f32.mrb[0].mxu0
    %v1035 = vpop.f32.mrb[0].mxu0
    %1036 = vdwg.mxu0
    %1037 = vrot.lane.b32.xlu0 %v175, 104
    %v1038 = vpop.permute.xlu0 %1037
    %1039 = vrot.lane.b32.xlu0 %v175, 72
    %v1040 = vpop.permute.xlu0 %1039
    %v1042 = vsel %vm179, %v1038, 0
    %v1045 = vsel %vm179, %v1040, 0
    %1047 = vmatprep.subr.bf16.mxu0 0
    %1048 = vmatpush1.bf16.xpose.msra.mxu0 %v1045
    %1049 = vmatprep.subr.bf16.mxu0 0
    %1050 = vmatpush1.bf16.xpose.msra.mxu0 0
    %1051 = vmatprep.subr.bf16.mxu0 0
    %1052 = vmatpush1.bf16.xpose.msra.mxu0 0
    %1053 = vmatprep.subr.bf16.mxu0 0
    %1054 = vmatpush1.bf16.xpose.msra.mxu0 0
    %1055 = vmatprep.subr.bf16.mxu0 0
    %1056 = vmatpush1.bf16.xpose.msra.mxu0 0
    %1057 = vmatprep.subr.bf16.mxu0 0
    %1058 = vmatpush1.bf16.xpose.msra.mxu0 0
    %1059 = vmatprep.subr.bf16.mxu0 0
    %1060 = vmatpush1.bf16.xpose.msra.mxu0 0
    %1061 = vmatprep.subr.bf16.mxu0 0
    %1062 = vmatpush1.bf16.xpose.msra.mxu0 0
    %1063 = vmatprep.subr.bf16.mxu0 0
    %1064 = vmatpush1.bf16.xpose.msra.mxu0 0
    %1065 = vmatprep.subr.bf16.mxu0 0
    %1066 = vmatpush1.bf16.xpose.msra.mxu0 0
    %1067 = vmatprep.subr.bf16.mxu0 0
    %1068 = vmatpush1.bf16.xpose.msra.mxu0 0
    %1069 = vmatprep.subr.bf16.mxu0 0
    %1070 = vmatpush1.bf16.xpose.msra.mxu0 0
    %1071 = vmatprep.subr.bf16.mxu0 0
    %1072 = vmatpush1.bf16.xpose.msra.mxu0 0
    %1073 = vmatprep.subr.bf16.mxu0 0
    %1074 = vmatpush1.bf16.xpose.msra.mxu0 0
    %1075 = vmatprep.subr.bf16.mxu0 0
    %1076 = vmatpush1.bf16.xpose.msra.mxu0 0
    %1077 = vmatprep.subr.bf16.mxu0 0
    %1078 = vmatpush1.bf16.xpose.msra.mxu0 0
    %1079 = vmatprep.mubr.bf16.mxu0 0
    %1080 = vmatmul.mubr.bf16.gmra.mrb[0].mxu0 %v1042
    %v1081 = vpop.f32.mrb[0].mxu0
    %v1082 = vadd.f32 %v54, %v1081
    %v1083 = vpop.f32.mrb[0].mxu0
    %v1084 = vpop.f32.mrb[0].mxu0
    %v1085 = vpop.f32.mrb[0].mxu0
    %1086 = vdwg.mxu0
    %v1087 = vsel %vm179, %v1032, -inf
    %1088 = vmax.xlane.f32.xlu0 %v1087
    %v1089 = vpop.xlane.xlu0 %1088
    %v1090 = vsel %vm179, %v1082, -inf
    %1091 = vmax.xlane.f32.xlu0 %v1090
    %v1092 = vpop.xlane.xlu0 %1091
    %v1093 = vsub.f32 %v1032, %v1089
    %v1094 = vsub.f32 %v1082, %v1092
    %v1095 = vmul.f32 %v1093, 1.442695
    %v1096 = vpow.pop %v1095
    %v1097 = vmul.f32 %v1094, 1.442695
    %v1098 = vpow.pop %v1097
    %v1099 = vsel %vm179, %v1096, 0.0
    %1100 = vadd.xlane.f32.xlu0 %v1099
    %v1101 = vpop.xlane.xlu0 %1100
    %v1102 = vsel %vm179, %v1098, 0.0
    %1103 = vadd.xlane.f32.xlu0 %v1102
    %v1104 = vpop.xlane.xlu0 %1103
    %v1105 = vrcp.pop %v1101
    %v1106 = vrcp.pop %v1104
    %v1107 = vmul.f32 %v1096, %v1105
    %v1108 = vmul.f32 %v1098, %v1106
    %v1109 = vpack.c.bf16 %v1107, %v1107
    %v1110 = vpack.c.bf16 %v1108, %v1108
    %1111 = vrot.lane.b32.xlu0 %v174, 40
    %v1112 = vpop.permute.xlu0 %1111
    %v1114 = vsel %vm179, %v1109, 0
    %v1117 = vsel %vm304, %v1112, 0
    %1119 = vmatprep.subr.bf16.mxu0 0
    %1120 = vmatpush1.bf16.msra.mxu0 %v1117
    %1121 = vmatprep.subr.bf16.mxu0 0
    %1122 = vmatpush1.bf16.msra.mxu0 0
    %1123 = vmatprep.subr.bf16.mxu0 0
    %1124 = vmatpush1.bf16.msra.mxu0 0
    %1125 = vmatprep.subr.bf16.mxu0 0
    %1126 = vmatpush1.bf16.msra.mxu0 0
    %1127 = vmatprep.subr.bf16.mxu0 0
    %1128 = vmatpush1.bf16.msra.mxu0 0
    %1129 = vmatprep.subr.bf16.mxu0 0
    %1130 = vmatpush1.bf16.msra.mxu0 0
    %1131 = vmatprep.subr.bf16.mxu0 0
    %1132 = vmatpush1.bf16.msra.mxu0 0
    %1133 = vmatprep.subr.bf16.mxu0 0
    %1134 = vmatpush1.bf16.msra.mxu0 0
    %1135 = vmatprep.subr.bf16.mxu0 0
    %1136 = vmatpush1.bf16.msra.mxu0 0
    %1137 = vmatprep.subr.bf16.mxu0 0
    %1138 = vmatpush1.bf16.msra.mxu0 0
    %1139 = vmatprep.subr.bf16.mxu0 0
    %1140 = vmatpush1.bf16.msra.mxu0 0
    %1141 = vmatprep.subr.bf16.mxu0 0
    %1142 = vmatpush1.bf16.msra.mxu0 0
    %1143 = vmatprep.subr.bf16.mxu0 0
    %1144 = vmatpush1.bf16.msra.mxu0 0
    %1145 = vmatprep.subr.bf16.mxu0 0
    %1146 = vmatpush1.bf16.msra.mxu0 0
    %1147 = vmatprep.subr.bf16.mxu0 0
    %1148 = vmatpush1.bf16.msra.mxu0 0
    %1149 = vmatprep.subr.bf16.mxu0 0
    %1150 = vmatpush1.bf16.msra.mxu0 0
    %1151 = vmatprep.mubr.bf16.mxu0 0
    %1152 = vmatmul.mubr.bf16.gmra.mrb[0].mxu0 %v1114
    %v1153 = vpop.f32.mrb[0].mxu0
    %v1154 = vadd.f32 0.0, %v1153
    %v1155 = vpop.f32.mrb[0].mxu0
    %v1156 = vpop.f32.mrb[0].mxu0
    %v1157 = vpop.f32.mrb[0].mxu0
    %1158 = vdwg.mxu0
    %1159 = vrot.lane.b32.xlu0 %v175, 40
    %v1160 = vpop.permute.xlu0 %1159
    %v1162 = vsel %vm179, %v1110, 0
    %v1165 = vsel %vm304, %v1160, 0
    %1167 = vmatprep.subr.bf16.mxu0 0
    %1168 = vmatpush1.bf16.msra.mxu0 %v1165
    %1169 = vmatprep.subr.bf16.mxu0 0
    %1170 = vmatpush1.bf16.msra.mxu0 0
    %1171 = vmatprep.subr.bf16.mxu0 0
    %1172 = vmatpush1.bf16.msra.mxu0 0
    %1173 = vmatprep.subr.bf16.mxu0 0
    %1174 = vmatpush1.bf16.msra.mxu0 0
    %1175 = vmatprep.subr.bf16.mxu0 0
    %1176 = vmatpush1.bf16.msra.mxu0 0
    %1177 = vmatprep.subr.bf16.mxu0 0
    %1178 = vmatpush1.bf16.msra.mxu0 0
    %1179 = vmatprep.subr.bf16.mxu0 0
    %1180 = vmatpush1.bf16.msra.mxu0 0
    %1181 = vmatprep.subr.bf16.mxu0 0
    %1182 = vmatpush1.bf16.msra.mxu0 0
    %1183 = vmatprep.subr.bf16.mxu0 0
    %1184 = vmatpush1.bf16.msra.mxu0 0
    %1185 = vmatprep.subr.bf16.mxu0 0
    %1186 = vmatpush1.bf16.msra.mxu0 0
    %1187 = vmatprep.subr.bf16.mxu0 0
    %1188 = vmatpush1.bf16.msra.mxu0 0
    %1189 = vmatprep.subr.bf16.mxu0 0
    %1190 = vmatpush1.bf16.msra.mxu0 0
    %1191 = vmatprep.subr.bf16.mxu0 0
    %1192 = vmatpush1.bf16.msra.mxu0 0
    %1193 = vmatprep.subr.bf16.mxu0 0
    %1194 = vmatpush1.bf16.msra.mxu0 0
    %1195 = vmatprep.subr.bf16.mxu0 0
    %1196 = vmatpush1.bf16.msra.mxu0 0
    %1197 = vmatprep.subr.bf16.mxu0 0
    %1198 = vmatpush1.bf16.msra.mxu0 0
    %1199 = vmatprep.mubr.bf16.mxu0 0
    %1200 = vmatmul.mubr.bf16.gmra.mrb[0].mxu0 %v1162
    %v1201 = vpop.f32.mrb[0].mxu0
    %v1202 = vadd.f32 0.0, %v1201
    %v1203 = vpop.f32.mrb[0].mxu0
    %v1204 = vpop.f32.mrb[0].mxu0
    %v1205 = vpop.f32.mrb[0].mxu0
    %1206 = vdwg.mxu0
    %v1207 = vpack.c.bf16 %v1202, %v1154
    %s1208 = scalar_lea.vmem %s6, 12
    %v1209 = vld [vmem:[%s1208] sm:$0xf]
    %v1211 = vsel %vm179, %v1207, 0
    %v1214 = vsel %vm304, %v1209, 0
    %1216 = vmatprep.subr.bf16.mxu0 0
    %1217 = vmatpush1.bf16.msra.mxu0 %v1214
    %1218 = vmatprep.subr.bf16.mxu0 0
    %1219 = vmatpush1.bf16.msra.mxu0 0
    %1220 = vmatprep.subr.bf16.mxu0 0
    %1221 = vmatpush1.bf16.msra.mxu0 0
    %1222 = vmatprep.subr.bf16.mxu0 0
    %1223 = vmatpush1.bf16.msra.mxu0 0
    %1224 = vmatprep.subr.bf16.mxu0 0
    %1225 = vmatpush1.bf16.msra.mxu0 0
    %1226 = vmatprep.subr.bf16.mxu0 0
    %1227 = vmatpush1.bf16.msra.mxu0 0
    %1228 = vmatprep.subr.bf16.mxu0 0
    %1229 = vmatpush1.bf16.msra.mxu0 0
    %1230 = vmatprep.subr.bf16.mxu0 0
    %1231 = vmatpush1.bf16.msra.mxu0 0
    %1232 = vmatprep.subr.bf16.mxu0 0
    %1233 = vmatpush1.bf16.msra.mxu0 0
    %1234 = vmatprep.subr.bf16.mxu0 0
    %1235 = vmatpush1.bf16.msra.mxu0 0
    %1236 = vmatprep.subr.bf16.mxu0 0
    %1237 = vmatpush1.bf16.msra.mxu0 0
    %1238 = vmatprep.subr.bf16.mxu0 0
    %1239 = vmatpush1.bf16.msra.mxu0 0
    %1240 = vmatprep.subr.bf16.mxu0 0
    %1241 = vmatpush1.bf16.msra.mxu0 0
    %1242 = vmatprep.subr.bf16.mxu0 0
    %1243 = vmatpush1.bf16.msra.mxu0 0
    %1244 = vmatprep.subr.bf16.mxu0 0
    %1245 = vmatpush1.bf16.msra.mxu0 0
    %1246 = vmatprep.subr.bf16.mxu0 0
    %1247 = vmatpush1.bf16.msra.mxu0 0
    %1248 = vmatprep.mubr.bf16.mxu0 0
    %1249 = vmatmul.mubr.bf16.gmra.mrb[0].mxu0 %v1211
    %v1250 = vpop.f32.mrb[0].mxu0
    %v1251 = vadd.f32 0.0, %v1250
    %v1252 = vpop.f32.mrb[0].mxu0
    %v1253 = vpop.f32.mrb[0].mxu0
    %v1254 = vadd.f32 0.0, %v1253
    %v1255 = vpop.f32.mrb[0].mxu0
    %1256 = vdwg.mxu0
    %v1257 = vadd.f32 %v985, %v1251
    %v1258 = vadd.f32 %v986, %v1254
    %v1259 = vadd.f32 %v59, %v1257
    %v1260 = vadd.f32 %v60, %v1258
    %v1261 = vlaneseq
    %v1262 = vshrl.u32 %v1261, 7
    %v1263 = vsub.s32 0, %v1262
    %v1264 = vrot.slane %v66, %v1263
    %v1265 = vadd.f32 %v1259, %v1264
    %v1266 = vadd.f32 %v1260, %v1264
    %v1267 = vsel %vm69, %v1265, 0.0
    %1268 = vadd.xlane.f32.xlu0 %v1267
    %v1269 = vpop.xlane.xlu0 %1268
    %v1270 = vsel %vm69, %v1266, 0.0
    %1271 = vadd.xlane.f32.xlu0 %v1270
    %v1272 = vpop.xlane.xlu0 %1271
    %v1273 = vmul.f32 %v1269, %v76
    %v1274 = vmul.f32 %v1272, %v76
    %v1275 = vsub.f32 %v1265, %v1273
    %v1276 = vsub.f32 %v1266, %v1274
    %v1277 = vmul.f32 %v1275, %v1275
    %v1278 = vmul.f32 %v1276, %v1276
    %v1279 = vsel %vm69, %v1277, 0.0
    %1280 = vadd.xlane.f32.xlu0 %v1279
    %v1281 = vpop.xlane.xlu0 %1280
    %v1282 = vsel %vm69, %v1278, 0.0
    %1283 = vadd.xlane.f32.xlu0 %v1282
    %v1284 = vpop.xlane.xlu0 %1283
    %v1285 = vmul.f32 %v1281, %v76
    %v1286 = vmul.f32 %v1284, %v76
    %v1287 = vadd.f32 %v1285, 1e-05
    %v1288 = vadd.f32 %v1286, 1e-05
    %v1289 = vrsqrt.pop %v1287
    %v1290 = vrsqrt.pop %v1288
    %v1291 = vmul.f32 %v1275, %v1289
    %v1292 = vmul.f32 %v1276, %v1290
    %v1293 = vlaneseq
    %v1294 = vshrl.u32 %v1293, 7
    %v1295 = vsub.s32 0, %v1294
    %v1296 = vrot.slane %v63, %v1295
    %v1297 = vmul.f32 %v1291, %v1296
    %v1298 = vmul.f32 %v1292, %v1296
    %v1299 = vlaneseq
    %v1300 = vshrl.u32 %v1299, 7
    %v1301 = vsub.s32 0, %v1300
    %v1302 = vrot.slane %v64, %v1301
    %v1303 = vadd.f32 %v1297, %v1302
    %v1304 = vadd.f32 %v1298, %v1302
    %v1305 = vpack.c.bf16 %v1304, %v1303
    %v1306 = vld [vmem:[%s7] sm:$0xf]
    %v1307 = vld [vmem:[%s7 + $0x4] sm:$0xf]
    %v1308 = vld [vmem:[%s7 + $0x8] sm:$0xf]
    %v1309 = vld [vmem:[%s7 + $0xc] sm:$0xf]
    %v1310 = vlaneseq
    %v1311 = vshrl.u32 %v1310, 7
    %v1312 = vsub.s32 0, %v1311
    %v1313 = vrot.slane %v67, %v1312
    %v1318 = vunpack.c.l.b16 %v1306
    %v1319 = vunpack.c.l.b16 %v1307
    %v1320 = vunpack.c.l.b16 %v1308
    %v1321 = vunpack.c.l.b16 %v1309
    %v1322 = vpack.c.b16 %v1319, %v1318
    %v1323 = vpack.c.b16 %v1321, %v1320
    %v1327 = vsel %vm69, %v1305, 0
    %1329 = vmatprep.subr.bf16.mxu0 0
    %1330 = vmatpush1.bf16.msra.mxu0 %v1322
    %1331 = vmatprep.subr.bf16.mxu0 0
    %1332 = vmatpush1.bf16.msra.mxu0 %v1323
    %1333 = vmatprep.subr.bf16.mxu0 0
    %1334 = vmatpush1.bf16.msra.mxu0 0
    %1335 = vmatprep.subr.bf16.mxu0 0
    %1336 = vmatpush1.bf16.msra.mxu0 0
    %1337 = vmatprep.subr.bf16.mxu0 0
    %1338 = vmatpush1.bf16.msra.mxu0 0
    %1339 = vmatprep.subr.bf16.mxu0 0
    %1340 = vmatpush1.bf16.msra.mxu0 0
    %1341 = vmatprep.subr.bf16.mxu0 0
    %1342 = vmatpush1.bf16.msra.mxu0 0
    %1343 = vmatprep.subr.bf16.mxu0 0
    %1344 = vmatpush1.bf16.msra.mxu0 0
    %1345 = vmatprep.subr.bf16.mxu0 0
    %1346 = vmatpush1.bf16.msra.mxu0 0
    %1347 = vmatprep.subr.bf16.mxu0 0
    %1348 = vmatpush1.bf16.msra.mxu0 0
    %1349 = vmatprep.subr.bf16.mxu0 0
    %1350 = vmatpush1.bf16.msra.mxu0 0
    %1351 = vmatprep.subr.bf16.mxu0 0
    %1352 = vmatpush1.bf16.msra.mxu0 0
    %1353 = vmatprep.subr.bf16.mxu0 0
    %1354 = vmatpush1.bf16.msra.mxu0 0
    %1355 = vmatprep.subr.bf16.mxu0 0
    %1356 = vmatpush1.bf16.msra.mxu0 0
    %1357 = vmatprep.subr.bf16.mxu0 0
    %1358 = vmatpush1.bf16.msra.mxu0 0
    %1359 = vmatprep.subr.bf16.mxu0 0
    %1360 = vmatpush1.bf16.msra.mxu0 0
    %1361 = vmatprep.mubr.bf16.mxu0 0
    %1362 = vmatmul.mubr.bf16.gmra.mrb[0].mxu0 %v1327
    %v1363 = vpop.f32.mrb[0].mxu0
    %v1364 = vadd.f32 %v1313, %v1363
    %v1365 = vpop.f32.mrb[0].mxu0
    %v1366 = vpop.f32.mrb[0].mxu0
    %v1367 = vadd.f32 %v1313, %v1366
    %v1368 = vpop.f32.mrb[0].mxu0
    %1369 = vdwg.mxu0
    %v1370 = vmul.f32 %v1364, 1.702
    %v1371 = vmul.f32 %v1367, 1.702
    %v1372 = vxor.u32 %v1370, 2147483648
    %v1373 = vxor.u32 %v1371, 2147483648
    %v1374 = vmul.f32 %v1372, 1.442695
    %v1375 = vpow.pop %v1374
    %v1376 = vmul.f32 %v1373, 1.442695
    %v1377 = vpow.pop %v1376
    %v1378 = vadd.f32 %v1375, 1.0
    %v1379 = vadd.f32 %v1377, 1.0
    %v1380 = vrcp.pop %v1378
    %v1381 = vmul.f32 1.0, %v1380
    %v1382 = vrcp.pop %v1379
    %v1383 = vmul.f32 1.0, %v1382
    %v1384 = vmul.f32 %v1364, %v1381
    %v1385 = vmul.f32 %v1367, %v1383
    %v1386 = vpack.c.bf16 %v1385, %v1384
    %v1387 = vld [vmem:[%s8] sm:$0xf]
    %v1388 = vld [vmem:[%s8 + $0x4] sm:$0xf]
    %v1389 = vld [vmem:[%s8 + $0x8] sm:$0xf]
    %v1390 = vld [vmem:[%s8 + $0xc] sm:$0xf]
    %v1391 = vld [vmem:[%s8 + $0x10] sm:$0xf]
    %v1392 = vld [vmem:[%s8 + $0x14] sm:$0xf]
    %v1393 = vld [vmem:[%s8 + $0x18] sm:$0xf]
    %v1394 = vld [vmem:[%s8 + $0x1c] sm:$0xf]
    %v1395 = vld [vmem:[%s8 + $0x20] sm:$0xf]
    %v1396 = vld [vmem:[%s8 + $0x24] sm:$0xf]
    %v1397 = vld [vmem:[%s8 + $0x28] sm:$0xf]
    %v1398 = vld [vmem:[%s8 + $0x2c] sm:$0xf]
    %v1399 = vld [vmem:[%s8 + $0x30] sm:$0xf]
    %v1400 = vld [vmem:[%s8 + $0x34] sm:$0xf]
    %v1401 = vld [vmem:[%s8 + $0x38] sm:$0xf]
    %v1402 = vld [vmem:[%s8 + $0x3c] sm:$0xf]
    %v1419 = vunpack.c.l.b16 %v1387
    %v1420 = vunpack.c.l.b16 %v1388
    %v1421 = vunpack.c.l.b16 %v1389
    %v1422 = vunpack.c.l.b16 %v1390
    %v1423 = vunpack.c.l.b16 %v1391
    %v1424 = vunpack.c.l.b16 %v1392
    %v1425 = vunpack.c.l.b16 %v1393
    %v1426 = vunpack.c.l.b16 %v1394
    %v1427 = vunpack.c.l.b16 %v1395
    %v1428 = vunpack.c.l.b16 %v1396
    %v1429 = vunpack.c.l.b16 %v1397
    %v1430 = vunpack.c.l.b16 %v1398
    %v1431 = vunpack.c.l.b16 %v1399
    %v1432 = vunpack.c.l.b16 %v1400
    %v1433 = vunpack.c.l.b16 %v1401
    %v1434 = vunpack.c.l.b16 %v1402
    %v1435 = vpack.c.b16 %v1420, %v1419
    %v1436 = vpack.c.b16 %v1422, %v1421
    %v1437 = vpack.c.b16 %v1424, %v1423
    %v1438 = vpack.c.b16 %v1426, %v1425
    %v1439 = vpack.c.b16 %v1428, %v1427
    %v1440 = vpack.c.b16 %v1430, %v1429
    %v1441 = vpack.c.b16 %v1432, %v1431
    %v1442 = vpack.c.b16 %v1434, %v1433
    %1451 = vmatprep.subr.bf16.mxu0 0
    %1452 = vmatpush1.bf16.msra.mxu0 %v1435
    %1453 = vmatprep.subr.bf16.mxu0 0
    %1454 = vmatpush1.bf16.msra.mxu0 %v1436
    %1455 = vmatprep.subr.bf16.mxu0 0
    %1456 = vmatpush1.bf16.msra.mxu0 %v1437
    %1457 = vmatprep.subr.bf16.mxu0 0
    %1458 = vmatpush1.bf16.msra.mxu0 %v1438
    %1459 = vmatprep.subr.bf16.mxu0 0
    %1460 = vmatpush1.bf16.msra.mxu0 %v1439
    %1461 = vmatprep.subr.bf16.mxu0 0
    %1462 = vmatpush1.bf16.msra.mxu0 %v1440
    %1463 = vmatprep.subr.bf16.mxu0 0
    %1464 = vmatpush1.bf16.msra.mxu0 %v1441
    %1465 = vmatprep.subr.bf16.mxu0 0
    %1466 = vmatpush1.bf16.msra.mxu0 %v1442
    %1467 = vmatprep.subr.bf16.mxu0 0
    %1468 = vmatpush1.bf16.msra.mxu0 0
    %1469 = vmatprep.subr.bf16.mxu0 0
    %1470 = vmatpush1.bf16.msra.mxu0 0
    %1471 = vmatprep.subr.bf16.mxu0 0
    %1472 = vmatpush1.bf16.msra.mxu0 0
    %1473 = vmatprep.subr.bf16.mxu0 0
    %1474 = vmatpush1.bf16.msra.mxu0 0
    %1475 = vmatprep.subr.bf16.mxu0 0
    %1476 = vmatpush1.bf16.msra.mxu0 0
    %1477 = vmatprep.subr.bf16.mxu0 0
    %1478 = vmatpush1.bf16.msra.mxu0 0
    %1479 = vmatprep.subr.bf16.mxu0 0
    %1480 = vmatpush1.bf16.msra.mxu0 0
    %1481 = vmatprep.subr.bf16.mxu0 0
    %1482 = vmatpush1.bf16.msra.mxu0 0
    %1483 = vmatprep.mubr.bf16.mxu0 0
    %1484 = vmatmul.mubr.bf16.gmra.mrb[0].mxu0 %v1386
    %v1485 = vpop.f32.mrb[0].mxu0
    %v1486 = vadd.f32 0.0, %v1485
    %v1487 = vpop.f32.mrb[0].mxu0
    %v1488 = vpop.f32.mrb[0].mxu0
    %v1489 = vadd.f32 0.0, %v1488
    %v1490 = vpop.f32.mrb[0].mxu0
    %1491 = vdwg.mxu0
    %v1492 = vadd.f32 %v1265, %v1486
    %v1493 = vadd.f32 %v1266, %v1489
    %v1494 = vlaneseq
    %v1495 = vshrl.u32 %v1494, 7
    %v1496 = vsub.s32 0, %v1495
    %v1497 = vrot.slane %v68, %v1496
    %v1498 = vadd.f32 %v1492, %v1497
    %v1499 = vadd.f32 %v1493, %v1497
    %v1500 = vld [vmem:[%s3 + $0x4] sm:$0x1]
    %v1501 = vld [vmem:[%s3 + $0x5] sm:$0x1]
    %v1502 = vld [vmem:[%s3 + $0x6] sm:$0x1]
    %v1503 = vld [vmem:[%s3 + $0x7] sm:$0x1]
    %v1504 = vld [vmem:[#allocation2 + $0x4] sm:$0x1]
    %v1505 = vld [vmem:[#allocation2 + $0x5] sm:$0x1]
    %v1506 = vld [vmem:[#allocation2 + $0x6] sm:$0x1]
    %v1507 = vld [vmem:[#allocation2 + $0x7] sm:$0x1]
    %v1508 = vsel %vm69, %v1498, 0.0
    %1509 = vadd.xlane.f32.xlu0 %v1508
    %v1510 = vpop.xlane.xlu0 %1509
    %v1511 = vsel %vm69, %v1499, 0.0
    %1512 = vadd.xlane.f32.xlu0 %v1511
    %v1513 = vpop.xlane.xlu0 %1512
    %v1514 = vmul.f32 %v1510, %v76
    %v1515 = vmul.f32 %v1513, %v76
    %v1516 = vsub.f32 %v1498, %v1514
    %v1517 = vsub.f32 %v1499, %v1515
    %v1518 = vmul.f32 %v1516, %v1516
    %v1519 = vmul.f32 %v1517, %v1517
    %v1520 = vsel %vm69, %v1518, 0.0
    %1521 = vadd.xlane.f32.xlu0 %v1520
    %v1522 = vpop.xlane.xlu0 %1521
    %v1523 = vsel %vm69, %v1519, 0.0
    %1524 = vadd.xlane.f32.xlu0 %v1523
    %v1525 = vpop.xlane.xlu0 %1524
    %v1526 = vmul.f32 %v1522, %v76
    %v1527 = vmul.f32 %v1525, %v76
    %v1528 = vadd.f32 %v1526, 1e-05
    %v1529 = vadd.f32 %v1527, 1e-05
    %v1530 = vrsqrt.pop %v1528
    %v1531 = vrsqrt.pop %v1529
    %v1532 = vmul.f32 %v1516, %v1530
    %v1533 = vmul.f32 %v1517, %v1531
    %v1534 = vlaneseq
    %v1535 = vshrl.u32 %v1534, 7
    %v1536 = vsub.s32 0, %v1535
    %v1537 = vrot.slane %v1500, %v1536
    %v1538 = vmul.f32 %v1532, %v1537
    %v1539 = vmul.f32 %v1533, %v1537
    %v1540 = vlaneseq
    %v1541 = vshrl.u32 %v1540, 7
    %v1542 = vsub.s32 0, %v1541
    %v1543 = vrot.slane %v1501, %v1542
    %v1544 = vadd.f32 %v1538, %v1543
    %v1545 = vadd.f32 %v1539, %v1543
    %v1546 = vpack.c.bf16 %v1545, %v1544
    %s1547 = scalar_lea.vmem %s5, 16
    %v1548 = vld [vmem:[%s1547] sm:$0xf]
    %v1549 = vld [vmem:[%s1547 + $0x4] sm:$0xf]
    %v1550 = vld [vmem:[%s1547 + $0x8] sm:$0xf]
    %v1551 = vld [vmem:[%s1547 + $0xc] sm:$0xf]
    %v1552 = vlaneseq
    %v1553 = vshrl.u32 %v1552, 7
    %v1554 = vsub.s32 0, %v1553
    %v1555 = vrot.slane %v1504, %v1554
    %v1560 = vunpack.c.l.b16 %v1548
    %v1561 = vunpack.c.l.b16 %v1549
    %v1562 = vunpack.c.l.b16 %v1550
    %v1563 = vunpack.c.l.b16 %v1551
    %v1564 = vpack.c.b16 %v1561, %v1560
    %v1565 = vpack.c.b16 %v1563, %v1562
    %v1569 = vsel %vm69, %v1546, 0
    %1571 = vmatprep.subr.bf16.mxu0 0
    %1572 = vmatpush1.bf16.msra.mxu0 %v1564
    %1573 = vmatprep.subr.bf16.mxu0 0
    %1574 = vmatpush1.bf16.msra.mxu0 %v1565
    %1575 = vmatprep.subr.bf16.mxu0 0
    %1576 = vmatpush1.bf16.msra.mxu0 0
    %1577 = vmatprep.subr.bf16.mxu0 0
    %1578 = vmatpush1.bf16.msra.mxu0 0
    %1579 = vmatprep.subr.bf16.mxu0 0
    %1580 = vmatpush1.bf16.msra.mxu0 0
    %1581 = vmatprep.subr.bf16.mxu0 0
    %1582 = vmatpush1.bf16.msra.mxu0 0
    %1583 = vmatprep.subr.bf16.mxu0 0
    %1584 = vmatpush1.bf16.msra.mxu0 0
    %1585 = vmatprep.subr.bf16.mxu0 0
    %1586 = vmatpush1.bf16.msra.mxu0 0
    %1587 = vmatprep.subr.bf16.mxu0 0
    %1588 = vmatpush1.bf16.msra.mxu0 0
    %1589 = vmatprep.subr.bf16.mxu0 0
    %1590 = vmatpush1.bf16.msra.mxu0 0
    %1591 = vmatprep.subr.bf16.mxu0 0
    %1592 = vmatpush1.bf16.msra.mxu0 0
    %1593 = vmatprep.subr.bf16.mxu0 0
    %1594 = vmatpush1.bf16.msra.mxu0 0
    %1595 = vmatprep.subr.bf16.mxu0 0
    %1596 = vmatpush1.bf16.msra.mxu0 0
    %1597 = vmatprep.subr.bf16.mxu0 0
    %1598 = vmatpush1.bf16.msra.mxu0 0
    %1599 = vmatprep.subr.bf16.mxu0 0
    %1600 = vmatpush1.bf16.msra.mxu0 0
    %1601 = vmatprep.subr.bf16.mxu0 0
    %1602 = vmatpush1.bf16.msra.mxu0 0
    %1603 = vmatprep.mubr.bf16.mxu0 0
    %1604 = vmatmul.mubr.bf16.gmra.mrb[0].mxu0 %v1569
    %v1605 = vpop.f32.mrb[0].mxu0
    %v1606 = vadd.f32 %v1555, %v1605
    %v1607 = vpop.f32.mrb[0].mxu0
    %v1608 = vpop.f32.mrb[0].mxu0
    %v1609 = vadd.f32 %v1555, %v1608
    %v1610 = vpop.f32.mrb[0].mxu0
    %1611 = vdwg.mxu0
    %v1612 = vpack.c.bf16 %v1606, %v1606
    %v1613 = vpack.c.bf16 %v1609, %v1609
    %1615 = vrot.lane.b32.xlu0 %v1612, 96
    %v1616 = vpop.permute.xlu0 %1615
    %v1618 = vsel %vm179, %v1612, 0
    %v1621 = vsel %vm179, %v1616, 0
    %1623 = vmatprep.subr.bf16.mxu0 0
    %1624 = vmatpush1.bf16.xpose.msra.mxu0 %v1621
    %1625 = vmatprep.subr.bf16.mxu0 0
    %1626 = vmatpush1.bf16.xpose.msra.mxu0 0
    %1627 = vmatprep.subr.bf16.mxu0 0
    %1628 = vmatpush1.bf16.xpose.msra.mxu0 0
    %1629 = vmatprep.subr.bf16.mxu0 0
    %1630 = vmatpush1.bf16.xpose.msra.mxu0 0
    %1631 = vmatprep.subr.bf16.mxu0 0
    %1632 = vmatpush1.bf16.xpose.msra.mxu0 0
    %1633 = vmatprep.subr.bf16.mxu0 0
    %1634 = vmatpush1.bf16.xpose.msra.mxu0 0
    %1635 = vmatprep.subr.bf16.mxu0 0
    %1636 = vmatpush1.bf16.xpose.msra.mxu0 0
    %1637 = vmatprep.subr.bf16.mxu0 0
    %1638 = vmatpush1.bf16.xpose.msra.mxu0 0
    %1639 = vmatprep.subr.bf16.mxu0 0
    %1640 = vmatpush1.bf16.xpose.msra.mxu0 0
    %1641 = vmatprep.subr.bf16.mxu0 0
    %1642 = vmatpush1.bf16.xpose.msra.mxu0 0
    %1643 = vmatprep.subr.bf16.mxu0 0
    %1644 = vmatpush1.bf16.xpose.msra.mxu0 0
    %1645 = vmatprep.subr.bf16.mxu0 0
    %1646 = vmatpush1.bf16.xpose.msra.mxu0 0
    %1647 = vmatprep.subr.bf16.mxu0 0
    %1648 = vmatpush1.bf16.xpose.msra.mxu0 0
    %1649 = vmatprep.subr.bf16.mxu0 0
    %1650 = vmatpush1.bf16.xpose.msra.mxu0 0
    %1651 = vmatprep.subr.bf16.mxu0 0
    %1652 = vmatpush1.bf16.xpose.msra.mxu0 0
    %1653 = vmatprep.subr.bf16.mxu0 0
    %1654 = vmatpush1.bf16.xpose.msra.mxu0 0
    %1655 = vmatprep.mubr.bf16.mxu0 0
    %1656 = vmatmul.mubr.bf16.gmra.mrb[0].mxu0 %v1618
    %v1657 = vpop.f32.mrb[0].mxu0
    %v1658 = vadd.f32 %v54, %v1657
    %v1659 = vpop.f32.mrb[0].mxu0
    %v1660 = vpop.f32.mrb[0].mxu0
    %v1661 = vpop.f32.mrb[0].mxu0
    %1662 = vdwg.mxu0
    %1664 = vrot.lane.b32.xlu0 %v1613, 96
    %v1665 = vpop.permute.xlu0 %1664
    %v1667 = vsel %vm179, %v1613, 0
    %v1670 = vsel %vm179, %v1665, 0
    %1672 = vmatprep.subr.bf16.mxu0 0
    %1673 = vmatpush1.bf16.xpose.msra.mxu0 %v1670
    %1674 = vmatprep.subr.bf16.mxu0 0
    %1675 = vmatpush1.bf16.xpose.msra.mxu0 0
    %1676 = vmatprep.subr.bf16.mxu0 0
    %1677 = vmatpush1.bf16.xpose.msra.mxu0 0
    %1678 = vmatprep.subr.bf16.mxu0 0
    %1679 = vmatpush1.bf16.xpose.msra.mxu0 0
    %1680 = vmatprep.subr.bf16.mxu0 0
    %1681 = vmatpush1.bf16.xpose.msra.mxu0 0
    %1682 = vmatprep.subr.bf16.mxu0 0
    %1683 = vmatpush1.bf16.xpose.msra.mxu0 0
    %1684 = vmatprep.subr.bf16.mxu0 0
    %1685 = vmatpush1.bf16.xpose.msra.mxu0 0
    %1686 = vmatprep.subr.bf16.mxu0 0
    %1687 = vmatpush1.bf16.xpose.msra.mxu0 0
    %1688 = vmatprep.subr.bf16.mxu0 0
    %1689 = vmatpush1.bf16.xpose.msra.mxu0 0
    %1690 = vmatprep.subr.bf16.mxu0 0
    %1691 = vmatpush1.bf16.xpose.msra.mxu0 0
    %1692 = vmatprep.subr.bf16.mxu0 0
    %1693 = vmatpush1.bf16.xpose.msra.mxu0 0
    %1694 = vmatprep.subr.bf16.mxu0 0
    %1695 = vmatpush1.bf16.xpose.msra.mxu0 0
    %1696 = vmatprep.subr.bf16.mxu0 0
    %1697 = vmatpush1.bf16.xpose.msra.mxu0 0
    %1698 = vmatprep.subr.bf16.mxu0 0
    %1699 = vmatpush1.bf16.xpose.msra.mxu0 0
    %1700 = vmatprep.subr.bf16.mxu0 0
    %1701 = vmatpush1.bf16.xpose.msra.mxu0 0
    %1702 = vmatprep.subr.bf16.mxu0 0
    %1703 = vmatpush1.bf16.xpose.msra.mxu0 0
    %1704 = vmatprep.mubr.bf16.mxu0 0
    %1705 = vmatmul.mubr.bf16.gmra.mrb[0].mxu0 %v1667
    %v1706 = vpop.f32.mrb[0].mxu0
    %v1707 = vadd.f32 %v54, %v1706
    %v1708 = vpop.f32.mrb[0].mxu0
    %v1709 = vpop.f32.mrb[0].mxu0
    %v1710 = vpop.f32.mrb[0].mxu0
    %1711 = vdwg.mxu0
    %v1712 = vsel %vm179, %v1658, -inf
    %1713 = vmax.xlane.f32.xlu0 %v1712
    %v1714 = vpop.xlane.xlu0 %1713
    %v1715 = vsel %vm179, %v1707, -inf
    %1716 = vmax.xlane.f32.xlu0 %v1715
    %v1717 = vpop.xlane.xlu0 %1716
    %v1718 = vsub.f32 %v1658, %v1714
    %v1719 = vsub.f32 %v1707, %v1717
    %v1720 = vmul.f32 %v1718, 1.442695
    %v1721 = vpow.pop %v1720
    %v1722 = vmul.f32 %v1719, 1.442695
    %v1723 = vpow.pop %v1722
    %v1724 = vsel %vm179, %v1721, 0.0
    %1725 = vadd.xlane.f32.xlu0 %v1724
    %v1726 = vpop.xlane.xlu0 %1725
    %v1727 = vsel %vm179, %v1723, 0.0
    %1728 = vadd.xlane.f32.xlu0 %v1727
    %v1729 = vpop.xlane.xlu0 %1728
    %v1730 = vrcp.pop %v1726
    %v1731 = vrcp.pop %v1729
    %v1732 = vmul.f32 %v1721, %v1730
    %v1733 = vmul.f32 %v1723, %v1731
    %v1734 = vpack.c.bf16 %v1732, %v1732
    %v1735 = vpack.c.bf16 %v1733, %v1733
    %1736 = vrot.lane.b32.xlu0 %v1612, 64
    %v1737 = vpop.permute.xlu0 %1736
    %v1739 = vsel %vm179, %v1734, 0
    %v1742 = vsel %vm304, %v1737, 0
    %1744 = vmatprep.subr.bf16.mxu0 0
    %1745 = vmatpush1.bf16.msra.mxu0 %v1742
    %1746 = vmatprep.subr.bf16.mxu0 0
    %1747 = vmatpush1.bf16.msra.mxu0 0
    %1748 = vmatprep.subr.bf16.mxu0 0
    %1749 = vmatpush1.bf16.msra.mxu0 0
    %1750 = vmatprep.subr.bf16.mxu0 0
    %1751 = vmatpush1.bf16.msra.mxu0 0
    %1752 = vmatprep.subr.bf16.mxu0 0
    %1753 = vmatpush1.bf16.msra.mxu0 0
    %1754 = vmatprep.subr.bf16.mxu0 0
    %1755 = vmatpush1.bf16.msra.mxu0 0
    %1756 = vmatprep.subr.bf16.mxu0 0
    %1757 = vmatpush1.bf16.msra.mxu0 0
    %1758 = vmatprep.subr.bf16.mxu0 0
    %1759 = vmatpush1.bf16.msra.mxu0 0
    %1760 = vmatprep.subr.bf16.mxu0 0
    %1761 = vmatpush1.bf16.msra.mxu0 0
    %1762 = vmatprep.subr.bf16.mxu0 0
    %1763 = vmatpush1.bf16.msra.mxu0 0
    %1764 = vmatprep.subr.bf16.mxu0 0
    %1765 = vmatpush1.bf16.msra.mxu0 0
    %1766 = vmatprep.subr.bf16.mxu0 0
    %1767 = vmatpush1.bf16.msra.mxu0 0
    %1768 = vmatprep.subr.bf16.mxu0 0
    %1769 = vmatpush1.bf16.msra.mxu0 0
    %1770 = vmatprep.subr.bf16.mxu0 0
    %1771 = vmatpush1.bf16.msra.mxu0 0
    %1772 = vmatprep.subr.bf16.mxu0 0
    %1773 = vmatpush1.bf16.msra.mxu0 0
    %1774 = vmatprep.subr.bf16.mxu0 0
    %1775 = vmatpush1.bf16.msra.mxu0 0
    %1776 = vmatprep.mubr.bf16.mxu0 0
    %1777 = vmatmul.mubr.bf16.gmra.mrb[0].mxu0 %v1739
    %v1778 = vpop.f32.mrb[0].mxu0
    %v1779 = vadd.f32 0.0, %v1778
    %v1780 = vpop.f32.mrb[0].mxu0
    %v1781 = vpop.f32.mrb[0].mxu0
    %v1782 = vpop.f32.mrb[0].mxu0
    %1783 = vdwg.mxu0
    %1784 = vrot.lane.b32.xlu0 %v1613, 64
    %v1785 = vpop.permute.xlu0 %1784
    %v1787 = vsel %vm179, %v1735, 0
    %v1790 = vsel %vm304, %v1785, 0
    %1792 = vmatprep.subr.bf16.mxu0 0
    %1793 = vmatpush1.bf16.msra.mxu0 %v1790
    %1794 = vmatprep.subr.bf16.mxu0 0
    %1795 = vmatpush1.bf16.msra.mxu0 0
    %1796 = vmatprep.subr.bf16.mxu0 0
    %1797 = vmatpush1.bf16.msra.mxu0 0
    %1798 = vmatprep.subr.bf16.mxu0 0
    %1799 = vmatpush1.bf16.msra.mxu0 0
    %1800 = vmatprep.subr.bf16.mxu0 0
    %1801 = vmatpush1.bf16.msra.mxu0 0
    %1802 = vmatprep.subr.bf16.mxu0 0
    %1803 = vmatpush1.bf16.msra.mxu0 0
    %1804 = vmatprep.subr.bf16.mxu0 0
    %1805 = vmatpush1.bf16.msra.mxu0 0
    %1806 = vmatprep.subr.bf16.mxu0 0
    %1807 = vmatpush1.bf16.msra.mxu0 0
    %1808 = vmatprep.subr.bf16.mxu0 0
    %1809 = vmatpush1.bf16.msra.mxu0 0
    %1810 = vmatprep.subr.bf16.mxu0 0
    %1811 = vmatpush1.bf16.msra.mxu0 0
    %1812 = vmatprep.subr.bf16.mxu0 0
    %1813 = vmatpush1.bf16.msra.mxu0 0
    %1814 = vmatprep.subr.bf16.mxu0 0
    %1815 = vmatpush1.bf16.msra.mxu0 0
    %1816 = vmatprep.subr.bf16.mxu0 0
    %1817 = vmatpush1.bf16.msra.mxu0 0
    %1818 = vmatprep.subr.bf16.mxu0 0
    %1819 = vmatpush1.bf16.msra.mxu0 0
    %1820 = vmatprep.subr.bf16.mxu0 0
    %1821 = vmatpush1.bf16.msra.mxu0 0
    %1822 = vmatprep.subr.bf16.mxu0 0
    %1823 = vmatpush1.bf16.msra.mxu0 0
    %1824 = vmatprep.mubr.bf16.mxu0 0
    %1825 = vmatmul.mubr.bf16.gmra.mrb[0].mxu0 %v1787
    %v1826 = vpop.f32.mrb[0].mxu0
    %v1827 = vadd.f32 0.0, %v1826
    %v1828 = vpop.f32.mrb[0].mxu0
    %v1829 = vpop.f32.mrb[0].mxu0
    %v1830 = vpop.f32.mrb[0].mxu0
    %1831 = vdwg.mxu0
    %v1832 = vpack.c.bf16 %v1827, %v1779
    %s1833 = scalar_lea.vmem %s6, 16
    %v1834 = vld [vmem:[%s1833] sm:$0xf]
    %1835 = vrot.lane.b32.xlu0 %v1612, 120
    %v1836 = vpop.permute.xlu0 %1835
    %1837 = vrot.lane.b32.xlu0 %v1612, 88
    %v1838 = vpop.permute.xlu0 %1837
    %v1840 = vsel %vm179, %v1836, 0
    %v1843 = vsel %vm179, %v1838, 0
    %1845 = vmatprep.subr.bf16.mxu0 0
    %1846 = vmatpush1.bf16.xpose.msra.mxu0 %v1843
    %1847 = vmatprep.subr.bf16.mxu0 0
    %1848 = vmatpush1.bf16.xpose.msra.mxu0 0
    %1849 = vmatprep.subr.bf16.mxu0 0
    %1850 = vmatpush1.bf16.xpose.msra.mxu0 0
    %1851 = vmatprep.subr.bf16.mxu0 0
    %1852 = vmatpush1.bf16.xpose.msra.mxu0 0
    %1853 = vmatprep.subr.bf16.mxu0 0
    %1854 = vmatpush1.bf16.xpose.msra.mxu0 0
    %1855 = vmatprep.subr.bf16.mxu0 0
    %1856 = vmatpush1.bf16.xpose.msra.mxu0 0
    %1857 = vmatprep.subr.bf16.mxu0 0
    %1858 = vmatpush1.bf16.xpose.msra.mxu0 0
    %1859 = vmatprep.subr.bf16.mxu0 0
    %1860 = vmatpush1.bf16.xpose.msra.mxu0 0
    %1861 = vmatprep.subr.bf16.mxu0 0
    %1862 = vmatpush1.bf16.xpose.msra.mxu0 0
    %1863 = vmatprep.subr.bf16.mxu0 0
    %1864 = vmatpush1.bf16.xpose.msra.mxu0 0
    %1865 = vmatprep.subr.bf16.mxu0 0
    %1866 = vmatpush1.bf16.xpose.msra.mxu0 0
    %1867 = vmatprep.subr.bf16.mxu0 0
    %1868 = vmatpush1.bf16.xpose.msra.mxu0 0
    %1869 = vmatprep.subr.bf16.mxu0 0
    %1870 = vmatpush1.bf16.xpose.msra.mxu0 0
    %1871 = vmatprep.subr.bf16.mxu0 0
    %1872 = vmatpush1.bf16.xpose.msra.mxu0 0
    %1873 = vmatprep.subr.bf16.mxu0 0
    %1874 = vmatpush1.bf16.xpose.msra.mxu0 0
    %1875 = vmatprep.subr.bf16.mxu0 0
    %1876 = vmatpush1.bf16.xpose.msra.mxu0 0
    %1877 = vmatprep.mubr.bf16.mxu0 0
    %1878 = vmatmul.mubr.bf16.gmra.mrb[0].mxu0 %v1840
    %v1879 = vpop.f32.mrb[0].mxu0
    %v1880 = vadd.f32 %v54, %v1879
    %v1881 = vpop.f32.mrb[0].mxu0
    %v1882 = vpop.f32.mrb[0].mxu0
    %v1883 = vpop.f32.mrb[0].mxu0
    %1884 = vdwg.mxu0
    %1885 = vrot.lane.b32.xlu0 %v1613, 120
    %v1886 = vpop.permute.xlu0 %1885
    %1887 = vrot.lane.b32.xlu0 %v1613, 88
    %v1888 = vpop.permute.xlu0 %1887
    %v1890 = vsel %vm179, %v1886, 0
    %v1893 = vsel %vm179, %v1888, 0
    %1895 = vmatprep.subr.bf16.mxu0 0
    %1896 = vmatpush1.bf16.xpose.msra.mxu0 %v1893
    %1897 = vmatprep.subr.bf16.mxu0 0
    %1898 = vmatpush1.bf16.xpose.msra.mxu0 0
    %1899 = vmatprep.subr.bf16.mxu0 0
    %1900 = vmatpush1.bf16.xpose.msra.mxu0 0
    %1901 = vmatprep.subr.bf16.mxu0 0
    %1902 = vmatpush1.bf16.xpose.msra.mxu0 0
    %1903 = vmatprep.subr.bf16.mxu0 0
    %1904 = vmatpush1.bf16.xpose.msra.mxu0 0
    %1905 = vmatprep.subr.bf16.mxu0 0
    %1906 = vmatpush1.bf16.xpose.msra.mxu0 0
    %1907 = vmatprep.subr.bf16.mxu0 0
    %1908 = vmatpush1.bf16.xpose.msra.mxu0 0
    %1909 = vmatprep.subr.bf16.mxu0 0
    %1910 = vmatpush1.bf16.xpose.msra.mxu0 0
    %1911 = vmatprep.subr.bf16.mxu0 0
    %1912 = vmatpush1.bf16.xpose.msra.mxu0 0
    %1913 = vmatprep.subr.bf16.mxu0 0
    %1914 = vmatpush1.bf16.xpose.msra.mxu0 0
    %1915 = vmatprep.subr.bf16.mxu0 0
    %1916 = vmatpush1.bf16.xpose.msra.mxu0 0
    %1917 = vmatprep.subr.bf16.mxu0 0
    %1918 = vmatpush1.bf16.xpose.msra.mxu0 0
    %1919 = vmatprep.subr.bf16.mxu0 0
    %1920 = vmatpush1.bf16.xpose.msra.mxu0 0
    %1921 = vmatprep.subr.bf16.mxu0 0
    %1922 = vmatpush1.bf16.xpose.msra.mxu0 0
    %1923 = vmatprep.subr.bf16.mxu0 0
    %1924 = vmatpush1.bf16.xpose.msra.mxu0 0
    %1925 = vmatprep.subr.bf16.mxu0 0
    %1926 = vmatpush1.bf16.xpose.msra.mxu0 0
    %1927 = vmatprep.mubr.bf16.mxu0 0
    %1928 = vmatmul.mubr.bf16.gmra.mrb[0].mxu0 %v1890
    %v1929 = vpop.f32.mrb[0].mxu0
    %v1930 = vadd.f32 %v54, %v1929
    %v1931 = vpop.f32.mrb[0].mxu0
    %v1932 = vpop.f32.mrb[0].mxu0
    %v1933 = vpop.f32.mrb[0].mxu0
    %1934 = vdwg.mxu0
    %v1935 = vsel %vm179, %v1880, -inf
    %1936 = vmax.xlane.f32.xlu0 %v1935
    %v1937 = vpop.xlane.xlu0 %1936
    %v1938 = vsel %vm179, %v1930, -inf
    %1939 = vmax.xlane.f32.xlu0 %v1938
    %v1940 = vpop.xlane.xlu0 %1939
    %v1941 = vsub.f32 %v1880, %v1937
    %v1942 = vsub.f32 %v1930, %v1940
    %v1943 = vmul.f32 %v1941, 1.442695
    %v1944 = vpow.pop %v1943
    %v1945 = vmul.f32 %v1942, 1.442695
    %v1946 = vpow.pop %v1945
    %v1947 = vsel %vm179, %v1944, 0.0
    %1948 = vadd.xlane.f32.xlu0 %v1947
    %v1949 = vpop.xlane.xlu0 %1948
    %v1950 = vsel %vm179, %v1946, 0.0
    %1951 = vadd.xlane.f32.xlu0 %v1950
    %v1952 = vpop.xlane.xlu0 %1951
    %v1953 = vrcp.pop %v1949
    %v1954 = vrcp.pop %v1952
    %v1955 = vmul.f32 %v1944, %v1953
    %v1956 = vmul.f32 %v1946, %v1954
    %v1957 = vpack.c.bf16 %v1955, %v1955
    %v1958 = vpack.c.bf16 %v1956, %v1956
    %1959 = vrot.lane.b32.xlu0 %v1612, 56
    %v1960 = vpop.permute.xlu0 %1959
    %v1962 = vsel %vm179, %v1957, 0
    %v1965 = vsel %vm304, %v1960, 0
    %1967 = vmatprep.subr.bf16.mxu0 0
    %1968 = vmatpush1.bf16.msra.mxu0 %v1965
    %1969 = vmatprep.subr.bf16.mxu0 0
    %1970 = vmatpush1.bf16.msra.mxu0 0
    %1971 = vmatprep.subr.bf16.mxu0 0
    %1972 = vmatpush1.bf16.msra.mxu0 0
    %1973 = vmatprep.subr.bf16.mxu0 0
    %1974 = vmatpush1.bf16.msra.mxu0 0
    %1975 = vmatprep.subr.bf16.mxu0 0
    %1976 = vmatpush1.bf16.msra.mxu0 0
    %1977 = vmatprep.subr.bf16.mxu0 0
    %1978 = vmatpush1.bf16.msra.mxu0 0
    %1979 = vmatprep.subr.bf16.mxu0 0
    %1980 = vmatpush1.bf16.msra.mxu0 0
    %1981 = vmatprep.subr.bf16.mxu0 0
    %1982 = vmatpush1.bf16.msra.mxu0 0
    %1983 = vmatprep.subr.bf16.mxu0 0
    %1984 = vmatpush1.bf16.msra.mxu0 0
    %1985 = vmatprep.subr.bf16.mxu0 0
    %1986 = vmatpush1.bf16.msra.mxu0 0
    %1987 = vmatprep.subr.bf16.mxu0 0
    %1988 = vmatpush1.bf16.msra.mxu0 0
    %1989 = vmatprep.subr.bf16.mxu0 0
    %1990 = vmatpush1.bf16.msra.mxu0 0
    %1991 = vmatprep.subr.bf16.mxu0 0
    %1992 = vmatpush1.bf16.msra.mxu0 0
    %1993 = vmatprep.subr.bf16.mxu0 0
    %1994 = vmatpush1.bf16.msra.mxu0 0
    %1995 = vmatprep.subr.bf16.mxu0 0
    %1996 = vmatpush1.bf16.msra.mxu0 0
    %1997 = vmatprep.subr.bf16.mxu0 0
    %1998 = vmatpush1.bf16.msra.mxu0 0
    %1999 = vmatprep.mubr.bf16.mxu0 0
    %2000 = vmatmul.mubr.bf16.gmra.mrb[0].mxu0 %v1962
    %v2001 = vpop.f32.mrb[0].mxu0
    %v2002 = vadd.f32 0.0, %v2001
    %v2003 = vpop.f32.mrb[0].mxu0
    %v2004 = vpop.f32.mrb[0].mxu0
    %v2005 = vpop.f32.mrb[0].mxu0
    %2006 = vdwg.mxu0
    %2007 = vrot.lane.b32.xlu0 %v1613, 56
    %v2008 = vpop.permute.xlu0 %2007
    %v2010 = vsel %vm179, %v1958, 0
    %v2013 = vsel %vm304, %v2008, 0
    %2015 = vmatprep.subr.bf16.mxu0 0
    %2016 = vmatpush1.bf16.msra.mxu0 %v2013
    %2017 = vmatprep.subr.bf16.mxu0 0
    %2018 = vmatpush1.bf16.msra.mxu0 0
    %2019 = vmatprep.subr.bf16.mxu0 0
    %2020 = vmatpush1.bf16.msra.mxu0 0
    %2021 = vmatprep.subr.bf16.mxu0 0
    %2022 = vmatpush1.bf16.msra.mxu0 0
    %2023 = vmatprep.subr.bf16.mxu0 0
    %2024 = vmatpush1.bf16.msra.mxu0 0
    %2025 = vmatprep.subr.bf16.mxu0 0
    %2026 = vmatpush1.bf16.msra.mxu0 0
    %2027 = vmatprep.subr.bf16.mxu0 0
    %2028 = vmatpush1.bf16.msra.mxu0 0
    %2029 = vmatprep.subr.bf16.mxu0 0
    %2030 = vmatpush1.bf16.msra.mxu0 0
    %2031 = vmatprep.subr.bf16.mxu0 0
    %2032 = vmatpush1.bf16.msra.mxu0 0
    %2033 = vmatprep.subr.bf16.mxu0 0
    %2034 = vmatpush1.bf16.msra.mxu0 0
    %2035 = vmatprep.subr.bf16.mxu0 0
    %2036 = vmatpush1.bf16.msra.mxu0 0
    %2037 = vmatprep.subr.bf16.mxu0 0
    %2038 = vmatpush1.bf16.msra.mxu0 0
    %2039 = vmatprep.subr.bf16.mxu0 0
    %2040 = vmatpush1.bf16.msra.mxu0 0
    %2041 = vmatprep.subr.bf16.mxu0 0
    %2042 = vmatpush1.bf16.msra.mxu0 0
    %2043 = vmatprep.subr.bf16.mxu0 0
    %2044 = vmatpush1.bf16.msra.mxu0 0
    %2045 = vmatprep.subr.bf16.mxu0 0
    %2046 = vmatpush1.bf16.msra.mxu0 0
    %2047 = vmatprep.mubr.bf16.mxu0 0
    %2048 = vmatmul.mubr.bf16.gmra.mrb[0].mxu0 %v2010
    %v2049 = vpop.f32.mrb[0].mxu0
    %v2050 = vadd.f32 0.0, %v2049
    %v2051 = vpop.f32.mrb[0].mxu0
    %v2052 = vpop.f32.mrb[0].mxu0
    %v2053 = vpop.f32.mrb[0].mxu0
    %2054 = vdwg.mxu0
    %v2055 = vpack.c.bf16 %v2050, %v2002
    %s2056 = scalar_lea.vmem %s6, 20
    %v2057 = vld [vmem:[%s2056] sm:$0xf]
    %v2059 = vsel %vm179, %v2055, 0
    %v2062 = vsel %vm304, %v2057, 0
    %2064 = vmatprep.subr.bf16.mxu0 0
    %2065 = vmatpush1.bf16.msra.mxu0 %v2062
    %2066 = vmatprep.subr.bf16.mxu0 0
    %2067 = vmatpush1.bf16.msra.mxu0 0
    %2068 = vmatprep.subr.bf16.mxu0 0
    %2069 = vmatpush1.bf16.msra.mxu0 0
    %2070 = vmatprep.subr.bf16.mxu0 0
    %2071 = vmatpush1.bf16.msra.mxu0 0
    %2072 = vmatprep.subr.bf16.mxu0 0
    %2073 = vmatpush1.bf16.msra.mxu0 0
    %2074 = vmatprep.subr.bf16.mxu0 0
    %2075 = vmatpush1.bf16.msra.mxu0 0
    %2076 = vmatprep.subr.bf16.mxu0 0
    %2077 = vmatpush1.bf16.msra.mxu0 0
    %2078 = vmatprep.subr.bf16.mxu0 0
    %2079 = vmatpush1.bf16.msra.mxu0 0
    %2080 = vmatprep.subr.bf16.mxu0 0
    %2081 = vmatpush1.bf16.msra.mxu0 0
    %2082 = vmatprep.subr.bf16.mxu0 0
    %2083 = vmatpush1.bf16.msra.mxu0 0
    %2084 = vmatprep.subr.bf16.mxu0 0
    %2085 = vmatpush1.bf16.msra.mxu0 0
    %2086 = vmatprep.subr.bf16.mxu0 0
    %2087 = vmatpush1.bf16.msra.mxu0 0
    %2088 = vmatprep.subr.bf16.mxu0 0
    %2089 = vmatpush1.bf16.msra.mxu0 0
    %2090 = vmatprep.subr.bf16.mxu0 0
    %2091 = vmatpush1.bf16.msra.mxu0 0
    %2092 = vmatprep.subr.bf16.mxu0 0
    %2093 = vmatpush1.bf16.msra.mxu0 0
    %2094 = vmatprep.subr.bf16.mxu0 0
    %2095 = vmatpush1.bf16.msra.mxu0 0
    %2096 = vmatprep.mubr.bf16.mxu0 0
    %2097 = vmatmul.mubr.bf16.gmra.mrb[0].mxu0 %v2059
    %v2098 = vpop.f32.mrb[0].mxu0
    %v2099 = vadd.f32 0.0, %v2098
    %v2100 = vpop.f32.mrb[0].mxu0
    %v2101 = vpop.f32.mrb[0].mxu0
    %v2102 = vadd.f32 0.0, %v2101
    %v2103 = vpop.f32.mrb[0].mxu0
    %2104 = vdwg.mxu0
    %v2106 = vsel %vm179, %v1832, 0
    %v2109 = vsel %vm304, %v1834, 0
    %2111 = vmatprep.subr.bf16.mxu0 0
    %2112 = vmatpush1.bf16.msra.mxu0 %v2109
    %2113 = vmatprep.subr.bf16.mxu0 0
    %2114 = vmatpush1.bf16.msra.mxu0 0
    %2115 = vmatprep.subr.bf16.mxu0 0
    %2116 = vmatpush1.bf16.msra.mxu0 0
    %2117 = vmatprep.subr.bf16.mxu0 0
    %2118 = vmatpush1.bf16.msra.mxu0 0
    %2119 = vmatprep.subr.bf16.mxu0 0
    %2120 = vmatpush1.bf16.msra.mxu0 0
    %2121 = vmatprep.subr.bf16.mxu0 0
    %2122 = vmatpush1.bf16.msra.mxu0 0
    %2123 = vmatprep.subr.bf16.mxu0 0
    %2124 = vmatpush1.bf16.msra.mxu0 0
    %2125 = vmatprep.subr.bf16.mxu0 0
    %2126 = vmatpush1.bf16.msra.mxu0 0
    %2127 = vmatprep.subr.bf16.mxu0 0
    %2128 = vmatpush1.bf16.msra.mxu0 0
    %2129 = vmatprep.subr.bf16.mxu0 0
    %2130 = vmatpush1.bf16.msra.mxu0 0
    %2131 = vmatprep.subr.bf16.mxu0 0
    %2132 = vmatpush1.bf16.msra.mxu0 0
    %2133 = vmatprep.subr.bf16.mxu0 0
    %2134 = vmatpush1.bf16.msra.mxu0 0
    %2135 = vmatprep.subr.bf16.mxu0 0
    %2136 = vmatpush1.bf16.msra.mxu0 0
    %2137 = vmatprep.subr.bf16.mxu0 0
    %2138 = vmatpush1.bf16.msra.mxu0 0
    %2139 = vmatprep.subr.bf16.mxu0 0
    %2140 = vmatpush1.bf16.msra.mxu0 0
    %2141 = vmatprep.subr.bf16.mxu0 0
    %2142 = vmatpush1.bf16.msra.mxu0 0
    %2143 = vmatprep.mubr.bf16.mxu0 0
    %2144 = vmatmul.mubr.bf16.gmra.mrb[0].mxu0 %v2106
    %v2145 = vpop.f32.mrb[0].mxu0
    %v2146 = vadd.f32 %v2099, %v2145
    %v2147 = vpop.f32.mrb[0].mxu0
    %v2148 = vpop.f32.mrb[0].mxu0
    %v2149 = vadd.f32 %v2102, %v2148
    %v2150 = vpop.f32.mrb[0].mxu0
    %2151 = vdwg.mxu0
    %2152 = vrot.lane.b32.xlu0 %v1612, 112
    %v2153 = vpop.permute.xlu0 %2152
    %2154 = vrot.lane.b32.xlu0 %v1612, 80
    %v2155 = vpop.permute.xlu0 %2154
    %v2157 = vsel %vm179, %v2153, 0
    %v2160 = vsel %vm179, %v2155, 0
    %2162 = vmatprep.subr.bf16.mxu0 0
    %2163 = vmatpush1.bf16.xpose.msra.mxu0 %v2160
    %2164 = vmatprep.subr.bf16.mxu0 0
    %2165 = vmatpush1.bf16.xpose.msra.mxu0 0
    %2166 = vmatprep.subr.bf16.mxu0 0
    %2167 = vmatpush1.bf16.xpose.msra.mxu0 0
    %2168 = vmatprep.subr.bf16.mxu0 0
    %2169 = vmatpush1.bf16.xpose.msra.mxu0 0
    %2170 = vmatprep.subr.bf16.mxu0 0
    %2171 = vmatpush1.bf16.xpose.msra.mxu0 0
    %2172 = vmatprep.subr.bf16.mxu0 0
    %2173 = vmatpush1.bf16.xpose.msra.mxu0 0
    %2174 = vmatprep.subr.bf16.mxu0 0
    %2175 = vmatpush1.bf16.xpose.msra.mxu0 0
    %2176 = vmatprep.subr.bf16.mxu0 0
    %2177 = vmatpush1.bf16.xpose.msra.mxu0 0
    %2178 = vmatprep.subr.bf16.mxu0 0
    %2179 = vmatpush1.bf16.xpose.msra.mxu0 0
    %2180 = vmatprep.subr.bf16.mxu0 0
    %2181 = vmatpush1.bf16.xpose.msra.mxu0 0
    %2182 = vmatprep.subr.bf16.mxu0 0
    %2183 = vmatpush1.bf16.xpose.msra.mxu0 0
    %2184 = vmatprep.subr.bf16.mxu0 0
    %2185 = vmatpush1.bf16.xpose.msra.mxu0 0
    %2186 = vmatprep.subr.bf16.mxu0 0
    %2187 = vmatpush1.bf16.xpose.msra.mxu0 0
    %2188 = vmatprep.subr.bf16.mxu0 0
    %2189 = vmatpush1.bf16.xpose.msra.mxu0 0
    %2190 = vmatprep.subr.bf16.mxu0 0
    %2191 = vmatpush1.bf16.xpose.msra.mxu0 0
    %2192 = vmatprep.subr.bf16.mxu0 0
    %2193 = vmatpush1.bf16.xpose.msra.mxu0 0
    %2194 = vmatprep.mubr.bf16.mxu0 0
    %2195 = vmatmul.mubr.bf16.gmra.mrb[0].mxu0 %v2157
    %v2196 = vpop.f32.mrb[0].mxu0
    %v2197 = vadd.f32 %v54, %v2196
    %v2198 = vpop.f32.mrb[0].mxu0
    %v2199 = vpop.f32.mrb[0].mxu0
    %v2200 = vpop.f32.mrb[0].mxu0
    %2201 = vdwg.mxu0
    %2202 = vrot.lane.b32.xlu0 %v1613, 112
    %v2203 = vpop.permute.xlu0 %2202
    %2204 = vrot.lane.b32.xlu0 %v1613, 80
    %v2205 = vpop.permute.xlu0 %2204
    %v2207 = vsel %vm179, %v2203, 0
    %v2210 = vsel %vm179, %v2205, 0
    %2212 = vmatprep.subr.bf16.mxu0 0
    %2213 = vmatpush1.bf16.xpose.msra.mxu0 %v2210
    %2214 = vmatprep.subr.bf16.mxu0 0
    %2215 = vmatpush1.bf16.xpose.msra.mxu0 0
    %2216 = vmatprep.subr.bf16.mxu0 0
    %2217 = vmatpush1.bf16.xpose.msra.mxu0 0
    %2218 = vmatprep.subr.bf16.mxu0 0
    %2219 = vmatpush1.bf16.xpose.msra.mxu0 0
    %2220 = vmatprep.subr.bf16.mxu0 0
    %2221 = vmatpush1.bf16.xpose.msra.mxu0 0
    %2222 = vmatprep.subr.bf16.mxu0 0
    %2223 = vmatpush1.bf16.xpose.msra.mxu0 0
    %2224 = vmatprep.subr.bf16.mxu0 0
    %2225 = vmatpush1.bf16.xpose.msra.mxu0 0
    %2226 = vmatprep.subr.bf16.mxu0 0
    %2227 = vmatpush1.bf16.xpose.msra.mxu0 0
    %2228 = vmatprep.subr.bf16.mxu0 0
    %2229 = vmatpush1.bf16.xpose.msra.mxu0 0
    %2230 = vmatprep.subr.bf16.mxu0 0
    %2231 = vmatpush1.bf16.xpose.msra.mxu0 0
    %2232 = vmatprep.subr.bf16.mxu0 0
    %2233 = vmatpush1.bf16.xpose.msra.mxu0 0
    %2234 = vmatprep.subr.bf16.mxu0 0
    %2235 = vmatpush1.bf16.xpose.msra.mxu0 0
    %2236 = vmatprep.subr.bf16.mxu0 0
    %2237 = vmatpush1.bf16.xpose.msra.mxu0 0
    %2238 = vmatprep.subr.bf16.mxu0 0
    %2239 = vmatpush1.bf16.xpose.msra.mxu0 0
    %2240 = vmatprep.subr.bf16.mxu0 0
    %2241 = vmatpush1.bf16.xpose.msra.mxu0 0
    %2242 = vmatprep.subr.bf16.mxu0 0
    %2243 = vmatpush1.bf16.xpose.msra.mxu0 0
    %2244 = vmatprep.mubr.bf16.mxu0 0
    %2245 = vmatmul.mubr.bf16.gmra.mrb[0].mxu0 %v2207
    %v2246 = vpop.f32.mrb[0].mxu0
    %v2247 = vadd.f32 %v54, %v2246
    %v2248 = vpop.f32.mrb[0].mxu0
    %v2249 = vpop.f32.mrb[0].mxu0
    %v2250 = vpop.f32.mrb[0].mxu0
    %2251 = vdwg.mxu0
    %v2252 = vsel %vm179, %v2197, -inf
    %2253 = vmax.xlane.f32.xlu0 %v2252
    %v2254 = vpop.xlane.xlu0 %2253
    %v2255 = vsel %vm179, %v2247, -inf
    %2256 = vmax.xlane.f32.xlu0 %v2255
    %v2257 = vpop.xlane.xlu0 %2256
    %v2258 = vsub.f32 %v2197, %v2254
    %v2259 = vsub.f32 %v2247, %v2257
    %v2260 = vmul.f32 %v2258, 1.442695
    %v2261 = vpow.pop %v2260
    %v2262 = vmul.f32 %v2259, 1.442695
    %v2263 = vpow.pop %v2262
    %v2264 = vsel %vm179, %v2261, 0.0
    %2265 = vadd.xlane.f32.xlu0 %v2264
    %v2266 = vpop.xlane.xlu0 %2265
    %v2267 = vsel %vm179, %v2263, 0.0
    %2268 = vadd.xlane.f32.xlu0 %v2267
    %v2269 = vpop.xlane.xlu0 %2268
    %v2270 = vrcp.pop %v2266
    %v2271 = vrcp.pop %v2269
    %v2272 = vmul.f32 %v2261, %v2270
    %v2273 = vmul.f32 %v2263, %v2271
    %v2274 = vpack.c.bf16 %v2272, %v2272
    %v2275 = vpack.c.bf16 %v2273, %v2273
    %2276 = vrot.lane.b32.xlu0 %v1612, 48
    %v2277 = vpop.permute.xlu0 %2276
    %v2279 = vsel %vm179, %v2274, 0
    %v2282 = vsel %vm304, %v2277, 0
    %2284 = vmatprep.subr.bf16.mxu0 0
    %2285 = vmatpush1.bf16.msra.mxu0 %v2282
    %2286 = vmatprep.subr.bf16.mxu0 0
    %2287 = vmatpush1.bf16.msra.mxu0 0
    %2288 = vmatprep.subr.bf16.mxu0 0
    %2289 = vmatpush1.bf16.msra.mxu0 0
    %2290 = vmatprep.subr.bf16.mxu0 0
    %2291 = vmatpush1.bf16.msra.mxu0 0
    %2292 = vmatprep.subr.bf16.mxu0 0
    %2293 = vmatpush1.bf16.msra.mxu0 0
    %2294 = vmatprep.subr.bf16.mxu0 0
    %2295 = vmatpush1.bf16.msra.mxu0 0
    %2296 = vmatprep.subr.bf16.mxu0 0
    %2297 = vmatpush1.bf16.msra.mxu0 0
    %2298 = vmatprep.subr.bf16.mxu0 0
    %2299 = vmatpush1.bf16.msra.mxu0 0
    %2300 = vmatprep.subr.bf16.mxu0 0
    %2301 = vmatpush1.bf16.msra.mxu0 0
    %2302 = vmatprep.subr.bf16.mxu0 0
    %2303 = vmatpush1.bf16.msra.mxu0 0
    %2304 = vmatprep.subr.bf16.mxu0 0
    %2305 = vmatpush1.bf16.msra.mxu0 0
    %2306 = vmatprep.subr.bf16.mxu0 0
    %2307 = vmatpush1.bf16.msra.mxu0 0
    %2308 = vmatprep.subr.bf16.mxu0 0
    %2309 = vmatpush1.bf16.msra.mxu0 0
    %2310 = vmatprep.subr.bf16.mxu0 0
    %2311 = vmatpush1.bf16.msra.mxu0 0
    %2312 = vmatprep.subr.bf16.mxu0 0
    %2313 = vmatpush1.bf16.msra.mxu0 0
    %2314 = vmatprep.subr.bf16.mxu0 0
    %2315 = vmatpush1.bf16.msra.mxu0 0
    %2316 = vmatprep.mubr.bf16.mxu0 0
    %2317 = vmatmul.mubr.bf16.gmra.mrb[0].mxu0 %v2279
    %v2318 = vpop.f32.mrb[0].mxu0
    %v2319 = vadd.f32 0.0, %v2318
    %v2320 = vpop.f32.mrb[0].mxu0
    %v2321 = vpop.f32.mrb[0].mxu0
    %v2322 = vpop.f32.mrb[0].mxu0
    %2323 = vdwg.mxu0
    %2324 = vrot.lane.b32.xlu0 %v1613, 48
    %v2325 = vpop.permute.xlu0 %2324
    %v2327 = vsel %vm179, %v2275, 0
    %v2330 = vsel %vm304, %v2325, 0
    %2332 = vmatprep.subr.bf16.mxu0 0
    %2333 = vmatpush1.bf16.msra.mxu0 %v2330
    %2334 = vmatprep.subr.bf16.mxu0 0
    %2335 = vmatpush1.bf16.msra.mxu0 0
    %2336 = vmatprep.subr.bf16.mxu0 0
    %2337 = vmatpush1.bf16.msra.mxu0 0
    %2338 = vmatprep.subr.bf16.mxu0 0
    %2339 = vmatpush1.bf16.msra.mxu0 0
    %2340 = vmatprep.subr.bf16.mxu0 0
    %2341 = vmatpush1.bf16.msra.mxu0 0
    %2342 = vmatprep.subr.bf16.mxu0 0
    %2343 = vmatpush1.bf16.msra.mxu0 0
    %2344 = vmatprep.subr.bf16.mxu0 0
    %2345 = vmatpush1.bf16.msra.mxu0 0
    %2346 = vmatprep.subr.bf16.mxu0 0
    %2347 = vmatpush1.bf16.msra.mxu0 0
    %2348 = vmatprep.subr.bf16.mxu0 0
    %2349 = vmatpush1.bf16.msra.mxu0 0
    %2350 = vmatprep.subr.bf16.mxu0 0
    %2351 = vmatpush1.bf16.msra.mxu0 0
    %2352 = vmatprep.subr.bf16.mxu0 0
    %2353 = vmatpush1.bf16.msra.mxu0 0
    %2354 = vmatprep.subr.bf16.mxu0 0
    %2355 = vmatpush1.bf16.msra.mxu0 0
    %2356 = vmatprep.subr.bf16.mxu0 0
    %2357 = vmatpush1.bf16.msra.mxu0 0
    %2358 = vmatprep.subr.bf16.mxu0 0
    %2359 = vmatpush1.bf16.msra.mxu0 0
    %2360 = vmatprep.subr.bf16.mxu0 0
    %2361 = vmatpush1.bf16.msra.mxu0 0
    %2362 = vmatprep.subr.bf16.mxu0 0
    %2363 = vmatpush1.bf16.msra.mxu0 0
    %2364 = vmatprep.mubr.bf16.mxu0 0
    %2365 = vmatmul.mubr.bf16.gmra.mrb[0].mxu0 %v2327
    %v2366 = vpop.f32.mrb[0].mxu0
    %v2367 = vadd.f32 0.0, %v2366
    %v2368 = vpop.f32.mrb[0].mxu0
    %v2369 = vpop.f32.mrb[0].mxu0
    %v2370 = vpop.f32.mrb[0].mxu0
    %2371 = vdwg.mxu0
    %v2372 = vpack.c.bf16 %v2367, %v2319
    %s2373 = scalar_lea.vmem %s6, 24
    %v2374 = vld [vmem:[%s2373] sm:$0xf]
    %v2376 = vsel %vm179, %v2372, 0
    %v2379 = vsel %vm304, %v2374, 0
    %2381 = vmatprep.subr.bf16.mxu0 0
    %2382 = vmatpush1.bf16.msra.mxu0 %v2379
    %2383 = vmatprep.subr.bf16.mxu0 0
    %2384 = vmatpush1.bf16.msra.mxu0 0
    %2385 = vmatprep.subr.bf16.mxu0 0
    %2386 = vmatpush1.bf16.msra.mxu0 0
    %2387 = vmatprep.subr.bf16.mxu0 0
    %2388 = vmatpush1.bf16.msra.mxu0 0
    %2389 = vmatprep.subr.bf16.mxu0 0
    %2390 = vmatpush1.bf16.msra.mxu0 0
    %2391 = vmatprep.subr.bf16.mxu0 0
    %2392 = vmatpush1.bf16.msra.mxu0 0
    %2393 = vmatprep.subr.bf16.mxu0 0
    %2394 = vmatpush1.bf16.msra.mxu0 0
    %2395 = vmatprep.subr.bf16.mxu0 0
    %2396 = vmatpush1.bf16.msra.mxu0 0
    %2397 = vmatprep.subr.bf16.mxu0 0
    %2398 = vmatpush1.bf16.msra.mxu0 0
    %2399 = vmatprep.subr.bf16.mxu0 0
    %2400 = vmatpush1.bf16.msra.mxu0 0
    %2401 = vmatprep.subr.bf16.mxu0 0
    %2402 = vmatpush1.bf16.msra.mxu0 0
    %2403 = vmatprep.subr.bf16.mxu0 0
    %2404 = vmatpush1.bf16.msra.mxu0 0
    %2405 = vmatprep.subr.bf16.mxu0 0
    %2406 = vmatpush1.bf16.msra.mxu0 0
    %2407 = vmatprep.subr.bf16.mxu0 0
    %2408 = vmatpush1.bf16.msra.mxu0 0
    %2409 = vmatprep.subr.bf16.mxu0 0
    %2410 = vmatpush1.bf16.msra.mxu0 0
    %2411 = vmatprep.subr.bf16.mxu0 0
    %2412 = vmatpush1.bf16.msra.mxu0 0
    %2413 = vmatprep.mubr.bf16.mxu0 0
    %2414 = vmatmul.mubr.bf16.gmra.mrb[0].mxu0 %v2376
    %v2415 = vpop.f32.mrb[0].mxu0
    %v2416 = vadd.f32 0.0, %v2415
    %v2417 = vpop.f32.mrb[0].mxu0
    %v2418 = vpop.f32.mrb[0].mxu0
    %v2419 = vadd.f32 0.0, %v2418
    %v2420 = vpop.f32.mrb[0].mxu0
    %2421 = vdwg.mxu0
    %v2422 = vadd.f32 %v2146, %v2416
    %v2423 = vadd.f32 %v2149, %v2419
    %2424 = vrot.lane.b32.xlu0 %v1612, 104
    %v2425 = vpop.permute.xlu0 %2424
    %2426 = vrot.lane.b32.xlu0 %v1612, 72
    %v2427 = vpop.permute.xlu0 %2426
    %v2429 = vsel %vm179, %v2425, 0
    %v2432 = vsel %vm179, %v2427, 0
    %2434 = vmatprep.subr.bf16.mxu0 0
    %2435 = vmatpush1.bf16.xpose.msra.mxu0 %v2432
    %2436 = vmatprep.subr.bf16.mxu0 0
    %2437 = vmatpush1.bf16.xpose.msra.mxu0 0
    %2438 = vmatprep.subr.bf16.mxu0 0
    %2439 = vmatpush1.bf16.xpose.msra.mxu0 0
    %2440 = vmatprep.subr.bf16.mxu0 0
    %2441 = vmatpush1.bf16.xpose.msra.mxu0 0
    %2442 = vmatprep.subr.bf16.mxu0 0
    %2443 = vmatpush1.bf16.xpose.msra.mxu0 0
    %2444 = vmatprep.subr.bf16.mxu0 0
    %2445 = vmatpush1.bf16.xpose.msra.mxu0 0
    %2446 = vmatprep.subr.bf16.mxu0 0
    %2447 = vmatpush1.bf16.xpose.msra.mxu0 0
    %2448 = vmatprep.subr.bf16.mxu0 0
    %2449 = vmatpush1.bf16.xpose.msra.mxu0 0
    %2450 = vmatprep.subr.bf16.mxu0 0
    %2451 = vmatpush1.bf16.xpose.msra.mxu0 0
    %2452 = vmatprep.subr.bf16.mxu0 0
    %2453 = vmatpush1.bf16.xpose.msra.mxu0 0
    %2454 = vmatprep.subr.bf16.mxu0 0
    %2455 = vmatpush1.bf16.xpose.msra.mxu0 0
    %2456 = vmatprep.subr.bf16.mxu0 0
    %2457 = vmatpush1.bf16.xpose.msra.mxu0 0
    %2458 = vmatprep.subr.bf16.mxu0 0
    %2459 = vmatpush1.bf16.xpose.msra.mxu0 0
    %2460 = vmatprep.subr.bf16.mxu0 0
    %2461 = vmatpush1.bf16.xpose.msra.mxu0 0
    %2462 = vmatprep.subr.bf16.mxu0 0
    %2463 = vmatpush1.bf16.xpose.msra.mxu0 0
    %2464 = vmatprep.subr.bf16.mxu0 0
    %2465 = vmatpush1.bf16.xpose.msra.mxu0 0
    %2466 = vmatprep.mubr.bf16.mxu0 0
    %2467 = vmatmul.mubr.bf16.gmra.mrb[0].mxu0 %v2429
    %v2468 = vpop.f32.mrb[0].mxu0
    %v2469 = vadd.f32 %v54, %v2468
    %v2470 = vpop.f32.mrb[0].mxu0
    %v2471 = vpop.f32.mrb[0].mxu0
    %v2472 = vpop.f32.mrb[0].mxu0
    %2473 = vdwg.mxu0
    %2474 = vrot.lane.b32.xlu0 %v1613, 104
    %v2475 = vpop.permute.xlu0 %2474
    %2476 = vrot.lane.b32.xlu0 %v1613, 72
    %v2477 = vpop.permute.xlu0 %2476
    %v2479 = vsel %vm179, %v2475, 0
    %v2482 = vsel %vm179, %v2477, 0
    %2484 = vmatprep.subr.bf16.mxu0 0
    %2485 = vmatpush1.bf16.xpose.msra.mxu0 %v2482
    %2486 = vmatprep.subr.bf16.mxu0 0
    %2487 = vmatpush1.bf16.xpose.msra.mxu0 0
    %2488 = vmatprep.subr.bf16.mxu0 0
    %2489 = vmatpush1.bf16.xpose.msra.mxu0 0
    %2490 = vmatprep.subr.bf16.mxu0 0
    %2491 = vmatpush1.bf16.xpose.msra.mxu0 0
    %2492 = vmatprep.subr.bf16.mxu0 0
    %2493 = vmatpush1.bf16.xpose.msra.mxu0 0
    %2494 = vmatprep.subr.bf16.mxu0 0
    %2495 = vmatpush1.bf16.xpose.msra.mxu0 0
    %2496 = vmatprep.subr.bf16.mxu0 0
    %2497 = vmatpush1.bf16.xpose.msra.mxu0 0
    %2498 = vmatprep.subr.bf16.mxu0 0
    %2499 = vmatpush1.bf16.xpose.msra.mxu0 0
    %2500 = vmatprep.subr.bf16.mxu0 0
    %2501 = vmatpush1.bf16.xpose.msra.mxu0 0
    %2502 = vmatprep.subr.bf16.mxu0 0
    %2503 = vmatpush1.bf16.xpose.msra.mxu0 0
    %2504 = vmatprep.subr.bf16.mxu0 0
    %2505 = vmatpush1.bf16.xpose.msra.mxu0 0
    %2506 = vmatprep.subr.bf16.mxu0 0
    %2507 = vmatpush1.bf16.xpose.msra.mxu0 0
    %2508 = vmatprep.subr.bf16.mxu0 0
    %2509 = vmatpush1.bf16.xpose.msra.mxu0 0
    %2510 = vmatprep.subr.bf16.mxu0 0
    %2511 = vmatpush1.bf16.xpose.msra.mxu0 0
    %2512 = vmatprep.subr.bf16.mxu0 0
    %2513 = vmatpush1.bf16.xpose.msra.mxu0 0
    %2514 = vmatprep.subr.bf16.mxu0 0
    %2515 = vmatpush1.bf16.xpose.msra.mxu0 0
    %2516 = vmatprep.mubr.bf16.mxu0 0
    %2517 = vmatmul.mubr.bf16.gmra.mrb[0].mxu0 %v2479
    %v2518 = vpop.f32.mrb[0].mxu0
    %v2519 = vadd.f32 %v54, %v2518
    %v2520 = vpop.f32.mrb[0].mxu0
    %v2521 = vpop.f32.mrb[0].mxu0
    %v2522 = vpop.f32.mrb[0].mxu0
    %2523 = vdwg.mxu0
    %v2524 = vsel %vm179, %v2469, -inf
    %2525 = vmax.xlane.f32.xlu0 %v2524
    %v2526 = vpop.xlane.xlu0 %2525
    %v2527 = vsel %vm179, %v2519, -inf
    %2528 = vmax.xlane.f32.xlu0 %v2527
    %v2529 = vpop.xlane.xlu0 %2528
    %v2530 = vsub.f32 %v2469, %v2526
    %v2531 = vsub.f32 %v2519, %v2529
    %v2532 = vmul.f32 %v2530, 1.442695
    %v2533 = vpow.pop %v2532
    %v2534 = vmul.f32 %v2531, 1.442695
    %v2535 = vpow.pop %v2534
    %v2536 = vsel %vm179, %v2533, 0.0
    %2537 = vadd.xlane.f32.xlu0 %v2536
    %v2538 = vpop.xlane.xlu0 %2537
    %v2539 = vsel %vm179, %v2535, 0.0
    %2540 = vadd.xlane.f32.xlu0 %v2539
    %v2541 = vpop.xlane.xlu0 %2540
    %v2542 = vrcp.pop %v2538
    %v2543 = vrcp.pop %v2541
    %v2544 = vmul.f32 %v2533, %v2542
    %v2545 = vmul.f32 %v2535, %v2543
    %v2546 = vpack.c.bf16 %v2544, %v2544
    %v2547 = vpack.c.bf16 %v2545, %v2545
    %2548 = vrot.lane.b32.xlu0 %v1612, 40
    %v2549 = vpop.permute.xlu0 %2548
    %v2551 = vsel %vm179, %v2546, 0
    %v2554 = vsel %vm304, %v2549, 0
    %2556 = vmatprep.subr.bf16.mxu0 0
    %2557 = vmatpush1.bf16.msra.mxu0 %v2554
    %2558 = vmatprep.subr.bf16.mxu0 0
    %2559 = vmatpush1.bf16.msra.mxu0 0
    %2560 = vmatprep.subr.bf16.mxu0 0
    %2561 = vmatpush1.bf16.msra.mxu0 0
    %2562 = vmatprep.subr.bf16.mxu0 0
    %2563 = vmatpush1.bf16.msra.mxu0 0
    %2564 = vmatprep.subr.bf16.mxu0 0
    %2565 = vmatpush1.bf16.msra.mxu0 0
    %2566 = vmatprep.subr.bf16.mxu0 0
    %2567 = vmatpush1.bf16.msra.mxu0 0
    %2568 = vmatprep.subr.bf16.mxu0 0
    %2569 = vmatpush1.bf16.msra.mxu0 0
    %2570 = vmatprep.subr.bf16.mxu0 0
    %2571 = vmatpush1.bf16.msra.mxu0 0
    %2572 = vmatprep.subr.bf16.mxu0 0
    %2573 = vmatpush1.bf16.msra.mxu0 0
    %2574 = vmatprep.subr.bf16.mxu0 0
    %2575 = vmatpush1.bf16.msra.mxu0 0
    %2576 = vmatprep.subr.bf16.mxu0 0
    %2577 = vmatpush1.bf16.msra.mxu0 0
    %2578 = vmatprep.subr.bf16.mxu0 0
    %2579 = vmatpush1.bf16.msra.mxu0 0
    %2580 = vmatprep.subr.bf16.mxu0 0
    %2581 = vmatpush1.bf16.msra.mxu0 0
    %2582 = vmatprep.subr.bf16.mxu0 0
    %2583 = vmatpush1.bf16.msra.mxu0 0
    %2584 = vmatprep.subr.bf16.mxu0 0
    %2585 = vmatpush1.bf16.msra.mxu0 0
    %2586 = vmatprep.subr.bf16.mxu0 0
    %2587 = vmatpush1.bf16.msra.mxu0 0
    %2588 = vmatprep.mubr.bf16.mxu0 0
    %2589 = vmatmul.mubr.bf16.gmra.mrb[0].mxu0 %v2551
    %v2590 = vpop.f32.mrb[0].mxu0
    %v2591 = vadd.f32 0.0, %v2590
    %v2592 = vpop.f32.mrb[0].mxu0
    %v2593 = vpop.f32.mrb[0].mxu0
    %v2594 = vpop.f32.mrb[0].mxu0
    %2595 = vdwg.mxu0
    %2596 = vrot.lane.b32.xlu0 %v1613, 40
    %v2597 = vpop.permute.xlu0 %2596
    %v2599 = vsel %vm179, %v2547, 0
    %v2602 = vsel %vm304, %v2597, 0
    %2604 = vmatprep.subr.bf16.mxu0 0
    %2605 = vmatpush1.bf16.msra.mxu0 %v2602
    %2606 = vmatprep.subr.bf16.mxu0 0
    %2607 = vmatpush1.bf16.msra.mxu0 0
    %2608 = vmatprep.subr.bf16.mxu0 0
    %2609 = vmatpush1.bf16.msra.mxu0 0
    %2610 = vmatprep.subr.bf16.mxu0 0
    %2611 = vmatpush1.bf16.msra.mxu0 0
    %2612 = vmatprep.subr.bf16.mxu0 0
    %2613 = vmatpush1.bf16.msra.mxu0 0
    %2614 = vmatprep.subr.bf16.mxu0 0
    %2615 = vmatpush1.bf16.msra.mxu0 0
    %2616 = vmatprep.subr.bf16.mxu0 0
    %2617 = vmatpush1.bf16.msra.mxu0 0
    %2618 = vmatprep.subr.bf16.mxu0 0
    %2619 = vmatpush1.bf16.msra.mxu0 0
    %2620 = vmatprep.subr.bf16.mxu0 0
    %2621 = vmatpush1.bf16.msra.mxu0 0
    %2622 = vmatprep.subr.bf16.mxu0 0
    %2623 = vmatpush1.bf16.msra.mxu0 0
    %2624 = vmatprep.subr.bf16.mxu0 0
    %2625 = vmatpush1.bf16.msra.mxu0 0
    %2626 = vmatprep.subr.bf16.mxu0 0
    %2627 = vmatpush1.bf16.msra.mxu0 0
    %2628 = vmatprep.subr.bf16.mxu0 0
    %2629 = vmatpush1.bf16.msra.mxu0 0
    %2630 = vmatprep.subr.bf16.mxu0 0
    %2631 = vmatpush1.bf16.msra.mxu0 0
    %2632 = vmatprep.subr.bf16.mxu0 0
    %2633 = vmatpush1.bf16.msra.mxu0 0
    %2634 = vmatprep.subr.bf16.mxu0 0
    %2635 = vmatpush1.bf16.msra.mxu0 0
    %2636 = vmatprep.mubr.bf16.mxu0 0
    %2637 = vmatmul.mubr.bf16.gmra.mrb[0].mxu0 %v2599
    %v2638 = vpop.f32.mrb[0].mxu0
    %v2639 = vadd.f32 0.0, %v2638
    %v2640 = vpop.f32.mrb[0].mxu0
    %v2641 = vpop.f32.mrb[0].mxu0
    %v2642 = vpop.f32.mrb[0].mxu0
    %2643 = vdwg.mxu0
    %v2644 = vpack.c.bf16 %v2639, %v2591
    %s2645 = scalar_lea.vmem %s6, 28
    %v2646 = vld [vmem:[%s2645] sm:$0xf]
    %v2648 = vsel %vm179, %v2644, 0
    %v2651 = vsel %vm304, %v2646, 0
    %2653 = vmatprep.subr.bf16.mxu0 0
    %2654 = vmatpush1.bf16.msra.mxu0 %v2651
    %2655 = vmatprep.subr.bf16.mxu0 0
    %2656 = vmatpush1.bf16.msra.mxu0 0
    %2657 = vmatprep.subr.bf16.mxu0 0
    %2658 = vmatpush1.bf16.msra.mxu0 0
    %2659 = vmatprep.subr.bf16.mxu0 0
    %2660 = vmatpush1.bf16.msra.mxu0 0
    %2661 = vmatprep.subr.bf16.mxu0 0
    %2662 = vmatpush1.bf16.msra.mxu0 0
    %2663 = vmatprep.subr.bf16.mxu0 0
    %2664 = vmatpush1.bf16.msra.mxu0 0
    %2665 = vmatprep.subr.bf16.mxu0 0
    %2666 = vmatpush1.bf16.msra.mxu0 0
    %2667 = vmatprep.subr.bf16.mxu0 0
    %2668 = vmatpush1.bf16.msra.mxu0 0
    %2669 = vmatprep.subr.bf16.mxu0 0
    %2670 = vmatpush1.bf16.msra.mxu0 0
    %2671 = vmatprep.subr.bf16.mxu0 0
    %2672 = vmatpush1.bf16.msra.mxu0 0
    %2673 = vmatprep.subr.bf16.mxu0 0
    %2674 = vmatpush1.bf16.msra.mxu0 0
    %2675 = vmatprep.subr.bf16.mxu0 0
    %2676 = vmatpush1.bf16.msra.mxu0 0
    %2677 = vmatprep.subr.bf16.mxu0 0
    %2678 = vmatpush1.bf16.msra.mxu0 0
    %2679 = vmatprep.subr.bf16.mxu0 0
    %2680 = vmatpush1.bf16.msra.mxu0 0
    %2681 = vmatprep.subr.bf16.mxu0 0
    %2682 = vmatpush1.bf16.msra.mxu0 0
    %2683 = vmatprep.subr.bf16.mxu0 0
    %2684 = vmatpush1.bf16.msra.mxu0 0
    %2685 = vmatprep.mubr.bf16.mxu0 0
    %2686 = vmatmul.mubr.bf16.gmra.mrb[0].mxu0 %v2648
    %v2687 = vpop.f32.mrb[0].mxu0
    %v2688 = vadd.f32 0.0, %v2687
    %v2689 = vpop.f32.mrb[0].mxu0
    %v2690 = vpop.f32.mrb[0].mxu0
    %v2691 = vadd.f32 0.0, %v2690
    %v2692 = vpop.f32.mrb[0].mxu0
    %2693 = vdwg.mxu0
    %v2694 = vadd.f32 %v2422, %v2688
    %v2695 = vadd.f32 %v2423, %v2691
    %v2696 = vadd.f32 %v1498, %v2694
    %v2697 = vadd.f32 %v1499, %v2695
    %v2698 = vlaneseq
    %v2699 = vshrl.u32 %v2698, 7
    %v2700 = vsub.s32 0, %v2699
    %v2701 = vrot.slane %v1505, %v2700
    %v2702 = vadd.f32 %v2696, %v2701
    %v2703 = vadd.f32 %v2697, %v2701
    %v2704 = vsel %vm69, %v2702, 0.0
    %2705 = vadd.xlane.f32.xlu0 %v2704
    %v2706 = vpop.xlane.xlu0 %2705
    %v2707 = vsel %vm69, %v2703, 0.0
    %2708 = vadd.xlane.f32.xlu0 %v2707
    %v2709 = vpop.xlane.xlu0 %2708
    %v2710 = vmul.f32 %v2706, %v76
    %v2711 = vmul.f32 %v2709, %v76
    %v2712 = vsub.f32 %v2702, %v2710
    %v2713 = vsub.f32 %v2703, %v2711
    %v2714 = vmul.f32 %v2712, %v2712
    %v2715 = vmul.f32 %v2713, %v2713
    %v2716 = vsel %vm69, %v2714, 0.0
    %2717 = vadd.xlane.f32.xlu0 %v2716
    %v2718 = vpop.xlane.xlu0 %2717
    %v2719 = vsel %vm69, %v2715, 0.0
    %2720 = vadd.xlane.f32.xlu0 %v2719
    %v2721 = vpop.xlane.xlu0 %2720
    %v2722 = vmul.f32 %v2718, %v76
    %v2723 = vmul.f32 %v2721, %v76
    %v2724 = vadd.f32 %v2722, 1e-05
    %v2725 = vadd.f32 %v2723, 1e-05
    %v2726 = vrsqrt.pop %v2724
    %v2727 = vrsqrt.pop %v2725
    %v2728 = vmul.f32 %v2712, %v2726
    %v2729 = vmul.f32 %v2713, %v2727
    %v2730 = vlaneseq
    %v2731 = vshrl.u32 %v2730, 7
    %v2732 = vsub.s32 0, %v2731
    %v2733 = vrot.slane %v1502, %v2732
    %v2734 = vmul.f32 %v2728, %v2733
    %v2735 = vmul.f32 %v2729, %v2733
    %v2736 = vlaneseq
    %v2737 = vshrl.u32 %v2736, 7
    %v2738 = vsub.s32 0, %v2737
    %v2739 = vrot.slane %v1503, %v2738
    %v2740 = vadd.f32 %v2734, %v2739
    %v2741 = vadd.f32 %v2735, %v2739
    %v2742 = vpack.c.bf16 %v2741, %v2740
    %s2743 = scalar_lea.vmem %s7, 16
    %v2744 = vld [vmem:[%s2743] sm:$0xf]
    %v2745 = vld [vmem:[%s2743 + $0x4] sm:$0xf]
    %v2746 = vld [vmem:[%s2743 + $0x8] sm:$0xf]
    %v2747 = vld [vmem:[%s2743 + $0xc] sm:$0xf]
    %v2748 = vlaneseq
    %v2749 = vshrl.u32 %v2748, 7
    %v2750 = vsub.s32 0, %v2749
    %v2751 = vrot.slane %v1506, %v2750
    %v2756 = vunpack.c.l.b16 %v2744
    %v2757 = vunpack.c.l.b16 %v2745
    %v2758 = vunpack.c.l.b16 %v2746
    %v2759 = vunpack.c.l.b16 %v2747
    %v2760 = vpack.c.b16 %v2757, %v2756
    %v2761 = vpack.c.b16 %v2759, %v2758
    %v2765 = vsel %vm69, %v2742, 0
    %2767 = vmatprep.subr.bf16.mxu0 0
    %2768 = vmatpush1.bf16.msra.mxu0 %v2760
    %2769 = vmatprep.subr.bf16.mxu0 0
    %2770 = vmatpush1.bf16.msra.mxu0 %v2761
    %2771 = vmatprep.subr.bf16.mxu0 0
    %2772 = vmatpush1.bf16.msra.mxu0 0
    %2773 = vmatprep.subr.bf16.mxu0 0
    %2774 = vmatpush1.bf16.msra.mxu0 0
    %2775 = vmatprep.subr.bf16.mxu0 0
    %2776 = vmatpush1.bf16.msra.mxu0 0
    %2777 = vmatprep.subr.bf16.mxu0 0
    %2778 = vmatpush1.bf16.msra.mxu0 0
    %2779 = vmatprep.subr.bf16.mxu0 0
    %2780 = vmatpush1.bf16.msra.mxu0 0
    %2781 = vmatprep.subr.bf16.mxu0 0
    %2782 = vmatpush1.bf16.msra.mxu0 0
    %2783 = vmatprep.subr.bf16.mxu0 0
    %2784 = vmatpush1.bf16.msra.mxu0 0
    %2785 = vmatprep.subr.bf16.mxu0 0
    %2786 = vmatpush1.bf16.msra.mxu0 0
    %2787 = vmatprep.subr.bf16.mxu0 0
    %2788 = vmatpush1.bf16.msra.mxu0 0
    %2789 = vmatprep.subr.bf16.mxu0 0
    %2790 = vmatpush1.bf16.msra.mxu0 0
    %2791 = vmatprep.subr.bf16.mxu0 0
    %2792 = vmatpush1.bf16.msra.mxu0 0
    %2793 = vmatprep.subr.bf16.mxu0 0
    %2794 = vmatpush1.bf16.msra.mxu0 0
    %2795 = vmatprep.subr.bf16.mxu0 0
    %2796 = vmatpush1.bf16.msra.mxu0 0
    %2797 = vmatprep.subr.bf16.mxu0 0
    %2798 = vmatpush1.bf16.msra.mxu0 0
    %2799 = vmatprep.mubr.bf16.mxu0 0
    %2800 = vmatmul.mubr.bf16.gmra.mrb[0].mxu0 %v2765
    %v2801 = vpop.f32.mrb[0].mxu0
    %v2802 = vadd.f32 %v2751, %v2801
    %v2803 = vpop.f32.mrb[0].mxu0
    %v2804 = vpop.f32.mrb[0].mxu0
    %v2805 = vadd.f32 %v2751, %v2804
    %v2806 = vpop.f32.mrb[0].mxu0
    %2807 = vdwg.mxu0
    %v2808 = vmul.f32 %v2802, 1.702
    %v2809 = vmul.f32 %v2805, 1.702
    %v2810 = vxor.u32 %v2808, 2147483648
    %v2811 = vxor.u32 %v2809, 2147483648
    %v2812 = vmul.f32 %v2810, 1.442695
    %v2813 = vpow.pop %v2812
    %v2814 = vmul.f32 %v2811, 1.442695
    %v2815 = vpow.pop %v2814
    %v2816 = vadd.f32 %v2813, 1.0
    %v2817 = vadd.f32 %v2815, 1.0
    %v2818 = vrcp.pop %v2816
    %v2819 = vmul.f32 1.0, %v2818
    %v2820 = vrcp.pop %v2817
    %v2821 = vmul.f32 1.0, %v2820
    %v2822 = vmul.f32 %v2802, %v2819
    %v2823 = vmul.f32 %v2805, %v2821
    %v2824 = vpack.c.bf16 %v2823, %v2822
    %s2825 = scalar_lea.vmem %s8, 64
    %v2826 = vld [vmem:[%s2825] sm:$0xf]
    %v2827 = vld [vmem:[%s2825 + $0x4] sm:$0xf]
    %v2828 = vld [vmem:[%s2825 + $0x8] sm:$0xf]
    %v2829 = vld [vmem:[%s2825 + $0xc] sm:$0xf]
    %v2830 = vld [vmem:[%s2825 + $0x10] sm:$0xf]
    %v2831 = vld [vmem:[%s2825 + $0x14] sm:$0xf]
    %v2832 = vld [vmem:[%s2825 + $0x18] sm:$0xf]
    %v2833 = vld [vmem:[%s2825 + $0x1c] sm:$0xf]
    %v2834 = vld [vmem:[%s2825 + $0x20] sm:$0xf]
    %v2835 = vld [vmem:[%s2825 + $0x24] sm:$0xf]
    %v2836 = vld [vmem:[%s2825 + $0x28] sm:$0xf]
    %v2837 = vld [vmem:[%s2825 + $0x2c] sm:$0xf]
    %v2838 = vld [vmem:[%s2825 + $0x30] sm:$0xf]
    %v2839 = vld [vmem:[%s2825 + $0x34] sm:$0xf]
    %v2840 = vld [vmem:[%s2825 + $0x38] sm:$0xf]
    %v2841 = vld [vmem:[%s2825 + $0x3c] sm:$0xf]
    %v2858 = vunpack.c.l.b16 %v2826
    %v2859 = vunpack.c.l.b16 %v2827
    %v2860 = vunpack.c.l.b16 %v2828
    %v2861 = vunpack.c.l.b16 %v2829
    %v2862 = vunpack.c.l.b16 %v2830
    %v2863 = vunpack.c.l.b16 %v2831
    %v2864 = vunpack.c.l.b16 %v2832
    %v2865 = vunpack.c.l.b16 %v2833
    %v2866 = vunpack.c.l.b16 %v2834
    %v2867 = vunpack.c.l.b16 %v2835
    %v2868 = vunpack.c.l.b16 %v2836
    %v2869 = vunpack.c.l.b16 %v2837
    %v2870 = vunpack.c.l.b16 %v2838
    %v2871 = vunpack.c.l.b16 %v2839
    %v2872 = vunpack.c.l.b16 %v2840
    %v2873 = vunpack.c.l.b16 %v2841
    %v2874 = vpack.c.b16 %v2859, %v2858
    %v2875 = vpack.c.b16 %v2861, %v2860
    %v2876 = vpack.c.b16 %v2863, %v2862
    %v2877 = vpack.c.b16 %v2865, %v2864
    %v2878 = vpack.c.b16 %v2867, %v2866
    %v2879 = vpack.c.b16 %v2869, %v2868
    %v2880 = vpack.c.b16 %v2871, %v2870
    %v2881 = vpack.c.b16 %v2873, %v2872
    %2890 = vmatprep.subr.bf16.mxu0 0
    %2891 = vmatpush1.bf16.msra.mxu0 %v2874
    %2892 = vmatprep.subr.bf16.mxu0 0
    %2893 = vmatpush1.bf16.msra.mxu0 %v2875
    %2894 = vmatprep.subr.bf16.mxu0 0
    %2895 = vmatpush1.bf16.msra.mxu0 %v2876
    %2896 = vmatprep.subr.bf16.mxu0 0
    %2897 = vmatpush1.bf16.msra.mxu0 %v2877
    %2898 = vmatprep.subr.bf16.mxu0 0
    %2899 = vmatpush1.bf16.msra.mxu0 %v2878
    %2900 = vmatprep.subr.bf16.mxu0 0
    %2901 = vmatpush1.bf16.msra.mxu0 %v2879
    %2902 = vmatprep.subr.bf16.mxu0 0
    %2903 = vmatpush1.bf16.msra.mxu0 %v2880
    %2904 = vmatprep.subr.bf16.mxu0 0
    %2905 = vmatpush1.bf16.msra.mxu0 %v2881
    %2906 = vmatprep.subr.bf16.mxu0 0
    %2907 = vmatpush1.bf16.msra.mxu0 0
    %2908 = vmatprep.subr.bf16.mxu0 0
    %2909 = vmatpush1.bf16.msra.mxu0 0
    %2910 = vmatprep.subr.bf16.mxu0 0
    %2911 = vmatpush1.bf16.msra.mxu0 0
    %2912 = vmatprep.subr.bf16.mxu0 0
    %2913 = vmatpush1.bf16.msra.mxu0 0
    %2914 = vmatprep.subr.bf16.mxu0 0
    %2915 = vmatpush1.bf16.msra.mxu0 0
    %2916 = vmatprep.subr.bf16.mxu0 0
    %2917 = vmatpush1.bf16.msra.mxu0 0
    %2918 = vmatprep.subr.bf16.mxu0 0
    %2919 = vmatpush1.bf16.msra.mxu0 0
    %2920 = vmatprep.subr.bf16.mxu0 0
    %2921 = vmatpush1.bf16.msra.mxu0 0
    %2922 = vmatprep.mubr.bf16.mxu0 0
    %2923 = vmatmul.mubr.bf16.gmra.mrb[0].mxu0 %v2824
    %v2924 = vpop.f32.mrb[0].mxu0
    %v2925 = vadd.f32 0.0, %v2924
    %v2926 = vpop.f32.mrb[0].mxu0
    %v2927 = vpop.f32.mrb[0].mxu0
    %v2928 = vadd.f32 0.0, %v2927
    %v2929 = vpop.f32.mrb[0].mxu0
    %2930 = vdwg.mxu0
    %v2931 = vadd.f32 %v2702, %v2925
    %v2932 = vadd.f32 %v2703, %v2928
    %v2933 = vlaneseq
    %v2934 = vshrl.u32 %v2933, 7
    %v2935 = vsub.s32 0, %v2934
    %v2936 = vrot.slane %v1507, %v2935
    %v2937 = vadd.f32 %v2931, %v2936
    %v2938 = vadd.f32 %v2932, %v2936
    %v2939 = vld [vmem:[%s1] sm:$0x3]
    %2940 = vset.pattern.permute.xlu0 0
    %2941 = vperm.xlu0 %2940, %v2939
    %v2942 = vpop.permute.xlu0 %2941
    %vm2943 = vcmp.eq.s32.totalorder %v52, %v2942
    %v2944 = vsel %vm2943, 1, 0
    %v2945 = vcvt.s32.f32 %v2944
    %vm2946 = vcmask 130048
    %v2948 = vsel %vm2946, %v2945, 0
    %2950 = vmatprep.subr.mxu0 0.0
    %2951 = vmatpush1.msra.mxu0 %v2937
    %2952 = vmatprep.subr.mxu0 0.0
    %2953 = vmatpush1.msra.mxu0 %v2938
    %2954 = vmatprep.subr.mxu0 0.0
    %2955 = vmatpush1.msra.mxu0 0.0
    %2956 = vmatprep.subr.mxu0 0.0
    %2957 = vmatpush1.msra.mxu0 0.0
    %2958 = vmatprep.subr.mxu0 0.0
    %2959 = vmatpush1.msra.mxu0 0.0
    %2960 = vmatprep.subr.mxu0 0.0
    %2961 = vmatpush1.msra.mxu0 0.0
    %2962 = vmatprep.subr.mxu0 0.0
    %2963 = vmatpush1.msra.mxu0 0.0
    %2964 = vmatprep.subr.mxu0 0.0
    %2965 = vmatpush1.msra.mxu0 0.0
    %2966 = vmatprep.subr.mxu0 0.0
    %2967 = vmatpush1.msra.mxu0 0.0
    %2968 = vmatprep.subr.mxu0 0.0
    %2969 = vmatpush1.msra.mxu0 0.0
    %2970 = vmatprep.subr.mxu0 0.0
    %2971 = vmatpush1.msra.mxu0 0.0
    %2972 = vmatprep.subr.mxu0 0.0
    %2973 = vmatpush1.msra.mxu0 0.0
    %2974 = vmatprep.subr.mxu0 0.0
    %2975 = vmatpush1.msra.mxu0 0.0
    %2976 = vmatprep.subr.mxu0 0.0
    %2977 = vmatpush1.msra.mxu0 0.0
    %2978 = vmatprep.subr.mxu0 0.0
    %2979 = vmatpush1.msra.mxu0 0.0
    %2980 = vmatprep.subr.mxu0 0.0
    %2981 = vmatpush1.msra.mxu0 0.0
    %2982 = vmatprep.subr.mxu0 0.0
    %2983 = vmatpush1.msra.mxu0 0.0
    %2984 = vmatprep.subr.mxu0 0.0
    %2985 = vmatpush1.msra.mxu0 0.0
    %2986 = vmatprep.subr.mxu0 0.0
    %2987 = vmatpush1.msra.mxu0 0.0
    %2988 = vmatprep.subr.mxu0 0.0
    %2989 = vmatpush1.msra.mxu0 0.0
    %2990 = vmatprep.subr.mxu0 0.0
    %2991 = vmatpush1.msra.mxu0 0.0
    %2992 = vmatprep.subr.mxu0 0.0
    %2993 = vmatpush1.msra.mxu0 0.0
    %2994 = vmatprep.subr.mxu0 0.0
    %2995 = vmatpush1.msra.mxu0 0.0
    %2996 = vmatprep.subr.mxu0 0.0
    %2997 = vmatpush1.msra.mxu0 0.0
    %2998 = vmatprep.subr.mxu0 0.0
    %2999 = vmatpush1.msra.mxu0 0.0
    %3000 = vmatprep.subr.mxu0 0.0
    %3001 = vmatpush1.msra.mxu0 0.0
    %3002 = vmatprep.subr.mxu0 0.0
    %3003 = vmatpush1.msra.mxu0 0.0
    %3004 = vmatprep.subr.mxu0 0.0
    %3005 = vmatpush1.msra.mxu0 0.0
    %3006 = vmatprep.subr.mxu0 0.0
    %3007 = vmatpush1.msra.mxu0 0.0
    %3008 = vmatprep.subr.mxu0 0.0
    %3009 = vmatpush1.msra.mxu0 0.0
    %3010 = vmatprep.subr.mxu0 0.0
    %3011 = vmatpush1.msra.mxu0 0.0
    %3012 = vmatprep.subr.mxu0 0.0
    %3013 = vmatpush1.msra.mxu0 0.0
    %3014 = vmatprep.mubr.f32.mxu0 0.0
    %3015 = vmatmul.mubr.f32.gmra.mrb[0].mxu0 %v2948
    %v3016 = vpop.f32.mrb[0].mxu0
    %v3017 = vadd.f32 0.0, %v3016
    %v3018 = vpop.f32.mrb[0].mxu0
    %3019 = vdwg.mxu0
    %v3020 = vld [vmem:[%s3 + $0x8] sm:$0x1]
    %v3021 = vld [vmem:[%s3 + $0x9] sm:$0x1]
    %vm3022 = vcmask 254976
    %v3023 = vsel %vm3022, %v3017, 0.0
    %3024 = vadd.xlane.f32.xlu0 %v3023
    %v3025 = vpop.xlane.xlu0 %3024
    %v3026 = vmul.f32 %v3025, %v76
    %v3027 = vsub.f32 %v3017, %v3026
    %v3028 = vmul.f32 %v3027, %v3027
    %v3029 = vsel %vm3022, %v3028, 0.0
    %3030 = vadd.xlane.f32.xlu0 %v3029
    %v3031 = vpop.xlane.xlu0 %3030
    %v3032 = vmul.f32 %v3031, %v76
    %v3033 = vadd.f32 %v3032, 1e-05
    %v3034 = vrsqrt.pop %v3033
    %v3035 = vmul.f32 %v3027, %v3034
    %v3036 = vlaneseq
    %v3037 = vshrl.u32 %v3036, 7
    %v3038 = vsub.s32 0, %v3037
    %v3039 = vrot.slane %v3020, %v3038
    %v3040 = vmul.f32 %v3035, %v3039
    %v3041 = vlaneseq
    %v3042 = vshrl.u32 %v3041, 7
    %v3043 = vsub.s32 0, %v3042
    %v3044 = vrot.slane %v3021, %v3043
    %v3045 = vadd.f32 %v3040, %v3044
    %v3046 = vpack.c.bf16 %v3045, %v3045
    %v3047 = vld [vmem:[%s9] sm:$0xf]
    %v3048 = vld [vmem:[%s9 + $0x4] sm:$0xf]
    %v3049 = vld [vmem:[%s9 + $0x8] sm:$0xf]
    %v3050 = vld [vmem:[%s9 + $0xc] sm:$0xf]
    %v3055 = vunpack.c.l.b16 %v3047
    %v3056 = vunpack.c.l.b16 %v3048
    %v3057 = vunpack.c.l.b16 %v3049
    %v3058 = vunpack.c.l.b16 %v3050
    %v3059 = vpack.c.b16 %v3056, %v3055
    %v3060 = vpack.c.b16 %v3058, %v3057
    %v3064 = vsel %vm69, %v3046, 0
    %3066 = vmatprep.subr.bf16.mxu0 0
    %3067 = vmatpush1.bf16.msra.mxu0 %v3059
    %3068 = vmatprep.subr.bf16.mxu0 0
    %3069 = vmatpush1.bf16.msra.mxu0 %v3060
    %3070 = vmatprep.subr.bf16.mxu0 0
    %3071 = vmatpush1.bf16.msra.mxu0 0
    %3072 = vmatprep.subr.bf16.mxu0 0
    %3073 = vmatpush1.bf16.msra.mxu0 0
    %3074 = vmatprep.subr.bf16.mxu0 0
    %3075 = vmatpush1.bf16.msra.mxu0 0
    %3076 = vmatprep.subr.bf16.mxu0 0
    %3077 = vmatpush1.bf16.msra.mxu0 0
    %3078 = vmatprep.subr.bf16.mxu0 0
    %3079 = vmatpush1.bf16.msra.mxu0 0
    %3080 = vmatprep.subr.bf16.mxu0 0
    %3081 = vmatpush1.bf16.msra.mxu0 0
    %3082 = vmatprep.subr.bf16.mxu0 0
    %3083 = vmatpush1.bf16.msra.mxu0 0
    %3084 = vmatprep.subr.bf16.mxu0 0
    %3085 = vmatpush1.bf16.msra.mxu0 0
    %3086 = vmatprep.subr.bf16.mxu0 0
    %3087 = vmatpush1.bf16.msra.mxu0 0
    %3088 = vmatprep.subr.bf16.mxu0 0
    %3089 = vmatpush1.bf16.msra.mxu0 0
    %3090 = vmatprep.subr.bf16.mxu0 0
    %3091 = vmatpush1.bf16.msra.mxu0 0
    %3092 = vmatprep.subr.bf16.mxu0 0
    %3093 = vmatpush1.bf16.msra.mxu0 0
    %3094 = vmatprep.subr.bf16.mxu0 0
    %3095 = vmatpush1.bf16.msra.mxu0 0
    %3096 = vmatprep.subr.bf16.mxu0 0
    %3097 = vmatpush1.bf16.msra.mxu0 0
    %3098 = vmatprep.mubr.bf16.mxu0 0
    %3099 = vmatmul.mubr.bf16.gmra.mrb[0].mxu0 %v3064
    %v3100 = vpop.f32.mrb[0].mxu0
    %v3101 = vadd.f32 0.0, %v3100
    %v3102 = vpop.f32.mrb[0].mxu0
    %v3103 = vpop.f32.mrb[0].mxu0
    %v3104 = vpop.f32.mrb[0].mxu0
    %3105 = vdwg.mxu0
    %3106 = vst [vmem:[#allocation5] sm:$0x3] %v3101
    // Predicated region
    $region46: #{tpu_custom_call.1} parent=1 // pred_check
      _
    $region47: #{tpu_custom_call.1} parent=1 // pred_check_branch
      %3108 = sbr.rel (0) target = $region49
    $region48: #{tpu_custom_call.1} parent=1 // pred_region
      %s3110 = ssub.s32 32, 32
      %3111 = vsyncadd [#allocation4], %s3110
      %s3113 = sshll.u32 [#allocation5], 4
      %s3114 = int_to_ptr.vmem [resolvable:$true] %s3113
      %3116 = dma.vmem_to_hbm [thread:$0]  %s3114, 32, %s10, [#allocation4]
    $region49: #{tpu_custom_call.1} parent=1 // pred_fallthru
      _
    // Predicated region
    $region50: #{tpu_custom_call.1} parent=1 // pred_check
      _
    $region51: #{tpu_custom_call.1} parent=1 // pred_check_branch
      %3118 = sbr.rel (0) target = $region53
    $region52: #{tpu_custom_call.1} parent=1 // pred_region
      %3119 = dma.done [#allocation4], 32
    $region53: #{tpu_custom_call.1} parent=1 // pred_fallthru
      _
    %3120 = vsyncpa [#allocation3], 1
    %3121 = vsyncpa [#allocation4], 1

</llo_original>
